<compile_context>
chip_gen: v6e
topology: v6e:2x2x1
jax: 0.10.0
libtpu: 0.0.40
codegen_flags: <defaults>
</compile_context>

<pallas_src>
import functools

import jax
import jax.numpy as jnp
import numpy as np
from jax.experimental import pallas as pl
from jax.experimental.pallas import tpu as pltpu


def _round_up(n, m):
    return (n + m - 1) // m * m


def _leaky_relu(x, slope=0.2):
    # F.leaky_relu(x, 0.2)
    return jnp.where(x > 0, x, slope * x)


def _sigmoid(x):
    # sigmoid(x) = 0.5 * (tanh(x/2) + 1): overflow-safe, runs on the EUP.
    return 0.5 * (jnp.tanh(0.5 * x) + 1.0)


# ----------------------------- Pallas kernel --------------------------------
def both_classifier_kernel(
    n_pro, total, class_num,
    # data (batch-tiled)
    x_ref, valid_ref,
    # big weights (bf16, consumed directly by the MXU)
    adj_ref, w1_ref, pw1_ref, mw1_ref,
    # weighting network (f32)
    b1_ref, w2_ref, b2_ref, w3_ref, b3_ref, w4_ref, b4_ref,
    # sub-classifier biases (fc1) and merged fc2/fc3 (f32)
    pb1_ref, mb1_ref, pmw2_ref, pmb2_ref, pmw3_ref, pmb3_ref,
    # output
    out_ref,
):
    f32 = jnp.float32
    bf16 = jnp.bfloat16

    x = x_ref[...]                     # (Tb, total_pad) f32 (zero-padded cols)
    x_bf = x.astype(bf16)              # cheap pack of the small LHS operand

    # --- weighting network (big dots: native bf16 x bf16 -> f32 on the MXU) --
    h1 = jnp.dot(x_bf, w1_ref[...], preferred_element_type=f32) + b1_ref[...]
    inputs_2 = _sigmoid(
        jnp.dot(h1.astype(bf16), adj_ref[...], preferred_element_type=f32)) + x
    w = _leaky_relu(inputs_2, 0.2)
    w = _sigmoid(jnp.dot(w, w2_ref[...], preferred_element_type=f32) + b2_ref[...])
    w = _sigmoid(jnp.dot(w, w3_ref[...], preferred_element_type=f32) + b3_ref[...])
    # merged fc4: columns are [protein logits (C) | metabolomics logits (C)]
    w = jnp.dot(w, w4_ref[...], preferred_element_type=f32) + b4_ref[...]
    wp_logit = w[:, :class_num]
    wm_logit = w[:, class_num:]

    # --- protein / metabolomics classifiers -----------------------------------
    xp = x[:, :n_pro].astype(bf16)
    xm = x[:, n_pro:total].astype(bf16)
    ph = _leaky_relu(
        jnp.dot(xp, pw1_ref[...], preferred_element_type=f32) + pb1_ref[...], 0.2)
    mh = _leaky_relu(
        jnp.dot(xm, mw1_ref[...], preferred_element_type=f32) + mb1_ref[...], 0.2)
    # merged fc2/fc3: block-diagonal weights built once at pack time
    pm = jnp.concatenate([ph, mh], axis=1)                               # (Tb, 512)
    pm = _sigmoid(jnp.dot(pm, pmw2_ref[...], preferred_element_type=f32)
                  + pmb2_ref[...])                                       # (Tb, 128)
    pm = jnp.dot(pm, pmw3_ref[...], preferred_element_type=f32) + pmb3_ref[...]
    p = pm[:, :class_num]
    m = pm[:, class_num:]

    # --- pairwise softmax over (protein, metabolomics) logits + validity mask -
    valid = valid_ref[...]                                               # (Tb, 2)
    mx = jnp.maximum(wp_logit, wm_logit)
    ep = jnp.exp(wp_logit - mx)
    em = jnp.exp(wm_logit - mx)
    inv_denom = pl.reciprocal(ep + em)        # exact: only (Tb, C) elements
    w_p = (ep * inv_denom) * valid[:, 0:1]
    w_m = (em * inv_denom) * valid[:, 1:2]

    out_ref[...] = w_p * p + w_m * m


# -------------------------- one-time parameter packing ----------------------
def pack_params(params, adj_matrix, data_size):
    """Done ONCE at model-init time: transposes, lane padding to multiples of
    128, fc4 even/odd merge, pro/meta fc2+fc3 block-diagonal merge, bf16 big
    weights."""
    total = data_size["total"]
    cnum = data_size["class_num"]
    h2 = total // 4
    total_pad = _round_up(total, 128)
    h2_pad = _round_up(h2, 128)

    f32, bf16 = jnp.float32, jnp.bfloat16

    def t(w):    # PyTorch (out,in) -> (in,out)
        return jnp.asarray(w, f32).T

    def row(b):  # bias (n,) -> (1,n)
        return jnp.asarray(b, f32).reshape(1, -1)

    def pad2(a, r, c):  # zero-pad a 2D array up to (r, c)
        return jnp.pad(a, ((0, r - a.shape[0]), (0, c - a.shape[1])))

    # Weighting network.  Zero-padding is numerically neutral: pad columns of
    # h1 / inputs_2 only ever multiply zero rows of the downstream weight.
    ADJ = pad2(jnp.asarray(adj_matrix, f32), total_pad, total_pad).astype(bf16)
    W1 = pad2(t(params["fc1.w"]), total_pad, total_pad).astype(bf16)
    b1 = pad2(row(params["fc1.b"]), 1, total_pad)
    W2 = pad2(t(params["fc2.w"]), total_pad, h2_pad)
    b2 = pad2(row(params["fc2.b"]), 1, h2_pad)
    W3 = pad2(t(params["fc3.w"]), h2_pad, 64)
    b3 = row(params["fc3.b"])

    # fc4 produces interleaved logits [p0, m0, p1, m1, ...].  reshape(-1,C,2)
    # pairs columns (2c, 2c+1), so split even/odd columns and concatenate to
    # [protein block | metabolomics block] -> one dot + static slices.
    W4 = t(params["fc4.w"])                                   # (64, 2C)
    b4 = jnp.asarray(params["fc4.b"], f32)
    W4_cat = jnp.concatenate([W4[:, 0::2], W4[:, 1::2]], axis=1)
    b4_cat = jnp.concatenate([b4[0::2], b4[1::2]]).reshape(1, -1)

    # Sub-classifier fc1 (kept separate, bf16 big weights).
    PW1 = t(params["pro.fc1.w"]).astype(bf16)
    Pb1 = row(params["pro.fc1.b"])
    MW1 = t(params["meta.fc1.w"]).astype(bf16)
    Mb1 = row(params["meta.fc1.b"])

    # Merged fc2 / fc3: block-diagonal so the two (Tb,256)@(256,64) and
    # (Tb,64)@(64,C) pairs become one (Tb,512)@(512,128) and (Tb,128)@(128,2C).
    PW2, MW2 = t(params["pro.fc2.w"]), t(params["meta.fc2.w"])   # (256,64)
    PMW2 = jnp.zeros((512, 128), f32)
    PMW2 = PMW2.at[:256, :64].set(PW2).at[256:, 64:].set(MW2)
    PMb2 = jnp.concatenate([row(params["pro.fc2.b"]),
                            row(params["meta.fc2.b"])], axis=1)  # (1,128)
    PW3, MW3 = t(params["pro.fc3.w"]), t(params["meta.fc3.w"])   # (64, C)
    PMW3 = jnp.zeros((128, 2 * cnum), f32)
    PMW3 = PMW3.at[:64, :cnum].set(PW3).at[64:, cnum:].set(MW3)
    PMb3 = jnp.concatenate([row(params["pro.fc3.b"]),
                            row(params["meta.fc3.b"])], axis=1)  # (1, 2C)

    return dict(
        ADJ=ADJ, W1=W1, b1=b1, W2=W2, b2=b2, W3=W3, b3=b3, W4=W4_cat, b4=b4_cat,
        PW1=PW1, Pb1=Pb1, MW1=MW1, Mb1=Mb1,
        PMW2=PMW2, PMb2=PMb2, PMW3=PMW3, PMb3=PMb3,
    )


# -------------------------- per-generation VMEM limit ------------------------
def _vmem_limit_bytes():
    cap = 128 * 1024 * 1024
    try:
        cap = int(pltpu.get_tpu_info().vmem_capacity_bytes)
    except Exception:
        pass
    # Leave headroom for compiler scratch / pipelined x & out buffers:
    # <= half of physical VMEM, never above 48 MiB (v5e/v6e: 48 MiB, v7x: 32 MiB).
    return int(min(48 * 1024 * 1024, cap // 2))


# --------------------------------- forward ----------------------------------
def both_classifier_forward(inputs, valid, packed, data_size, *, max_tile_b=256):
    n_pro = data_size["protein"]
    total = data_size["total"]
    class_num = data_size["class_num"]
    n_meta = total - n_pro
    h2_pad = _round_up(total // 4, 128)
    total_pad = _round_up(total, 128)
    B = inputs.shape[0]

    # Tile selection: choose the tile COUNT first so batch padding waste is
    # bounded; force >= 2 grid steps when the batch allows so v7x's two
    # TensorCores both get work (no-op on single-TC v5e/v6e).
    n_tiles = pl.cdiv(B, max_tile_b)
    if n_tiles == 1 and B >= 16:
        n_tiles = 2
    tile_b = max(8, _round_up(pl.cdiv(B, n_tiles), 8))
    B_pad = pl.cdiv(B, tile_b) * tile_b
    grid = (B_pad // tile_b,)

    x = jnp.asarray(inputs, jnp.float32)
    valid = jnp.asarray(valid, jnp.float32)
    if total_pad != total:
        x = jnp.pad(x, ((0, 0), (0, total_pad - total)))
    if B_pad != B:
        x = jnp.pad(x, ((0, B_pad - B), (0, 0)))
        valid = jnp.pad(valid, ((0, B_pad - B), (0, 0)))

    p = packed
    weight_args = (
        p["ADJ"], p["W1"], p["PW1"], p["MW1"],
        p["b1"], p["W2"], p["b2"], p["W3"], p["b3"], p["W4"], p["b4"],
        p["Pb1"], p["Mb1"], p["PMW2"], p["PMb2"], p["PMW3"], p["PMb3"],
    )

    # Advisory cost estimate so XLA can schedule around the kernel.
    per_row_flops = 2 * (
        total_pad * total_pad + total_pad * total_pad
        + total_pad * h2_pad + h2_pad * 64 + 64 * 2 * class_num
        + n_pro * 256 + n_meta * 256 + 512 * 128 + 128 * 2 * class_num
    )
    flops = B_pad * per_row_flops
    bytes_accessed = sum(int(np.prod(a.shape)) * a.dtype.itemsize for a in weight_args)
    bytes_accessed += int(x.size) * 4 + int(valid.size) * 4 + B_pad * class_num * 4
    transcendentals = B_pad * (total_pad + h2_pad + 64 + 128 + 4 * class_num)

    kernel = functools.partial(both_classifier_kernel, n_pro, total, class_num)

    def batch_spec(cols):
        return pl.BlockSpec((tile_b, cols), lambda i: (i, 0))

    def run(single_buffer_weights):
        def const_spec(arr):
            # Weights: same block for every batch tile (stay VMEM-resident).
            # Single-buffer them: their index_map never changes, so the second
            # buffer of default double-buffering is pure VMEM waste.
            if single_buffer_weights:
                return pl.BlockSpec(arr.shape, lambda i: (0,) * arr.ndim,
                                    pipeline_mode=pl.Buffered(1))
            return pl.BlockSpec(arr.shape, lambda i: (0,) * arr.ndim)

        in_specs = [batch_spec(total_pad), batch_spec(2)] \
            + [const_spec(a) for a in weight_args]
        out_spec = batch_spec(class_num)

        return pl.pallas_call(
            kernel,
            out_shape=jax.ShapeDtypeStruct((B_pad, class_num), jnp.float32),
            grid=grid,
            in_specs=in_specs,
            out_specs=out_spec,
            compiler_params=pltpu.CompilerParams(
                dimension_semantics=("parallel",),
                vmem_limit_bytes=_vmem_limit_bytes(),
            ),
            cost_estimate=pl.CostEstimate(
                flops=flops,
                bytes_accessed=bytes_accessed,
                transcendentals=transcendentals,
            ),
        )(x, valid, *weight_args)

    try:
        out = run(True)
    except Exception:
        # Fallback if this runtime rejects single-buffered BlockSpecs.
        out = run(False)
    return out[:B]


# ----------------------------- pure-JAX reference ---------------------------
def reference_forward(inputs, valid, adj_matrix, params, data_size):
    n_pro = data_size["protein"]
    class_num = data_size["class_num"]

    def linear(x, name):
        return x @ jnp.asarray(params[name + ".w"]).T + jnp.asarray(params[name + ".b"])

    inputs_2 = jax.nn.sigmoid(linear(inputs, "fc1") @ adj_matrix) + inputs
    w = jax.nn.leaky_relu(inputs_2, 0.2)
    w = jax.nn.sigmoid(linear(w, "fc2"))
    w = jax.nn.sigmoid(linear(w, "fc3"))
    w = linear(w, "fc4")

    def sub_classifier(x, prefix):
        o = jax.nn.leaky_relu(linear(x, prefix + ".fc1"), 0.2)
        o = jax.nn.sigmoid(linear(o, prefix + ".fc2"))
        return linear(o, prefix + ".fc3")

    p = sub_classifier(inputs[:, :n_pro], "pro")
    m = sub_classifier(inputs[:, n_pro:], "meta")

    w = w.reshape(-1, class_num, 2)
    w = jax.nn.softmax(w, axis=-1)
    w_p = w[:, :, 0] * valid[:, 0:1]
    w_m = w[:, :, 1] * valid[:, 1:2]
    return w_p * p + w_m * m


# --------------------------------- setup ------------------------------------
def init_linear(key, out_f, in_f):
    """Deterministic PyTorch-style uniform(-1/sqrt(in), 1/sqrt(in)) init."""
    kw, kb = jax.random.split(key)
    bound = 1.0 / np.sqrt(in_f)
    w = jax.random.uniform(kw, (out_f, in_f), jnp.float32, -bound, bound)
    b = jax.random.uniform(kb, (out_f,), jnp.float32, -bound, bound)
    return w, b


if __name__ == "__main__":
    # Small shapes consistent with the module (original: protein+metab=1345).
    data_size = {"protein": 96, "metabolomics": 32, "total": 128, "class_num": 4}
    B = 8
    total = data_size["total"]
    cnum = data_size["class_num"]

    root = jax.random.PRNGKey(0)
    keys = jax.random.split(root, 16)

    params = {}
    params["fc1.w"], params["fc1.b"] = init_linear(keys[0], total, total)
    params["fc2.w"], params["fc2.b"] = init_linear(keys[1], total // 4, total)
    params["fc3.w"], params["fc3.b"] = init_linear(keys[2], 64, total // 4)
    params["fc4.w"], params["fc4.b"] = init_linear(keys[3], cnum * 2, 64)
    params["pro.fc1.w"], params["pro.fc1.b"] = init_linear(keys[4], 256, data_size["protein"])
    params["pro.fc2.w"], params["pro.fc2.b"] = init_linear(keys[5], 64, 256)
    params["pro.fc3.w"], params["pro.fc3.b"] = init_linear(keys[6], cnum, 64)
    params["meta.fc1.w"], params["meta.fc1.b"] = init_linear(keys[7], 256, data_size["metabolomics"])
    params["meta.fc2.w"], params["meta.fc2.b"] = init_linear(keys[8], 64, 256)
    params["meta.fc3.w"], params["meta.fc3.b"] = init_linear(keys[9], cnum, 64)

    inputs = jax.random.normal(keys[10], (B, total), jnp.float32)
    valid = jax.random.bernoulli(keys[11], 0.7, (B, 2)).astype(jnp.float32)
    # adjacency matrix (module default is all-ones; use a deterministic dense one)
    adj_matrix = jax.random.uniform(keys[12], (total, total), jnp.float32) / np.sqrt(total)

    # One-time parameter packing (transposes / padding / merges / bf16 big weights).
    packed = jax.tree_util.tree_map(
        jax.block_until_ready, pack_params(params, adj_matrix, data_size))

    out = both_classifier_forward(inputs, valid, packed, data_size)
    out = jax.block_until_ready(out)

    ref = reference_forward(inputs, valid, adj_matrix, params, data_size)
    ref = jax.block_until_ready(ref)

    np.testing.assert_allclose(np.asarray(out), np.asarray(ref), rtol=2e-2, atol=2e-2)
    print("KERNEL_OK")
</pallas_src>

<mosaic_0001>
module attributes {stable_mosaic.version = 11 : i64} {
  func.func @both_classifier_kernel(%arg0: i32, %arg1: memref<8x128xf32, #tpu.memory_space<vmem>>, %arg2: memref<8x2xf32, #tpu.memory_space<vmem>>, %arg3: memref<128x128xbf16, #tpu.memory_space<vmem>>, %arg4: memref<128x128xbf16, #tpu.memory_space<vmem>>, %arg5: memref<96x256xbf16, #tpu.memory_space<vmem>>, %arg6: memref<32x256xbf16, #tpu.memory_space<vmem>>, %arg7: memref<1x128xf32, #tpu.memory_space<vmem>>, %arg8: memref<128x128xf32, #tpu.memory_space<vmem>>, %arg9: memref<1x128xf32, #tpu.memory_space<vmem>>, %arg10: memref<128x64xf32, #tpu.memory_space<vmem>>, %arg11: memref<1x64xf32, #tpu.memory_space<vmem>>, %arg12: memref<64x8xf32, #tpu.memory_space<vmem>>, %arg13: memref<1x8xf32, #tpu.memory_space<vmem>>, %arg14: memref<1x256xf32, #tpu.memory_space<vmem>>, %arg15: memref<1x256xf32, #tpu.memory_space<vmem>>, %arg16: memref<512x128xf32, #tpu.memory_space<vmem>>, %arg17: memref<1x128xf32, #tpu.memory_space<vmem>>, %arg18: memref<128x8xf32, #tpu.memory_space<vmem>>, %arg19: memref<1x8xf32, #tpu.memory_space<vmem>>, %arg20: memref<8x4xf32, #tpu.memory_space<vmem>>) attributes {dimension_semantics = [#tpu.dimension_semantics<parallel>], iteration_bounds = array<i64: 1>, scalar_prefetch = 0 : i64, scratch_operands = 0 : i64, tpu.core_type = #tpu.core_type<tc>, window_params = [{transform_indices = @transform_0, window_bounds = array<i64: 8, 128>}, {transform_indices = @transform_1, window_bounds = array<i64: 8, 2>}, {pipeline_mode = #tpu.pipeline_mode<synchronous>, transform_indices = @transform_2, window_bounds = array<i64: 128, 128>}, {pipeline_mode = #tpu.pipeline_mode<synchronous>, transform_indices = @transform_3, window_bounds = array<i64: 128, 128>}, {pipeline_mode = #tpu.pipeline_mode<synchronous>, transform_indices = @transform_4, window_bounds = array<i64: 96, 256>}, {pipeline_mode = #tpu.pipeline_mode<synchronous>, transform_indices = @transform_5, window_bounds = array<i64: 32, 256>}, {pipeline_mode = #tpu.pipeline_mode<synchronous>, transform_indices = @transform_6, window_bounds = array<i64: 1, 128>}, {pipeline_mode = #tpu.pipeline_mode<synchronous>, transform_indices = @transform_7, window_bounds = array<i64: 128, 128>}, {pipeline_mode = #tpu.pipeline_mode<synchronous>, transform_indices = @transform_8, window_bounds = array<i64: 1, 128>}, {pipeline_mode = #tpu.pipeline_mode<synchronous>, transform_indices = @transform_9, window_bounds = array<i64: 128, 64>}, {pipeline_mode = #tpu.pipeline_mode<synchronous>, transform_indices = @transform_10, window_bounds = array<i64: 1, 64>}, {pipeline_mode = #tpu.pipeline_mode<synchronous>, transform_indices = @transform_11, window_bounds = array<i64: 64, 8>}, {pipeline_mode = #tpu.pipeline_mode<synchronous>, transform_indices = @transform_12, window_bounds = array<i64: 1, 8>}, {pipeline_mode = #tpu.pipeline_mode<synchronous>, transform_indices = @transform_13, window_bounds = array<i64: 1, 256>}, {pipeline_mode = #tpu.pipeline_mode<synchronous>, transform_indices = @transform_14, window_bounds = array<i64: 1, 256>}, {pipeline_mode = #tpu.pipeline_mode<synchronous>, transform_indices = @transform_15, window_bounds = array<i64: 512, 128>}, {pipeline_mode = #tpu.pipeline_mode<synchronous>, transform_indices = @transform_16, window_bounds = array<i64: 1, 128>}, {pipeline_mode = #tpu.pipeline_mode<synchronous>, transform_indices = @transform_17, window_bounds = array<i64: 128, 8>}, {pipeline_mode = #tpu.pipeline_mode<synchronous>, transform_indices = @transform_18, window_bounds = array<i64: 1, 8>}, {transform_indices = @transform_19, window_bounds = array<i64: 8, 4>}]} {
    %c0 = arith.constant 0 : index
    %c0_0 = arith.constant 0 : index
    %0 = vector.load %arg1[%c0, %c0_0] : memref<8x128xf32, #tpu.memory_space<vmem>>, vector<8x128xf32>
    %1 = arith.truncf %0 : vector<8x128xf32> to vector<8x128xbf16>
    %c0_1 = arith.constant 0 : index
    %c0_2 = arith.constant 0 : index
    %2 = vector.load %arg4[%c0_1, %c0_2] : memref<128x128xbf16, #tpu.memory_space<vmem>>, vector<128x128xbf16>
    %cst = arith.constant dense<0.000000e+00> : vector<8x128xf32>
    %3 = tpu.matmul %1, %2, %cst {dimension_numbers = #tpu.dot_dimension_numbers<[1], [0], [0], [1], [0, 0, 1, 1], [], []>} : vector<8x128xbf16>, vector<128x128xbf16>, vector<8x128xf32> -> vector<8x128xf32>
    %c0_3 = arith.constant 0 : index
    %c0_4 = arith.constant 0 : index
    %4 = vector.load %arg7[%c0_3, %c0_4] : memref<1x128xf32, #tpu.memory_space<vmem>>, vector<1x128xf32>
    %5 = vector.broadcast %4 : vector<1x128xf32> to vector<8x128xf32>
    %6 = arith.addf %3, %5 : vector<8x128xf32>
    %7 = arith.truncf %6 : vector<8x128xf32> to vector<8x128xbf16>
    %c0_5 = arith.constant 0 : index
    %c0_6 = arith.constant 0 : index
    %8 = vector.load %arg3[%c0_5, %c0_6] : memref<128x128xbf16, #tpu.memory_space<vmem>>, vector<128x128xbf16>
    %cst_7 = arith.constant dense<0.000000e+00> : vector<8x128xf32>
    %9 = tpu.matmul %7, %8, %cst_7 {dimension_numbers = #tpu.dot_dimension_numbers<[1], [0], [0], [1], [0, 0, 1, 1], [], []>} : vector<8x128xbf16>, vector<128x128xbf16>, vector<8x128xf32> -> vector<8x128xf32>
    %cst_8 = arith.constant 5.000000e-01 : f32
    %10 = vector.broadcast %cst_8 : f32 to vector<8x128xf32>
    %11 = arith.mulf %10, %9 : vector<8x128xf32>
    %12 = math.tanh %11 : vector<8x128xf32>
    %cst_9 = arith.constant 1.000000e+00 : f32
    %13 = vector.broadcast %cst_9 : f32 to vector<8x128xf32>
    %14 = arith.addf %12, %13 : vector<8x128xf32>
    %cst_10 = arith.constant 5.000000e-01 : f32
    %15 = vector.broadcast %cst_10 : f32 to vector<8x128xf32>
    %16 = arith.mulf %15, %14 : vector<8x128xf32>
    %17 = arith.addf %16, %0 : vector<8x128xf32>
    %cst_11 = arith.constant 0.000000e+00 : f32
    %18 = vector.broadcast %cst_11 : f32 to vector<8x128xf32>
    %19 = arith.cmpf ogt, %17, %18 : vector<8x128xf32>
    %cst_12 = arith.constant 2.000000e-01 : f32
    %20 = vector.broadcast %cst_12 : f32 to vector<8x128xf32>
    %21 = arith.mulf %20, %17 : vector<8x128xf32>
    %22 = arith.select %19, %17, %21 : vector<8x128xi1>, vector<8x128xf32>
    %c0_13 = arith.constant 0 : index
    %c0_14 = arith.constant 0 : index
    %23 = vector.load %arg8[%c0_13, %c0_14] : memref<128x128xf32, #tpu.memory_space<vmem>>, vector<128x128xf32>
    %cst_15 = arith.constant dense<0.000000e+00> : vector<8x128xf32>
    %24 = tpu.matmul %22, %23, %cst_15 {dimension_numbers = #tpu.dot_dimension_numbers<[1], [0], [0], [1], [0, 0, 1, 1], [], []>} : vector<8x128xf32>, vector<128x128xf32>, vector<8x128xf32> -> vector<8x128xf32>
    %c0_16 = arith.constant 0 : index
    %c0_17 = arith.constant 0 : index
    %25 = vector.load %arg9[%c0_16, %c0_17] : memref<1x128xf32, #tpu.memory_space<vmem>>, vector<1x128xf32>
    %26 = vector.broadcast %25 : vector<1x128xf32> to vector<8x128xf32>
    %27 = arith.addf %24, %26 : vector<8x128xf32>
    %cst_18 = arith.constant 5.000000e-01 : f32
    %28 = vector.broadcast %cst_18 : f32 to vector<8x128xf32>
    %29 = arith.mulf %28, %27 : vector<8x128xf32>
    %30 = math.tanh %29 : vector<8x128xf32>
    %cst_19 = arith.constant 1.000000e+00 : f32
    %31 = vector.broadcast %cst_19 : f32 to vector<8x128xf32>
    %32 = arith.addf %30, %31 : vector<8x128xf32>
    %cst_20 = arith.constant 5.000000e-01 : f32
    %33 = vector.broadcast %cst_20 : f32 to vector<8x128xf32>
    %34 = arith.mulf %33, %32 : vector<8x128xf32>
    %c0_21 = arith.constant 0 : index
    %c0_22 = arith.constant 0 : index
    %35 = vector.load %arg10[%c0_21, %c0_22] : memref<128x64xf32, #tpu.memory_space<vmem>>, vector<128x64xf32>
    %cst_23 = arith.constant dense<0.000000e+00> : vector<8x64xf32>
    %36 = tpu.matmul %34, %35, %cst_23 {dimension_numbers = #tpu.dot_dimension_numbers<[1], [0], [0], [1], [0, 0, 1, 1], [], []>} : vector<8x128xf32>, vector<128x64xf32>, vector<8x64xf32> -> vector<8x64xf32>
    %c0_24 = arith.constant 0 : index
    %c0_25 = arith.constant 0 : index
    %37 = vector.load %arg11[%c0_24, %c0_25] : memref<1x64xf32, #tpu.memory_space<vmem>>, vector<1x64xf32>
    %38 = vector.broadcast %37 : vector<1x64xf32> to vector<8x64xf32>
    %39 = arith.addf %36, %38 : vector<8x64xf32>
    %cst_26 = arith.constant 5.000000e-01 : f32
    %40 = vector.broadcast %cst_26 : f32 to vector<8x64xf32>
    %41 = arith.mulf %40, %39 : vector<8x64xf32>
    %42 = math.tanh %41 : vector<8x64xf32>
    %cst_27 = arith.constant 1.000000e+00 : f32
    %43 = vector.broadcast %cst_27 : f32 to vector<8x64xf32>
    %44 = arith.addf %42, %43 : vector<8x64xf32>
    %cst_28 = arith.constant 5.000000e-01 : f32
    %45 = vector.broadcast %cst_28 : f32 to vector<8x64xf32>
    %46 = arith.mulf %45, %44 : vector<8x64xf32>
    %c0_29 = arith.constant 0 : index
    %c0_30 = arith.constant 0 : index
    %47 = vector.load %arg12[%c0_29, %c0_30] : memref<64x8xf32, #tpu.memory_space<vmem>>, vector<64x8xf32>
    %cst_31 = arith.constant dense<0.000000e+00> : vector<8x8xf32>
    %48 = tpu.matmul %46, %47, %cst_31 {dimension_numbers = #tpu.dot_dimension_numbers<[1], [0], [0], [1], [0, 0, 1, 1], [], []>} : vector<8x64xf32>, vector<64x8xf32>, vector<8x8xf32> -> vector<8x8xf32>
    %c0_32 = arith.constant 0 : index
    %c0_33 = arith.constant 0 : index
    %49 = vector.load %arg13[%c0_32, %c0_33] : memref<1x8xf32, #tpu.memory_space<vmem>>, vector<1x8xf32>
    %50 = vector.broadcast %49 : vector<1x8xf32> to vector<8x8xf32>
    %51 = arith.addf %48, %50 : vector<8x8xf32>
    %52 = vector.extract_strided_slice %51 {offsets = [0, 0], sizes = [8, 4], strides = [1, 1]} : vector<8x8xf32> to vector<8x4xf32>
    %53 = vector.extract_strided_slice %51 {offsets = [0, 4], sizes = [8, 4], strides = [1, 1]} : vector<8x8xf32> to vector<8x4xf32>
    %54 = vector.extract_strided_slice %0 {offsets = [0, 0], sizes = [8, 96], strides = [1, 1]} : vector<8x128xf32> to vector<8x96xf32>
    %55 = arith.truncf %54 : vector<8x96xf32> to vector<8x96xbf16>
    %56 = vector.extract_strided_slice %0 {offsets = [0, 96], sizes = [8, 32], strides = [1, 1]} : vector<8x128xf32> to vector<8x32xf32>
    %57 = arith.truncf %56 : vector<8x32xf32> to vector<8x32xbf16>
    %c0_34 = arith.constant 0 : index
    %c0_35 = arith.constant 0 : index
    %58 = vector.load %arg5[%c0_34, %c0_35] : memref<96x256xbf16, #tpu.memory_space<vmem>>, vector<96x256xbf16>
    %cst_36 = arith.constant dense<0.000000e+00> : vector<8x256xf32>
    %59 = tpu.matmul %55, %58, %cst_36 {dimension_numbers = #tpu.dot_dimension_numbers<[1], [0], [0], [1], [0, 0, 1, 1], [], []>} : vector<8x96xbf16>, vector<96x256xbf16>, vector<8x256xf32> -> vector<8x256xf32>
    %c0_37 = arith.constant 0 : index
    %c0_38 = arith.constant 0 : index
    %60 = vector.load %arg14[%c0_37, %c0_38] : memref<1x256xf32, #tpu.memory_space<vmem>>, vector<1x256xf32>
    %61 = vector.broadcast %60 : vector<1x256xf32> to vector<8x256xf32>
    %62 = arith.addf %59, %61 : vector<8x256xf32>
    %cst_39 = arith.constant 0.000000e+00 : f32
    %63 = vector.broadcast %cst_39 : f32 to vector<8x256xf32>
    %64 = arith.cmpf ogt, %62, %63 : vector<8x256xf32>
    %cst_40 = arith.constant 2.000000e-01 : f32
    %65 = vector.broadcast %cst_40 : f32 to vector<8x256xf32>
    %66 = arith.mulf %65, %62 : vector<8x256xf32>
    %67 = arith.select %64, %62, %66 : vector<8x256xi1>, vector<8x256xf32>
    %c0_41 = arith.constant 0 : index
    %c0_42 = arith.constant 0 : index
    %68 = vector.load %arg6[%c0_41, %c0_42] : memref<32x256xbf16, #tpu.memory_space<vmem>>, vector<32x256xbf16>
    %cst_43 = arith.constant dense<0.000000e+00> : vector<8x256xf32>
    %69 = tpu.matmul %57, %68, %cst_43 {dimension_numbers = #tpu.dot_dimension_numbers<[1], [0], [0], [1], [0, 0, 1, 1], [], []>} : vector<8x32xbf16>, vector<32x256xbf16>, vector<8x256xf32> -> vector<8x256xf32>
    %c0_44 = arith.constant 0 : index
    %c0_45 = arith.constant 0 : index
    %70 = vector.load %arg15[%c0_44, %c0_45] : memref<1x256xf32, #tpu.memory_space<vmem>>, vector<1x256xf32>
    %71 = vector.broadcast %70 : vector<1x256xf32> to vector<8x256xf32>
    %72 = arith.addf %69, %71 : vector<8x256xf32>
    %cst_46 = arith.constant 0.000000e+00 : f32
    %73 = vector.broadcast %cst_46 : f32 to vector<8x256xf32>
    %74 = arith.cmpf ogt, %72, %73 : vector<8x256xf32>
    %cst_47 = arith.constant 2.000000e-01 : f32
    %75 = vector.broadcast %cst_47 : f32 to vector<8x256xf32>
    %76 = arith.mulf %75, %72 : vector<8x256xf32>
    %77 = arith.select %74, %72, %76 : vector<8x256xi1>, vector<8x256xf32>
    %78 = tpu.concatenate %67, %77 in 1 : vector<8x256xf32>, vector<8x256xf32> -> vector<8x512xf32>
    %c0_48 = arith.constant 0 : index
    %c0_49 = arith.constant 0 : index
    %79 = vector.load %arg16[%c0_48, %c0_49] : memref<512x128xf32, #tpu.memory_space<vmem>>, vector<512x128xf32>
    %cst_50 = arith.constant dense<0.000000e+00> : vector<8x128xf32>
    %80 = tpu.matmul %78, %79, %cst_50 {dimension_numbers = #tpu.dot_dimension_numbers<[1], [0], [0], [1], [0, 0, 1, 1], [], []>} : vector<8x512xf32>, vector<512x128xf32>, vector<8x128xf32> -> vector<8x128xf32>
    %c0_51 = arith.constant 0 : index
    %c0_52 = arith.constant 0 : index
    %81 = vector.load %arg17[%c0_51, %c0_52] : memref<1x128xf32, #tpu.memory_space<vmem>>, vector<1x128xf32>
    %82 = vector.broadcast %81 : vector<1x128xf32> to vector<8x128xf32>
    %83 = arith.addf %80, %82 : vector<8x128xf32>
    %cst_53 = arith.constant 5.000000e-01 : f32
    %84 = vector.broadcast %cst_53 : f32 to vector<8x128xf32>
    %85 = arith.mulf %84, %83 : vector<8x128xf32>
    %86 = math.tanh %85 : vector<8x128xf32>
    %cst_54 = arith.constant 1.000000e+00 : f32
    %87 = vector.broadcast %cst_54 : f32 to vector<8x128xf32>
    %88 = arith.addf %86, %87 : vector<8x128xf32>
    %cst_55 = arith.constant 5.000000e-01 : f32
    %89 = vector.broadcast %cst_55 : f32 to vector<8x128xf32>
    %90 = arith.mulf %89, %88 : vector<8x128xf32>
    %c0_56 = arith.constant 0 : index
    %c0_57 = arith.constant 0 : index
    %91 = vector.load %arg18[%c0_56, %c0_57] : memref<128x8xf32, #tpu.memory_space<vmem>>, vector<128x8xf32>
    %cst_58 = arith.constant dense<0.000000e+00> : vector<8x8xf32>
    %92 = tpu.matmul %90, %91, %cst_58 {dimension_numbers = #tpu.dot_dimension_numbers<[1], [0], [0], [1], [0, 0, 1, 1], [], []>} : vector<8x128xf32>, vector<128x8xf32>, vector<8x8xf32> -> vector<8x8xf32>
    %c0_59 = arith.constant 0 : index
    %c0_60 = arith.constant 0 : index
    %93 = vector.load %arg19[%c0_59, %c0_60] : memref<1x8xf32, #tpu.memory_space<vmem>>, vector<1x8xf32>
    %94 = vector.broadcast %93 : vector<1x8xf32> to vector<8x8xf32>
    %95 = arith.addf %92, %94 : vector<8x8xf32>
    %96 = vector.extract_strided_slice %95 {offsets = [0, 0], sizes = [8, 4], strides = [1, 1]} : vector<8x8xf32> to vector<8x4xf32>
    %97 = vector.extract_strided_slice %95 {offsets = [0, 4], sizes = [8, 4], strides = [1, 1]} : vector<8x8xf32> to vector<8x4xf32>
    %c0_61 = arith.constant 0 : index
    %c0_62 = arith.constant 0 : index
    %98 = vector.load %arg2[%c0_61, %c0_62] : memref<8x2xf32, #tpu.memory_space<vmem>>, vector<8x2xf32>
    %99 = arith.maximumf %52, %53 : vector<8x4xf32>
    %100 = arith.subf %52, %99 : vector<8x4xf32>
    %101 = math.exp %100 : vector<8x4xf32>
    %102 = arith.subf %53, %99 : vector<8x4xf32>
    %103 = math.exp %102 : vector<8x4xf32>
    %104 = arith.addf %101, %103 : vector<8x4xf32>
    %105 = tpu.reciprocal %104 : vector<8x4xf32> -> vector<8x4xf32>
    %106 = arith.mulf %101, %105 : vector<8x4xf32>
    %107 = vector.extract_strided_slice %98 {offsets = [0, 0], sizes = [8, 1], strides = [1, 1]} : vector<8x2xf32> to vector<8x1xf32>
    %108 = vector.broadcast %107 : vector<8x1xf32> to vector<8x4xf32>
    %109 = arith.mulf %106, %108 : vector<8x4xf32>
    %110 = arith.mulf %103, %105 : vector<8x4xf32>
    %111 = vector.extract_strided_slice %98 {offsets = [0, 1], sizes = [8, 1], strides = [1, 1]} : vector<8x2xf32> to vector<8x1xf32>
    %112 = vector.broadcast %111 : vector<8x1xf32> to vector<8x4xf32>
    %113 = arith.mulf %110, %112 : vector<8x4xf32>
    %114 = arith.mulf %109, %96 : vector<8x4xf32>
    %115 = arith.mulf %113, %97 : vector<8x4xf32>
    %116 = arith.addf %114, %115 : vector<8x4xf32>
    %c0_63 = arith.constant 0 : index
    %c0_64 = arith.constant 0 : index
    %117 = vector.load %arg20[%c0_63, %c0_64] : memref<8x4xf32, #tpu.memory_space<vmem>>, vector<8x4xf32>
    tpu.vector_store %arg20[%c0_63, %c0_64], %116 {strides = array<i32>} : memref<8x4xf32, #tpu.memory_space<vmem>>, vector<8x4xf32>,
    return
  }
  func.func @transform_0(%arg0: i32) -> (i32, i32) {
    %c0_i32 = arith.constant 0 : i32
    %c0_i32_0 = arith.constant 0 : i32
    return %arg0, %c0_i32 : i32, i32
  }
  func.func @transform_1(%arg0: i32) -> (i32, i32) {
    %c0_i32 = arith.constant 0 : i32
    %c0_i32_0 = arith.constant 0 : i32
    return %arg0, %c0_i32 : i32, i32
  }
  func.func @transform_2(%arg0: i32) -> (i32, i32) {
    %c0_i32 = arith.constant 0 : i32
    %c0_i32_0 = arith.constant 0 : i32
    %c0_i32_1 = arith.constant 0 : i32
    return %c0_i32, %c0_i32_0 : i32, i32
  }
  func.func @transform_3(%arg0: i32) -> (i32, i32) {
    %c0_i32 = arith.constant 0 : i32
    %c0_i32_0 = arith.constant 0 : i32
    %c0_i32_1 = arith.constant 0 : i32
    return %c0_i32, %c0_i32_0 : i32, i32
  }
  func.func @transform_4(%arg0: i32) -> (i32, i32) {
    %c0_i32 = arith.constant 0 : i32
    %c0_i32_0 = arith.constant 0 : i32
    %c0_i32_1 = arith.constant 0 : i32
    return %c0_i32, %c0_i32_0 : i32, i32
  }
  func.func @transform_5(%arg0: i32) -> (i32, i32) {
    %c0_i32 = arith.constant 0 : i32
    %c0_i32_0 = arith.constant 0 : i32
    %c0_i32_1 = arith.constant 0 : i32
    return %c0_i32, %c0_i32_0 : i32, i32
  }
  func.func @transform_6(%arg0: i32) -> (i32, i32) {
    %c0_i32 = arith.constant 0 : i32
    %c0_i32_0 = arith.constant 0 : i32
    %c0_i32_1 = arith.constant 0 : i32
    return %c0_i32, %c0_i32_0 : i32, i32
  }
  func.func @transform_7(%arg0: i32) -> (i32, i32) {
    %c0_i32 = arith.constant 0 : i32
    %c0_i32_0 = arith.constant 0 : i32
    %c0_i32_1 = arith.constant 0 : i32
    return %c0_i32, %c0_i32_0 : i32, i32
  }
  func.func @transform_8(%arg0: i32) -> (i32, i32) {
    %c0_i32 = arith.constant 0 : i32
    %c0_i32_0 = arith.constant 0 : i32
    %c0_i32_1 = arith.constant 0 : i32
    return %c0_i32, %c0_i32_0 : i32, i32
  }
  func.func @transform_9(%arg0: i32) -> (i32, i32) {
    %c0_i32 = arith.constant 0 : i32
    %c0_i32_0 = arith.constant 0 : i32
    %c0_i32_1 = arith.constant 0 : i32
    return %c0_i32, %c0_i32_0 : i32, i32
  }
  func.func @transform_10(%arg0: i32) -> (i32, i32) {
    %c0_i32 = arith.constant 0 : i32
    %c0_i32_0 = arith.constant 0 : i32
    %c0_i32_1 = arith.constant 0 : i32
    return %c0_i32, %c0_i32_0 : i32, i32
  }
  func.func @transform_11(%arg0: i32) -> (i32, i32) {
    %c0_i32 = arith.constant 0 : i32
    %c0_i32_0 = arith.constant 0 : i32
    %c0_i32_1 = arith.constant 0 : i32
    return %c0_i32, %c0_i32_0 : i32, i32
  }
  func.func @transform_12(%arg0: i32) -> (i32, i32) {
    %c0_i32 = arith.constant 0 : i32
    %c0_i32_0 = arith.constant 0 : i32
    %c0_i32_1 = arith.constant 0 : i32
    return %c0_i32, %c0_i32_0 : i32, i32
  }
  func.func @transform_13(%arg0: i32) -> (i32, i32) {
    %c0_i32 = arith.constant 0 : i32
    %c0_i32_0 = arith.constant 0 : i32
    %c0_i32_1 = arith.constant 0 : i32
    return %c0_i32, %c0_i32_0 : i32, i32
  }
  func.func @transform_14(%arg0: i32) -> (i32, i32) {
    %c0_i32 = arith.constant 0 : i32
    %c0_i32_0 = arith.constant 0 : i32
    %c0_i32_1 = arith.constant 0 : i32
    return %c0_i32, %c0_i32_0 : i32, i32
  }
  func.func @transform_15(%arg0: i32) -> (i32, i32) {
    %c0_i32 = arith.constant 0 : i32
    %c0_i32_0 = arith.constant 0 : i32
    %c0_i32_1 = arith.constant 0 : i32
    return %c0_i32, %c0_i32_0 : i32, i32
  }
  func.func @transform_16(%arg0: i32) -> (i32, i32) {
    %c0_i32 = arith.constant 0 : i32
    %c0_i32_0 = arith.constant 0 : i32
    %c0_i32_1 = arith.constant 0 : i32
    return %c0_i32, %c0_i32_0 : i32, i32
  }
  func.func @transform_17(%arg0: i32) -> (i32, i32) {
    %c0_i32 = arith.constant 0 : i32
    %c0_i32_0 = arith.constant 0 : i32
    %c0_i32_1 = arith.constant 0 : i32
    return %c0_i32, %c0_i32_0 : i32, i32
  }
  func.func @transform_18(%arg0: i32) -> (i32, i32) {
    %c0_i32 = arith.constant 0 : i32
    %c0_i32_0 = arith.constant 0 : i32
    %c0_i32_1 = arith.constant 0 : i32
    return %c0_i32, %c0_i32_0 : i32, i32
  }
  func.func @transform_19(%arg0: i32) -> (i32, i32) {
    %c0_i32 = arith.constant 0 : i32
    %c0_i32_0 = arith.constant 0 : i32
    return %arg0, %c0_i32 : i32, i32
  }
}

module attributes {stable_mosaic.version = 11 : i64} {
  func.func @both_classifier_kernel(%arg0: i32, %arg1: memref<8x128xf32, #tpu.memory_space<vmem>>, %arg2: memref<8x2xf32, #tpu.memory_space<vmem>>, %arg3: memref<128x128xbf16, #tpu.memory_space<vmem>>, %arg4: memref<128x128xbf16, #tpu.memory_space<vmem>>, %arg5: memref<96x256xbf16, #tpu.memory_space<vmem>>, %arg6: memref<32x256xbf16, #tpu.memory_space<vmem>>, %arg7: memref<1x128xf32, #tpu.memory_space<vmem>>, %arg8: memref<128x128xf32, #tpu.memory_space<vmem>>, %arg9: memref<1x128xf32, #tpu.memory_space<vmem>>, %arg10: memref<128x64xf32, #tpu.memory_space<vmem>>, %arg11: memref<1x64xf32, #tpu.memory_space<vmem>>, %arg12: memref<64x8xf32, #tpu.memory_space<vmem>>, %arg13: memref<1x8xf32, #tpu.memory_space<vmem>>, %arg14: memref<1x256xf32, #tpu.memory_space<vmem>>, %arg15: memref<1x256xf32, #tpu.memory_space<vmem>>, %arg16: memref<512x128xf32, #tpu.memory_space<vmem>>, %arg17: memref<1x128xf32, #tpu.memory_space<vmem>>, %arg18: memref<128x8xf32, #tpu.memory_space<vmem>>, %arg19: memref<1x8xf32, #tpu.memory_space<vmem>>, %arg20: memref<8x4xf32, #tpu.memory_space<vmem>>) attributes {dimension_semantics = [#tpu.dimension_semantics<parallel>], iteration_bounds = array<i64: 1>, scalar_prefetch = 0 : i64, scratch_operands = 0 : i64, tpu.core_type = #tpu.core_type<tc>, window_params = [{transform_indices = @transform_0, window_bounds = array<i64: 8, 128>}, {transform_indices = @transform_1, window_bounds = array<i64: 8, 2>}, {pipeline_mode = #tpu.pipeline_mode<synchronous>, transform_indices = @transform_2, window_bounds = array<i64: 128, 128>}, {pipeline_mode = #tpu.pipeline_mode<synchronous>, transform_indices = @transform_3, window_bounds = array<i64: 128, 128>}, {pipeline_mode = #tpu.pipeline_mode<synchronous>, transform_indices = @transform_4, window_bounds = array<i64: 96, 256>}, {pipeline_mode = #tpu.pipeline_mode<synchronous>, transform_indices = @transform_5, window_bounds = array<i64: 32, 256>}, {pipeline_mode = #tpu.pipeline_mode<synchronous>, transform_indices = @transform_6, window_bounds = array<i64: 1, 128>}, {pipeline_mode = #tpu.pipeline_mode<synchronous>, transform_indices = @transform_7, window_bounds = array<i64: 128, 128>}, {pipeline_mode = #tpu.pipeline_mode<synchronous>, transform_indices = @transform_8, window_bounds = array<i64: 1, 128>}, {pipeline_mode = #tpu.pipeline_mode<synchronous>, transform_indices = @transform_9, window_bounds = array<i64: 128, 64>}, {pipeline_mode = #tpu.pipeline_mode<synchronous>, transform_indices = @transform_10, window_bounds = array<i64: 1, 64>}, {pipeline_mode = #tpu.pipeline_mode<synchronous>, transform_indices = @transform_11, window_bounds = array<i64: 64, 8>}, {pipeline_mode = #tpu.pipeline_mode<synchronous>, transform_indices = @transform_12, window_bounds = array<i64: 1, 8>}, {pipeline_mode = #tpu.pipeline_mode<synchronous>, transform_indices = @transform_13, window_bounds = array<i64: 1, 256>}, {pipeline_mode = #tpu.pipeline_mode<synchronous>, transform_indices = @transform_14, window_bounds = array<i64: 1, 256>}, {pipeline_mode = #tpu.pipeline_mode<synchronous>, transform_indices = @transform_15, window_bounds = array<i64: 512, 128>}, {pipeline_mode = #tpu.pipeline_mode<synchronous>, transform_indices = @transform_16, window_bounds = array<i64: 1, 128>}, {pipeline_mode = #tpu.pipeline_mode<synchronous>, transform_indices = @transform_17, window_bounds = array<i64: 128, 8>}, {pipeline_mode = #tpu.pipeline_mode<synchronous>, transform_indices = @transform_18, window_bounds = array<i64: 1, 8>}, {transform_indices = @transform_19, window_bounds = array<i64: 8, 4>}]} {
    %c0 = arith.constant 0 : index
    %c0_0 = arith.constant 0 : index
    %0 = vector.load %arg1[%c0, %c0_0] : memref<8x128xf32, #tpu.memory_space<vmem>>, vector<8x128xf32>
    %1 = arith.truncf %0 : vector<8x128xf32> to vector<8x128xbf16>
    %c0_1 = arith.constant 0 : index
    %c0_2 = arith.constant 0 : index
    %2 = vector.load %arg4[%c0_1, %c0_2] : memref<128x128xbf16, #tpu.memory_space<vmem>>, vector<128x128xbf16>
    %cst = arith.constant dense<0.000000e+00> : vector<8x128xf32>
    %3 = tpu.matmul %1, %2, %cst {dimension_numbers = #tpu.dot_dimension_numbers<[1], [0], [0], [1], [0, 0, 1, 1], [], []>} : vector<8x128xbf16>, vector<128x128xbf16>, vector<8x128xf32> -> vector<8x128xf32>
    %c0_3 = arith.constant 0 : index
    %c0_4 = arith.constant 0 : index
    %4 = vector.load %arg7[%c0_3, %c0_4] : memref<1x128xf32, #tpu.memory_space<vmem>>, vector<1x128xf32>
    %5 = vector.broadcast %4 : vector<1x128xf32> to vector<8x128xf32>
    %6 = arith.addf %3, %5 : vector<8x128xf32>
    %7 = arith.truncf %6 : vector<8x128xf32> to vector<8x128xbf16>
    %c0_5 = arith.constant 0 : index
    %c0_6 = arith.constant 0 : index
    %8 = vector.load %arg3[%c0_5, %c0_6] : memref<128x128xbf16, #tpu.memory_space<vmem>>, vector<128x128xbf16>
    %cst_7 = arith.constant dense<0.000000e+00> : vector<8x128xf32>
    %9 = tpu.matmul %7, %8, %cst_7 {dimension_numbers = #tpu.dot_dimension_numbers<[1], [0], [0], [1], [0, 0, 1, 1], [], []>} : vector<8x128xbf16>, vector<128x128xbf16>, vector<8x128xf32> -> vector<8x128xf32>
    %cst_8 = arith.constant 5.000000e-01 : f32
    %10 = vector.broadcast %cst_8 : f32 to vector<8x128xf32>
    %11 = arith.mulf %10, %9 : vector<8x128xf32>
    %12 = math.tanh %11 : vector<8x128xf32>
    %cst_9 = arith.constant 1.000000e+00 : f32
    %13 = vector.broadcast %cst_9 : f32 to vector<8x128xf32>
    %14 = arith.addf %12, %13 : vector<8x128xf32>
    %cst_10 = arith.constant 5.000000e-01 : f32
    %15 = vector.broadcast %cst_10 : f32 to vector<8x128xf32>
    %16 = arith.mulf %15, %14 : vector<8x128xf32>
    %17 = arith.addf %16, %0 : vector<8x128xf32>
    %cst_11 = arith.constant 0.000000e+00 : f32
    %18 = vector.broadcast %cst_11 : f32 to vector<8x128xf32>
    %19 = arith.cmpf ogt, %17, %18 : vector<8x128xf32>
    %cst_12 = arith.constant 2.000000e-01 : f32
    %20 = vector.broadcast %cst_12 : f32 to vector<8x128xf32>
    %21 = arith.mulf %20, %17 : vector<8x128xf32>
    %22 = arith.select %19, %17, %21 : vector<8x128xi1>, vector<8x128xf32>
    %c0_13 = arith.constant 0 : index
    %c0_14 = arith.constant 0 : index
    %23 = vector.load %arg8[%c0_13, %c0_14] : memref<128x128xf32, #tpu.memory_space<vmem>>, vector<128x128xf32>
    %cst_15 = arith.constant dense<0.000000e+00> : vector<8x128xf32>
    %24 = tpu.matmul %22, %23, %cst_15 {dimension_numbers = #tpu.dot_dimension_numbers<[1], [0], [0], [1], [0, 0, 1, 1], [], []>} : vector<8x128xf32>, vector<128x128xf32>, vector<8x128xf32> -> vector<8x128xf32>
    %c0_16 = arith.constant 0 : index
    %c0_17 = arith.constant 0 : index
    %25 = vector.load %arg9[%c0_16, %c0_17] : memref<1x128xf32, #tpu.memory_space<vmem>>, vector<1x128xf32>
    %26 = vector.broadcast %25 : vector<1x128xf32> to vector<8x128xf32>
    %27 = arith.addf %24, %26 : vector<8x128xf32>
    %cst_18 = arith.constant 5.000000e-01 : f32
    %28 = vector.broadcast %cst_18 : f32 to vector<8x128xf32>
    %29 = arith.mulf %28, %27 : vector<8x128xf32>
    %30 = math.tanh %29 : vector<8x128xf32>
    %cst_19 = arith.constant 1.000000e+00 : f32
    %31 = vector.broadcast %cst_19 : f32 to vector<8x128xf32>
    %32 = arith.addf %30, %31 : vector<8x128xf32>
    %cst_20 = arith.constant 5.000000e-01 : f32
    %33 = vector.broadcast %cst_20 : f32 to vector<8x128xf32>
    %34 = arith.mulf %33, %32 : vector<8x128xf32>
    %c0_21 = arith.constant 0 : index
    %c0_22 = arith.constant 0 : index
    %35 = vector.load %arg10[%c0_21, %c0_22] : memref<128x64xf32, #tpu.memory_space<vmem>>, vector<128x64xf32>
    %cst_23 = arith.constant dense<0.000000e+00> : vector<8x64xf32>
    %36 = tpu.matmul %34, %35, %cst_23 {dimension_numbers = #tpu.dot_dimension_numbers<[1], [0], [0], [1], [0, 0, 1, 1], [], []>} : vector<8x128xf32>, vector<128x64xf32>, vector<8x64xf32> -> vector<8x64xf32>
    %c0_24 = arith.constant 0 : index
    %c0_25 = arith.constant 0 : index
    %37 = vector.load %arg11[%c0_24, %c0_25] : memref<1x64xf32, #tpu.memory_space<vmem>>, vector<1x64xf32>
    %38 = vector.broadcast %37 : vector<1x64xf32> to vector<8x64xf32>
    %39 = arith.addf %36, %38 : vector<8x64xf32>
    %cst_26 = arith.constant 5.000000e-01 : f32
    %40 = vector.broadcast %cst_26 : f32 to vector<8x64xf32>
    %41 = arith.mulf %40, %39 : vector<8x64xf32>
    %42 = math.tanh %41 : vector<8x64xf32>
    %cst_27 = arith.constant 1.000000e+00 : f32
    %43 = vector.broadcast %cst_27 : f32 to vector<8x64xf32>
    %44 = arith.addf %42, %43 : vector<8x64xf32>
    %cst_28 = arith.constant 5.000000e-01 : f32
    %45 = vector.broadcast %cst_28 : f32 to vector<8x64xf32>
    %46 = arith.mulf %45, %44 : vector<8x64xf32>
    %c0_29 = arith.constant 0 : index
    %c0_30 = arith.constant 0 : index
    %47 = vector.load %arg12[%c0_29, %c0_30] : memref<64x8xf32, #tpu.memory_space<vmem>>, vector<64x8xf32>
    %cst_31 = arith.constant dense<0.000000e+00> : vector<8x8xf32>
    %48 = tpu.matmul %46, %47, %cst_31 {dimension_numbers = #tpu.dot_dimension_numbers<[1], [0], [0], [1], [0, 0, 1, 1], [], []>} : vector<8x64xf32>, vector<64x8xf32>, vector<8x8xf32> -> vector<8x8xf32>
    %c0_32 = arith.constant 0 : index
    %c0_33 = arith.constant 0 : index
    %49 = vector.load %arg13[%c0_32, %c0_33] : memref<1x8xf32, #tpu.memory_space<vmem>>, vector<1x8xf32>
    %50 = vector.broadcast %49 : vector<1x8xf32> to vector<8x8xf32>
    %51 = arith.addf %48, %50 : vector<8x8xf32>
    %52 = vector.extract_strided_slice %51 {offsets = [0, 0], sizes = [8, 4], strides = [1, 1]} : vector<8x8xf32> to vector<8x4xf32>
    %53 = vector.extract_strided_slice %51 {offsets = [0, 4], sizes = [8, 4], strides = [1, 1]} : vector<8x8xf32> to vector<8x4xf32>
    %54 = vector.extract_strided_slice %0 {offsets = [0, 0], sizes = [8, 96], strides = [1, 1]} : vector<8x128xf32> to vector<8x96xf32>
    %55 = arith.truncf %54 : vector<8x96xf32> to vector<8x96xbf16>
    %56 = vector.extract_strided_slice %0 {offsets = [0, 96], sizes = [8, 32], strides = [1, 1]} : vector<8x128xf32> to vector<8x32xf32>
    %57 = arith.truncf %56 : vector<8x32xf32> to vector<8x32xbf16>
    %c0_34 = arith.constant 0 : index
    %c0_35 = arith.constant 0 : index
    %58 = vector.load %arg5[%c0_34, %c0_35] : memref<96x256xbf16, #tpu.memory_space<vmem>>, vector<96x256xbf16>
    %cst_36 = arith.constant dense<0.000000e+00> : vector<8x256xf32>
    %59 = tpu.matmul %55, %58, %cst_36 {dimension_numbers = #tpu.dot_dimension_numbers<[1], [0], [0], [1], [0, 0, 1, 1], [], []>} : vector<8x96xbf16>, vector<96x256xbf16>, vector<8x256xf32> -> vector<8x256xf32>
    %c0_37 = arith.constant 0 : index
    %c0_38 = arith.constant 0 : index
    %60 = vector.load %arg14[%c0_37, %c0_38] : memref<1x256xf32, #tpu.memory_space<vmem>>, vector<1x256xf32>
    %61 = vector.broadcast %60 : vector<1x256xf32> to vector<8x256xf32>
    %62 = arith.addf %59, %61 : vector<8x256xf32>
    %cst_39 = arith.constant 0.000000e+00 : f32
    %63 = vector.broadcast %cst_39 : f32 to vector<8x256xf32>
    %64 = arith.cmpf ogt, %62, %63 : vector<8x256xf32>
    %cst_40 = arith.constant 2.000000e-01 : f32
    %65 = vector.broadcast %cst_40 : f32 to vector<8x256xf32>
    %66 = arith.mulf %65, %62 : vector<8x256xf32>
    %67 = arith.select %64, %62, %66 : vector<8x256xi1>, vector<8x256xf32>
    %c0_41 = arith.constant 0 : index
    %c0_42 = arith.constant 0 : index
    %68 = vector.load %arg6[%c0_41, %c0_42] : memref<32x256xbf16, #tpu.memory_space<vmem>>, vector<32x256xbf16>
    %cst_43 = arith.constant dense<0.000000e+00> : vector<8x256xf32>
    %69 = tpu.matmul %57, %68, %cst_43 {dimension_numbers = #tpu.dot_dimension_numbers<[1], [0], [0], [1], [0, 0, 1, 1], [], []>} : vector<8x32xbf16>, vector<32x256xbf16>, vector<8x256xf32> -> vector<8x256xf32>
    %c0_44 = arith.constant 0 : index
    %c0_45 = arith.constant 0 : index
    %70 = vector.load %arg15[%c0_44, %c0_45] : memref<1x256xf32, #tpu.memory_space<vmem>>, vector<1x256xf32>
    %71 = vector.broadcast %70 : vector<1x256xf32> to vector<8x256xf32>
    %72 = arith.addf %69, %71 : vector<8x256xf32>
    %cst_46 = arith.constant 0.000000e+00 : f32
    %73 = vector.broadcast %cst_46 : f32 to vector<8x256xf32>
    %74 = arith.cmpf ogt, %72, %73 : vector<8x256xf32>
    %cst_47 = arith.constant 2.000000e-01 : f32
    %75 = vector.broadcast %cst_47 : f32 to vector<8x256xf32>
    %76 = arith.mulf %75, %72 : vector<8x256xf32>
    %77 = arith.select %74, %72, %76 : vector<8x256xi1>, vector<8x256xf32>
    %78 = tpu.concatenate %67, %77 in 1 : vector<8x256xf32>, vector<8x256xf32> -> vector<8x512xf32>
    %c0_48 = arith.constant 0 : index
    %c0_49 = arith.constant 0 : index
    %79 = vector.load %arg16[%c0_48, %c0_49] : memref<512x128xf32, #tpu.memory_space<vmem>>, vector<512x128xf32>
    %cst_50 = arith.constant dense<0.000000e+00> : vector<8x128xf32>
    %80 = tpu.matmul %78, %79, %cst_50 {dimension_numbers = #tpu.dot_dimension_numbers<[1], [0], [0], [1], [0, 0, 1, 1], [], []>} : vector<8x512xf32>, vector<512x128xf32>, vector<8x128xf32> -> vector<8x128xf32>
    %c0_51 = arith.constant 0 : index
    %c0_52 = arith.constant 0 : index
    %81 = vector.load %arg17[%c0_51, %c0_52] : memref<1x128xf32, #tpu.memory_space<vmem>>, vector<1x128xf32>
    %82 = vector.broadcast %81 : vector<1x128xf32> to vector<8x128xf32>
    %83 = arith.addf %80, %82 : vector<8x128xf32>
    %cst_53 = arith.constant 5.000000e-01 : f32
    %84 = vector.broadcast %cst_53 : f32 to vector<8x128xf32>
    %85 = arith.mulf %84, %83 : vector<8x128xf32>
    %86 = math.tanh %85 : vector<8x128xf32>
    %cst_54 = arith.constant 1.000000e+00 : f32
    %87 = vector.broadcast %cst_54 : f32 to vector<8x128xf32>
    %88 = arith.addf %86, %87 : vector<8x128xf32>
    %cst_55 = arith.constant 5.000000e-01 : f32
    %89 = vector.broadcast %cst_55 : f32 to vector<8x128xf32>
    %90 = arith.mulf %89, %88 : vector<8x128xf32>
    %c0_56 = arith.constant 0 : index
    %c0_57 = arith.constant 0 : index
    %91 = vector.load %arg18[%c0_56, %c0_57] : memref<128x8xf32, #tpu.memory_space<vmem>>, vector<128x8xf32>
    %cst_58 = arith.constant dense<0.000000e+00> : vector<8x8xf32>
    %92 = tpu.matmul %90, %91, %cst_58 {dimension_numbers = #tpu.dot_dimension_numbers<[1], [0], [0], [1], [0, 0, 1, 1], [], []>} : vector<8x128xf32>, vector<128x8xf32>, vector<8x8xf32> -> vector<8x8xf32>
    %c0_59 = arith.constant 0 : index
    %c0_60 = arith.constant 0 : index
    %93 = vector.load %arg19[%c0_59, %c0_60] : memref<1x8xf32, #tpu.memory_space<vmem>>, vector<1x8xf32>
    %94 = vector.broadcast %93 : vector<1x8xf32> to vector<8x8xf32>
    %95 = arith.addf %92, %94 : vector<8x8xf32>
    %96 = vector.extract_strided_slice %95 {offsets = [0, 0], sizes = [8, 4], strides = [1, 1]} : vector<8x8xf32> to vector<8x4xf32>
    %97 = vector.extract_strided_slice %95 {offsets = [0, 4], sizes = [8, 4], strides = [1, 1]} : vector<8x8xf32> to vector<8x4xf32>
    %c0_61 = arith.constant 0 : index
    %c0_62 = arith.constant 0 : index
    %98 = vector.load %arg2[%c0_61, %c0_62] : memref<8x2xf32, #tpu.memory_space<vmem>>, vector<8x2xf32>
    %99 = arith.maximumf %52, %53 : vector<8x4xf32>
    %100 = arith.subf %52, %99 : vector<8x4xf32>
    %101 = math.exp %100 : vector<8x4xf32>
    %102 = arith.subf %53, %99 : vector<8x4xf32>
    %103 = math.exp %102 : vector<8x4xf32>
    %104 = arith.addf %101, %103 : vector<8x4xf32>
    %105 = tpu.reciprocal %104 : vector<8x4xf32> -> vector<8x4xf32>
    %106 = arith.mulf %101, %105 : vector<8x4xf32>
    %107 = vector.extract_strided_slice %98 {offsets = [0, 0], sizes = [8, 1], strides = [1, 1]} : vector<8x2xf32> to vector<8x1xf32>
    %108 = vector.broadcast %107 : vector<8x1xf32> to vector<8x4xf32>
    %109 = arith.mulf %106, %108 : vector<8x4xf32>
    %110 = arith.mulf %103, %105 : vector<8x4xf32>
    %111 = vector.extract_strided_slice %98 {offsets = [0, 1], sizes = [8, 1], strides = [1, 1]} : vector<8x2xf32> to vector<8x1xf32>
    %112 = vector.broadcast %111 : vector<8x1xf32> to vector<8x4xf32>
    %113 = arith.mulf %110, %112 : vector<8x4xf32>
    %114 = arith.mulf %109, %96 : vector<8x4xf32>
    %115 = arith.mulf %113, %97 : vector<8x4xf32>
    %116 = arith.addf %114, %115 : vector<8x4xf32>
    %c0_63 = arith.constant 0 : index
    %c0_64 = arith.constant 0 : index
    %117 = vector.load %arg20[%c0_63, %c0_64] : memref<8x4xf32, #tpu.memory_space<vmem>>, vector<8x4xf32>
    tpu.vector_store %arg20[%c0_63, %c0_64], %116 {strides = array<i32>} : memref<8x4xf32, #tpu.memory_space<vmem>>, vector<8x4xf32>,
    return
  }
  func.func @transform_0(%arg0: i32) -> (i32, i32) {
    %c0_i32 = arith.constant 0 : i32
    %c0_i32_0 = arith.constant 0 : i32
    return %arg0, %c0_i32 : i32, i32
  }
  func.func @transform_1(%arg0: i32) -> (i32, i32) {
    %c0_i32 = arith.constant 0 : i32
    %c0_i32_0 = arith.constant 0 : i32
    return %arg0, %c0_i32 : i32, i32
  }
  func.func @transform_2(%arg0: i32) -> (i32, i32) {
    %c0_i32 = arith.constant 0 : i32
    %c0_i32_0 = arith.constant 0 : i32
    %c0_i32_1 = arith.constant 0 : i32
    return %c0_i32, %c0_i32_0 : i32, i32
  }
  func.func @transform_3(%arg0: i32) -> (i32, i32) {
    %c0_i32 = arith.constant 0 : i32
    %c0_i32_0 = arith.constant 0 : i32
    %c0_i32_1 = arith.constant 0 : i32
    return %c0_i32, %c0_i32_0 : i32, i32
  }
  func.func @transform_4(%arg0: i32) -> (i32, i32) {
    %c0_i32 = arith.constant 0 : i32
    %c0_i32_0 = arith.constant 0 : i32
    %c0_i32_1 = arith.constant 0 : i32
    return %c0_i32, %c0_i32_0 : i32, i32
  }
  func.func @transform_5(%arg0: i32) -> (i32, i32) {
    %c0_i32 = arith.constant 0 : i32
    %c0_i32_0 = arith.constant 0 : i32
    %c0_i32_1 = arith.constant 0 : i32
    return %c0_i32, %c0_i32_0 : i32, i32
  }
  func.func @transform_6(%arg0: i32) -> (i32, i32) {
    %c0_i32 = arith.constant 0 : i32
    %c0_i32_0 = arith.constant 0 : i32
    %c0_i32_1 = arith.constant 0 : i32
    return %c0_i32, %c0_i32_0 : i32, i32
  }
  func.func @transform_7(%arg0: i32) -> (i32, i32) {
    %c0_i32 = arith.constant 0 : i32
    %c0_i32_0 = arith.constant 0 : i32
    %c0_i32_1 = arith.constant 0 : i32
    return %c0_i32, %c0_i32_0 : i32, i32
  }
  func.func @transform_8(%arg0: i32) -> (i32, i32) {
    %c0_i32 = arith.constant 0 : i32
    %c0_i32_0 = arith.constant 0 : i32
    %c0_i32_1 = arith.constant 0 : i32
    return %c0_i32, %c0_i32_0 : i32, i32
  }
  func.func @transform_9(%arg0: i32) -> (i32, i32) {
    %c0_i32 = arith.constant 0 : i32
    %c0_i32_0 = arith.constant 0 : i32
    %c0_i32_1 = arith.constant 0 : i32
    return %c0_i32, %c0_i32_0 : i32, i32
  }
  func.func @transform_10(%arg0: i32) -> (i32, i32) {
    %c0_i32 = arith.constant 0 : i32
    %c0_i32_0 = arith.constant 0 : i32
    %c0_i32_1 = arith.constant 0 : i32
    return %c0_i32, %c0_i32_0 : i32, i32
  }
  func.func @transform_11(%arg0: i32) -> (i32, i32) {
    %c0_i32 = arith.constant 0 : i32
    %c0_i32_0 = arith.constant 0 : i32
    %c0_i32_1 = arith.constant 0 : i32
    return %c0_i32, %c0_i32_0 : i32, i32
  }
  func.func @transform_12(%arg0: i32) -> (i32, i32) {
    %c0_i32 = arith.constant 0 : i32
    %c0_i32_0 = arith.constant 0 : i32
    %c0_i32_1 = arith.constant 0 : i32
    return %c0_i32, %c0_i32_0 : i32, i32
  }
  func.func @transform_13(%arg0: i32) -> (i32, i32) {
    %c0_i32 = arith.constant 0 : i32
    %c0_i32_0 = arith.constant 0 : i32
    %c0_i32_1 = arith.constant 0 : i32
    return %c0_i32, %c0_i32_0 : i32, i32
  }
  func.func @transform_14(%arg0: i32) -> (i32, i32) {
    %c0_i32 = arith.constant 0 : i32
    %c0_i32_0 = arith.constant 0 : i32
    %c0_i32_1 = arith.constant 0 : i32
    return %c0_i32, %c0_i32_0 : i32, i32
  }
  func.func @transform_15(%arg0: i32) -> (i32, i32) {
    %c0_i32 = arith.constant 0 : i32
    %c0_i32_0 = arith.constant 0 : i32
    %c0_i32_1 = arith.constant 0 : i32
    return %c0_i32, %c0_i32_0 : i32, i32
  }
  func.func @transform_16(%arg0: i32) -> (i32, i32) {
    %c0_i32 = arith.constant 0 : i32
    %c0_i32_0 = arith.constant 0 : i32
    %c0_i32_1 = arith.constant 0 : i32
    return %c0_i32, %c0_i32_0 : i32, i32
  }
  func.func @transform_17(%arg0: i32) -> (i32, i32) {
    %c0_i32 = arith.constant 0 : i32
    %c0_i32_0 = arith.constant 0 : i32
    %c0_i32_1 = arith.constant 0 : i32
    return %c0_i32, %c0_i32_0 : i32, i32
  }
  func.func @transform_18(%arg0: i32) -> (i32, i32) {
    %c0_i32 = arith.constant 0 : i32
    %c0_i32_0 = arith.constant 0 : i32
    %c0_i32_1 = arith.constant 0 : i32
    return %c0_i32, %c0_i32_0 : i32, i32
  }
  func.func @transform_19(%arg0: i32) -> (i32, i32) {
    %c0_i32 = arith.constant 0 : i32
    %c0_i32_0 = arith.constant 0 : i32
    return %arg0, %c0_i32 : i32, i32
  }
}

</mosaic_0001>

<llo_original>
// kernel: tpu_custom_call.1
$region0: #{tpu_custom_call.1}
  #allocation0 [shape = 'u32[]', space=smem, size = 0x4, offset = 0x4, fixed_abs, tag = 'smem constant byte address 0x4 - core index']
  #allocation1 [shape = 'u32[144,128]{1,0:T(1,128)}', space=vmem, size = 0x12000, scoped, tag = 'internal scratch']
  %s0 = inlined_call_operand.vmem [shape: f32[8,128], index: 0, kind: input, shape index: {}]
  %s1 = inlined_call_operand.vmem [shape: f32[8,2], index: 1, kind: input, shape index: {}]
  %s2 = inlined_call_operand.vmem [shape: bf16[128,128], index: 2, kind: input, shape index: {}]
  %s3 = inlined_call_operand.vmem [shape: bf16[128,128], index: 3, kind: input, shape index: {}]
  %s4 = inlined_call_operand.vmem [shape: bf16[96,256], index: 4, kind: input, shape index: {}]
  %s5 = inlined_call_operand.hbm [shape: bf16[32,256], index: 5, kind: input, shape index: {}]
  %s6 = inlined_call_operand.hbm [shape: f32[1,128], index: 6, kind: input, shape index: {}]
  %s7 = inlined_call_operand.vmem [shape: f32[128,128], index: 7, kind: input, shape index: {}]
  %s8 = inlined_call_operand.hbm [shape: f32[1,128], index: 8, kind: input, shape index: {}]
  %s9 = inlined_call_operand.vmem [shape: f32[128,64], index: 9, kind: input, shape index: {}]
  %s10 = inlined_call_operand.hbm [shape: f32[1,64], index: 10, kind: input, shape index: {}]
  %s11 = inlined_call_operand.vmem [shape: f32[64,8], index: 11, kind: input, shape index: {}]
  %s12 = inlined_call_operand.vmem [shape: f32[1,8], index: 12, kind: input, shape index: {}]
  %s13 = inlined_call_operand.vmem [shape: f32[1,256], index: 13, kind: input, shape index: {}]
  %s14 = inlined_call_operand.hbm [shape: f32[1,256], index: 14, kind: input, shape index: {}]
  %s15 = inlined_call_operand.hbm [shape: f32[512,128], index: 15, kind: input, shape index: {}]
  %s16 = inlined_call_operand.vmem [shape: f32[1,128], index: 16, kind: input, shape index: {}]
  %s17 = inlined_call_operand.vmem [shape: f32[128,8], index: 17, kind: input, shape index: {}]
  %s18 = inlined_call_operand.vmem [shape: f32[1,8], index: 18, kind: input, shape index: {}]
  %s19 = inlined_call_operand.vmem [shape: f32[8,4], index: 19, kind: output, shape index: {}]
  %s20 = sld [smem:[#allocation0]]
  $region110: #{tpu_custom_call.1} parent=0
    _
  %s22 = ssub.s32 1, %s20
  %s23 = scalar_select 0, %s22, %s20
  $region1: #{tpu_custom_call.1} parent=0
    #allocation2 [shape = 'u8[16384]{0}', space=vmem, size = 0x4000, scoped, tag = 'input window, operand 5, single buffered']
    #allocation3 [shape = 's32[1]{0}', space=sflag, size = 0x4, scoped, tag = 'scoped memory for tpu_custom_call.1']
    #allocation4 [shape = 'u8[512]{0}', space=vmem, size = 0x400, scoped, tag = 'input window, operand 6, single buffered']
    #allocation5 [shape = 's32[1]{0}', space=sflag, size = 0x4, scoped, tag = 'scoped memory for tpu_custom_call.1']
    #allocation6 [shape = 'u8[512]{0}', space=vmem, size = 0x400, scoped, tag = 'input window, operand 8, single buffered']
    #allocation7 [shape = 'u8[512]{0}', space=vmem, size = 0x400, scoped, tag = 'input window, operand 10, single buffered']
    #allocation8 [shape = 's32[1]{0}', space=sflag, size = 0x4, scoped, tag = 'scoped memory for tpu_custom_call.1']
    #allocation9 [shape = 'u8[1024]{0}', space=vmem, size = 0x400, scoped, tag = 'input window, operand 14, single buffered']
    #allocation10 [shape = 'u8[262144]{0}', space=vmem, size = 0x40000, scoped, tag = 'input window, operand 15, single buffered']
    #allocation11 [shape = 's32[1]{0}', space=sflag, size = 0x4, scoped, tag = 'scoped memory for tpu_custom_call.1']
    %24 = vsyncpa [#allocation3], 0
    %25 = vsyncpa [#allocation5], 0
    %26 = vsyncpa [#allocation8], 0
    %27 = vsyncpa [#allocation11], 0
    // Predicated region
    $region2: #{tpu_custom_call.1} parent=1 // pred_check
      _
    $region3: #{tpu_custom_call.1} parent=1 // pred_check_branch
      %29 = sbr.rel (0) target = $region5
    $region4: #{tpu_custom_call.1} parent=1 // pred_region
      _
    $region5: #{tpu_custom_call.1} parent=1 // pred_fallthru
      _
    // Predicated region
    $region6: #{tpu_custom_call.1} parent=1 // pred_check
      _
    $region7: #{tpu_custom_call.1} parent=1 // pred_check_branch
      %31 = sbr.rel (0) target = $region9
    $region8: #{tpu_custom_call.1} parent=1 // pred_region
      _
    $region9: #{tpu_custom_call.1} parent=1 // pred_fallthru
      _
    // Predicated region
    $region10: #{tpu_custom_call.1} parent=1 // pred_check
      _
    $region11: #{tpu_custom_call.1} parent=1 // pred_check_branch
      %33 = sbr.rel (0) target = $region13
    $region12: #{tpu_custom_call.1} parent=1 // pred_region
      _
    $region13: #{tpu_custom_call.1} parent=1 // pred_fallthru
      _
    // Predicated region
    $region14: #{tpu_custom_call.1} parent=1 // pred_check
      _
    $region15: #{tpu_custom_call.1} parent=1 // pred_check_branch
      %35 = sbr.rel (0) target = $region17
    $region16: #{tpu_custom_call.1} parent=1 // pred_region
      _
    $region17: #{tpu_custom_call.1} parent=1 // pred_fallthru
      _
    // Predicated region
    $region18: #{tpu_custom_call.1} parent=1 // pred_check
      _
    $region19: #{tpu_custom_call.1} parent=1 // pred_check_branch
      %37 = sbr.rel (0) target = $region21
    $region20: #{tpu_custom_call.1} parent=1 // pred_region
      _
    $region21: #{tpu_custom_call.1} parent=1 // pred_fallthru
      _
    // Predicated region
    $region22: #{tpu_custom_call.1} parent=1 // pred_check
      _
    $region23: #{tpu_custom_call.1} parent=1 // pred_check_branch
      %39 = sbr.rel (0) target = $region25
    $region24: #{tpu_custom_call.1} parent=1 // pred_region
      %s41 = ssub.s32 512, 512
      %42 = vsyncadd [#allocation3], %s41
      %s43 = sshll.u32 [#allocation2], 4
      %s44 = int_to_ptr.vmem [resolvable:$true] %s43
      %49 = dma.hbm_to_vmem [thread:$0]  %s5, 512, %s44, [#allocation3], 128, 128, 8
    $region25: #{tpu_custom_call.1} parent=1 // pred_fallthru
      _
    // Predicated region
    $region26: #{tpu_custom_call.1} parent=1 // pred_check
      _
    $region27: #{tpu_custom_call.1} parent=1 // pred_check_branch
      %51 = sbr.rel (0) target = $region29
    $region28: #{tpu_custom_call.1} parent=1 // pred_region
      %s53 = ssub.s32 16, 16
      %54 = vsyncadd [#allocation5], %s53
      %s56 = sshll.u32 [#allocation4], 4
      %s57 = int_to_ptr.vmem [resolvable:$true] %s56
      %59 = dma.hbm_to_vmem [thread:$0]  %s6, 16, %s57, [#allocation5]
    $region29: #{tpu_custom_call.1} parent=1 // pred_fallthru
      _
    // Predicated region
    $region30: #{tpu_custom_call.1} parent=1 // pred_check
      _
    $region31: #{tpu_custom_call.1} parent=1 // pred_check_branch
      %61 = sbr.rel (0) target = $region33
    $region32: #{tpu_custom_call.1} parent=1 // pred_region
      _
    $region33: #{tpu_custom_call.1} parent=1 // pred_fallthru
      _
    // Predicated region
    $region34: #{tpu_custom_call.1} parent=1 // pred_check
      _
    $region35: #{tpu_custom_call.1} parent=1 // pred_check_branch
      %63 = sbr.rel (0) target = $region37
    $region36: #{tpu_custom_call.1} parent=1 // pred_region
      %s65 = ssub.s32 16, 16
      %66 = vsyncadd [#allocation5], %s65
      %s68 = sshll.u32 [#allocation6], 4
      %s69 = int_to_ptr.vmem [resolvable:$true] %s68
      %71 = dma.hbm_to_vmem [thread:$0]  %s8, 16, %s69, [#allocation5]
    $region37: #{tpu_custom_call.1} parent=1 // pred_fallthru
      _
    // Predicated region
    $region38: #{tpu_custom_call.1} parent=1 // pred_check
      _
    $region39: #{tpu_custom_call.1} parent=1 // pred_check_branch
      %73 = sbr.rel (0) target = $region41
    $region40: #{tpu_custom_call.1} parent=1 // pred_region
      _
    $region41: #{tpu_custom_call.1} parent=1 // pred_fallthru
      _
    // Predicated region
    $region42: #{tpu_custom_call.1} parent=1 // pred_check
      _
    $region43: #{tpu_custom_call.1} parent=1 // pred_check_branch
      %75 = sbr.rel (0) target = $region45
    $region44: #{tpu_custom_call.1} parent=1 // pred_region
      %s77 = ssub.s32 16, 16
      %78 = vsyncadd [#allocation8], %s77
      %s80 = sshll.u32 [#allocation7], 4
      %s81 = int_to_ptr.vmem [resolvable:$true] %s80
      %83 = dma.hbm_to_vmem [thread:$0]  %s10, 16, %s81, [#allocation8]
    $region45: #{tpu_custom_call.1} parent=1 // pred_fallthru
      _
    // Predicated region
    $region46: #{tpu_custom_call.1} parent=1 // pred_check
      _
    $region47: #{tpu_custom_call.1} parent=1 // pred_check_branch
      %85 = sbr.rel (0) target = $region49
    $region48: #{tpu_custom_call.1} parent=1 // pred_region
      _
    $region49: #{tpu_custom_call.1} parent=1 // pred_fallthru
      _
    // Predicated region
    $region50: #{tpu_custom_call.1} parent=1 // pred_check
      _
    $region51: #{tpu_custom_call.1} parent=1 // pred_check_branch
      %87 = sbr.rel (0) target = $region53
    $region52: #{tpu_custom_call.1} parent=1 // pred_region
      _
    $region53: #{tpu_custom_call.1} parent=1 // pred_fallthru
      _
    // Predicated region
    $region54: #{tpu_custom_call.1} parent=1 // pred_check
      _
    $region55: #{tpu_custom_call.1} parent=1 // pred_check_branch
      %89 = sbr.rel (0) target = $region57
    $region56: #{tpu_custom_call.1} parent=1 // pred_region
      _
    $region57: #{tpu_custom_call.1} parent=1 // pred_fallthru
      _
    // Predicated region
    $region58: #{tpu_custom_call.1} parent=1 // pred_check
      _
    $region59: #{tpu_custom_call.1} parent=1 // pred_check_branch
      %91 = sbr.rel (0) target = $region61
    $region60: #{tpu_custom_call.1} parent=1 // pred_region
      %s93 = ssub.s32 32, 32
      %94 = vsyncadd [#allocation8], %s93
      %s96 = sshll.u32 [#allocation9], 4
      %s97 = int_to_ptr.vmem [resolvable:$true] %s96
      %99 = dma.hbm_to_vmem [thread:$0]  %s14, 32, %s97, [#allocation8]
    $region61: #{tpu_custom_call.1} parent=1 // pred_fallthru
      _
    // Predicated region
    $region62: #{tpu_custom_call.1} parent=1 // pred_check
      _
    $region63: #{tpu_custom_call.1} parent=1 // pred_check_branch
      %101 = sbr.rel (0) target = $region65
    $region64: #{tpu_custom_call.1} parent=1 // pred_region
      %s103 = ssub.s32 8192, 8192
      %104 = vsyncadd [#allocation11], %s103
      %s105 = sshll.u32 [#allocation10], 4
      %s106 = int_to_ptr.vmem [resolvable:$true] %s105
      %111 = dma.hbm_to_vmem [thread:$0]  %s15, 8192, %s106, [#allocation11], 128, 128, 8
    $region65: #{tpu_custom_call.1} parent=1 // pred_fallthru
      _
    // Predicated region
    $region66: #{tpu_custom_call.1} parent=1 // pred_check
      _
    $region67: #{tpu_custom_call.1} parent=1 // pred_check_branch
      %113 = sbr.rel (0) target = $region69
    $region68: #{tpu_custom_call.1} parent=1 // pred_region
      _
    $region69: #{tpu_custom_call.1} parent=1 // pred_fallthru
      _
    // Predicated region
    $region70: #{tpu_custom_call.1} parent=1 // pred_check
      _
    $region71: #{tpu_custom_call.1} parent=1 // pred_check_branch
      %115 = sbr.rel (0) target = $region73
    $region72: #{tpu_custom_call.1} parent=1 // pred_region
      _
    $region73: #{tpu_custom_call.1} parent=1 // pred_fallthru
      _
    // Predicated region
    $region74: #{tpu_custom_call.1} parent=1 // pred_check
      _
    $region75: #{tpu_custom_call.1} parent=1 // pred_check_branch
      %117 = sbr.rel (0) target = $region77
    $region76: #{tpu_custom_call.1} parent=1 // pred_region
      _
    $region77: #{tpu_custom_call.1} parent=1 // pred_fallthru
      _
    // Predicated region
    $region78: #{tpu_custom_call.1} parent=1 // pred_check
      _
    $region79: #{tpu_custom_call.1} parent=1 // pred_check_branch
      %119 = sbr.rel (0) target = $region81
    $region80: #{tpu_custom_call.1} parent=1 // pred_region
      %120 = dma.done [#allocation3], 512
    $region81: #{tpu_custom_call.1} parent=1 // pred_fallthru
      _
    // Predicated region
    $region82: #{tpu_custom_call.1} parent=1 // pred_check
      _
    $region83: #{tpu_custom_call.1} parent=1 // pred_check_branch
      %122 = sbr.rel (0) target = $region85
    $region84: #{tpu_custom_call.1} parent=1 // pred_region
      %123 = dma.done [#allocation5], 16
    $region85: #{tpu_custom_call.1} parent=1 // pred_fallthru
      _
    // Predicated region
    $region86: #{tpu_custom_call.1} parent=1 // pred_check
      _
    $region87: #{tpu_custom_call.1} parent=1 // pred_check_branch
      %125 = sbr.rel (0) target = $region89
    $region88: #{tpu_custom_call.1} parent=1 // pred_region
      %126 = dma.done [#allocation5], 16
    $region89: #{tpu_custom_call.1} parent=1 // pred_fallthru
      _
    // Predicated region
    $region90: #{tpu_custom_call.1} parent=1 // pred_check
      _
    $region91: #{tpu_custom_call.1} parent=1 // pred_check_branch
      %128 = sbr.rel (0) target = $region93
    $region92: #{tpu_custom_call.1} parent=1 // pred_region
      %129 = dma.done [#allocation8], 16
    $region93: #{tpu_custom_call.1} parent=1 // pred_fallthru
      _
    // Predicated region
    $region94: #{tpu_custom_call.1} parent=1 // pred_check
      _
    $region95: #{tpu_custom_call.1} parent=1 // pred_check_branch
      %131 = sbr.rel (0) target = $region97
    $region96: #{tpu_custom_call.1} parent=1 // pred_region
      %132 = dma.done [#allocation8], 32
    $region97: #{tpu_custom_call.1} parent=1 // pred_fallthru
      _
    // Predicated region
    $region98: #{tpu_custom_call.1} parent=1 // pred_check
      _
    $region99: #{tpu_custom_call.1} parent=1 // pred_check_branch
      %134 = sbr.rel (0) target = $region101
    $region100: #{tpu_custom_call.1} parent=1 // pred_region
      %135 = dma.done [#allocation11], 8192
    $region101: #{tpu_custom_call.1} parent=1 // pred_fallthru
      _
    %v137 = vld [vmem:[%s0] sm:$0xff]
    %v138 = vpack.c.bf16 %v137, %v137
    %v139 = vld [vmem:[%s3] sm:$0xf]
    %v140 = vld [vmem:[%s3 + $0x4] sm:$0xf]
    %v141 = vld [vmem:[%s3 + $0x8] sm:$0xf]
    %v142 = vld [vmem:[%s3 + $0xc] sm:$0xf]
    %v143 = vld [vmem:[%s3 + $0x10] sm:$0xf]
    %v144 = vld [vmem:[%s3 + $0x14] sm:$0xf]
    %v145 = vld [vmem:[%s3 + $0x18] sm:$0xf]
    %v146 = vld [vmem:[%s3 + $0x1c] sm:$0xf]
    %v147 = vld [vmem:[%s3 + $0x20] sm:$0xf]
    %v148 = vld [vmem:[%s3 + $0x24] sm:$0xf]
    %v149 = vld [vmem:[%s3 + $0x28] sm:$0xf]
    %v150 = vld [vmem:[%s3 + $0x2c] sm:$0xf]
    %v151 = vld [vmem:[%s3 + $0x30] sm:$0xf]
    %v152 = vld [vmem:[%s3 + $0x34] sm:$0xf]
    %v153 = vld [vmem:[%s3 + $0x38] sm:$0xf]
    %v154 = vld [vmem:[%s3 + $0x3c] sm:$0xf]
    %v155 = vld [vmem:[#allocation4] sm:$0x1]
    %v157 = vlaneseq
    %v158 = vshrl.u32 %v157, 7
    %v159 = vsub.s32 0, %v158
    %v160 = vrot.slane %v155, %v159
    %v178 = vunpack.c.l.b16 %v139
    %v179 = vunpack.c.l.b16 %v140
    %v180 = vunpack.c.l.b16 %v141
    %v181 = vunpack.c.l.b16 %v142
    %v182 = vunpack.c.l.b16 %v143
    %v183 = vunpack.c.l.b16 %v144
    %v184 = vunpack.c.l.b16 %v145
    %v185 = vunpack.c.l.b16 %v146
    %v186 = vunpack.c.l.b16 %v147
    %v187 = vunpack.c.l.b16 %v148
    %v188 = vunpack.c.l.b16 %v149
    %v189 = vunpack.c.l.b16 %v150
    %v190 = vunpack.c.l.b16 %v151
    %v191 = vunpack.c.l.b16 %v152
    %v192 = vunpack.c.l.b16 %v153
    %v193 = vunpack.c.l.b16 %v154
    %v194 = vpack.c.b16 %v179, %v178
    %v195 = vpack.c.b16 %v181, %v180
    %v196 = vpack.c.b16 %v183, %v182
    %v197 = vpack.c.b16 %v185, %v184
    %v198 = vpack.c.b16 %v187, %v186
    %v199 = vpack.c.b16 %v189, %v188
    %v200 = vpack.c.b16 %v191, %v190
    %v201 = vpack.c.b16 %v193, %v192
    %210 = vmatprep.subr.bf16.mxu0 0
    %211 = vmatpush1.bf16.msra.mxu0 %v201
    %212 = vmatprep.subr.bf16.mxu0 0
    %213 = vmatpush1.bf16.msra.mxu0 %v200
    %214 = vmatprep.subr.bf16.mxu0 0
    %215 = vmatpush1.bf16.msra.mxu0 %v199
    %216 = vmatprep.subr.bf16.mxu0 0
    %217 = vmatpush1.bf16.msra.mxu0 %v198
    %218 = vmatprep.subr.bf16.mxu0 0
    %219 = vmatpush1.bf16.msra.mxu0 %v197
    %220 = vmatprep.subr.bf16.mxu0 0
    %221 = vmatpush1.bf16.msra.mxu0 %v196
    %222 = vmatprep.subr.bf16.mxu0 0
    %223 = vmatpush1.bf16.msra.mxu0 %v195
    %224 = vmatprep.subr.bf16.mxu0 0
    %225 = vmatpush1.bf16.msra.mxu0 %v194
    %226 = vmatprep.subr.bf16.mxu0 0
    %227 = vmatpush2.bf16.msra.mxu0 0
    %228 = vmatprep.subr.bf16.mxu0 0
    %229 = vmatpush2.bf16.msra.mxu0 0
    %230 = vmatprep.subr.bf16.mxu0 0
    %231 = vmatpush2.bf16.msra.mxu0 0
    %232 = vmatprep.subr.bf16.mxu0 0
    %233 = vmatpush2.bf16.msra.mxu0 0
    %234 = vmatprep.subr.bf16.mxu0 0
    %235 = vmatpush2.bf16.msra.mxu0 0
    %236 = vmatprep.subr.bf16.mxu0 0
    %237 = vmatpush2.bf16.msra.mxu0 0
    %238 = vmatprep.subr.bf16.mxu0 0
    %239 = vmatpush2.bf16.msra.mxu0 0
    %240 = vmatprep.subr.bf16.mxu0 0
    %241 = vmatpush2.bf16.msra.mxu0 0
    %242 = vmatprep.mubr.bf16.mxu0 0
    %243 = vmatmul.mubr.bf16.gmra.mxu0 %v138
    %v244 = vpop.f32.mrf.mxu0
    %v245 = vadd.f32 %v160, %v244
    %v246 = vpop.f32.mrf.mxu0
    %v247 = vpop.f32.mrf.mxu0
    %v248 = vpop.f32.mrf.mxu0
    %249 = vdwg.mxu0
    %v250 = vpack.c.bf16 %v245, %v245
    %v251 = vld [vmem:[%s2] sm:$0xf]
    %v252 = vld [vmem:[%s2 + $0x4] sm:$0xf]
    %v253 = vld [vmem:[%s2 + $0x8] sm:$0xf]
    %v254 = vld [vmem:[%s2 + $0xc] sm:$0xf]
    %v255 = vld [vmem:[%s2 + $0x10] sm:$0xf]
    %v256 = vld [vmem:[%s2 + $0x14] sm:$0xf]
    %v257 = vld [vmem:[%s2 + $0x18] sm:$0xf]
    %v258 = vld [vmem:[%s2 + $0x1c] sm:$0xf]
    %v259 = vld [vmem:[%s2 + $0x20] sm:$0xf]
    %v260 = vld [vmem:[%s2 + $0x24] sm:$0xf]
    %v261 = vld [vmem:[%s2 + $0x28] sm:$0xf]
    %v262 = vld [vmem:[%s2 + $0x2c] sm:$0xf]
    %v263 = vld [vmem:[%s2 + $0x30] sm:$0xf]
    %v264 = vld [vmem:[%s2 + $0x34] sm:$0xf]
    %v265 = vld [vmem:[%s2 + $0x38] sm:$0xf]
    %v266 = vld [vmem:[%s2 + $0x3c] sm:$0xf]
    %v283 = vunpack.c.l.b16 %v251
    %v284 = vunpack.c.l.b16 %v252
    %v285 = vunpack.c.l.b16 %v253
    %v286 = vunpack.c.l.b16 %v254
    %v287 = vunpack.c.l.b16 %v255
    %v288 = vunpack.c.l.b16 %v256
    %v289 = vunpack.c.l.b16 %v257
    %v290 = vunpack.c.l.b16 %v258
    %v291 = vunpack.c.l.b16 %v259
    %v292 = vunpack.c.l.b16 %v260
    %v293 = vunpack.c.l.b16 %v261
    %v294 = vunpack.c.l.b16 %v262
    %v295 = vunpack.c.l.b16 %v263
    %v296 = vunpack.c.l.b16 %v264
    %v297 = vunpack.c.l.b16 %v265
    %v298 = vunpack.c.l.b16 %v266
    %v299 = vpack.c.b16 %v284, %v283
    %v300 = vpack.c.b16 %v286, %v285
    %v301 = vpack.c.b16 %v288, %v287
    %v302 = vpack.c.b16 %v290, %v289
    %v303 = vpack.c.b16 %v292, %v291
    %v304 = vpack.c.b16 %v294, %v293
    %v305 = vpack.c.b16 %v296, %v295
    %v306 = vpack.c.b16 %v298, %v297
    %315 = vmatprep.subr.bf16.mxu0 0
    %316 = vmatpush1.bf16.msra.mxu0 %v306
    %317 = vmatprep.subr.bf16.mxu0 0
    %318 = vmatpush1.bf16.msra.mxu0 %v305
    %319 = vmatprep.subr.bf16.mxu0 0
    %320 = vmatpush1.bf16.msra.mxu0 %v304
    %321 = vmatprep.subr.bf16.mxu0 0
    %322 = vmatpush1.bf16.msra.mxu0 %v303
    %323 = vmatprep.subr.bf16.mxu0 0
    %324 = vmatpush1.bf16.msra.mxu0 %v302
    %325 = vmatprep.subr.bf16.mxu0 0
    %326 = vmatpush1.bf16.msra.mxu0 %v301
    %327 = vmatprep.subr.bf16.mxu0 0
    %328 = vmatpush1.bf16.msra.mxu0 %v300
    %329 = vmatprep.subr.bf16.mxu0 0
    %330 = vmatpush1.bf16.msra.mxu0 %v299
    %331 = vmatprep.subr.bf16.mxu0 0
    %332 = vmatpush2.bf16.msra.mxu0 0
    %333 = vmatprep.subr.bf16.mxu0 0
    %334 = vmatpush2.bf16.msra.mxu0 0
    %335 = vmatprep.subr.bf16.mxu0 0
    %336 = vmatpush2.bf16.msra.mxu0 0
    %337 = vmatprep.subr.bf16.mxu0 0
    %338 = vmatpush2.bf16.msra.mxu0 0
    %339 = vmatprep.subr.bf16.mxu0 0
    %340 = vmatpush2.bf16.msra.mxu0 0
    %341 = vmatprep.subr.bf16.mxu0 0
    %342 = vmatpush2.bf16.msra.mxu0 0
    %343 = vmatprep.subr.bf16.mxu0 0
    %344 = vmatpush2.bf16.msra.mxu0 0
    %345 = vmatprep.subr.bf16.mxu0 0
    %346 = vmatpush2.bf16.msra.mxu0 0
    %347 = vmatprep.mubr.bf16.mxu0 0
    %348 = vmatmul.mubr.bf16.gmra.mxu0 %v250
    %v349 = vpop.f32.mrf.mxu0
    %v350 = vadd.f32 0.0, %v349
    %v351 = vpop.f32.mrf.mxu0
    %v352 = vpop.f32.mrf.mxu0
    %v353 = vpop.f32.mrf.mxu0
    %354 = vdwg.mxu0
    %v355 = vmul.f32 %v350, 0.5
    %v356 = vtanh.pop %v355
    %v357 = vadd.f32 %v356, 1.0
    %v358 = vmul.f32 %v357, 0.5
    %v359 = vadd.f32 %v358, %v137
    %vm360 = vcmp.gt.f32.partialorder %v359, 0.0
    %v361 = vmul.f32 %v359, 0.2
    %v362 = vsel %vm360, %v359, %v361
    %v363 = vld [vmem:[%s7] sm:$0xff]
    %v364 = vld [vmem:[%s7 + $0x8] sm:$0xff]
    %v365 = vld [vmem:[%s7 + $0x10] sm:$0xff]
    %v366 = vld [vmem:[%s7 + $0x18] sm:$0xff]
    %v367 = vld [vmem:[%s7 + $0x20] sm:$0xff]
    %v368 = vld [vmem:[%s7 + $0x28] sm:$0xff]
    %v369 = vld [vmem:[%s7 + $0x30] sm:$0xff]
    %v370 = vld [vmem:[%s7 + $0x38] sm:$0xff]
    %v371 = vld [vmem:[%s7 + $0x40] sm:$0xff]
    %v372 = vld [vmem:[%s7 + $0x48] sm:$0xff]
    %v373 = vld [vmem:[%s7 + $0x50] sm:$0xff]
    %v374 = vld [vmem:[%s7 + $0x58] sm:$0xff]
    %v375 = vld [vmem:[%s7 + $0x60] sm:$0xff]
    %v376 = vld [vmem:[%s7 + $0x68] sm:$0xff]
    %v377 = vld [vmem:[%s7 + $0x70] sm:$0xff]
    %v378 = vld [vmem:[%s7 + $0x78] sm:$0xff]
    %v379 = vld [vmem:[#allocation6] sm:$0x1]
    %v381 = vlaneseq
    %v382 = vshrl.u32 %v381, 7
    %v383 = vsub.s32 0, %v382
    %v384 = vrot.slane %v379, %v383
    %386 = vmatprep.subr.mxu0 0.0
    %387 = vmatpush1.msra.mxu0 %v378
    %388 = vmatprep.subr.mxu0 0.0
    %389 = vmatpush1.msra.mxu0 %v377
    %390 = vmatprep.subr.mxu0 0.0
    %391 = vmatpush1.msra.mxu0 %v376
    %392 = vmatprep.subr.mxu0 0.0
    %393 = vmatpush1.msra.mxu0 %v375
    %394 = vmatprep.subr.mxu0 0.0
    %395 = vmatpush1.msra.mxu0 %v374
    %396 = vmatprep.subr.mxu0 0.0
    %397 = vmatpush1.msra.mxu0 %v373
    %398 = vmatprep.subr.mxu0 0.0
    %399 = vmatpush1.msra.mxu0 %v372
    %400 = vmatprep.subr.mxu0 0.0
    %401 = vmatpush1.msra.mxu0 %v371
    %402 = vmatprep.subr.mxu0 0.0
    %403 = vmatpush1.msra.mxu0 %v370
    %404 = vmatprep.subr.mxu0 0.0
    %405 = vmatpush1.msra.mxu0 %v369
    %406 = vmatprep.subr.mxu0 0.0
    %407 = vmatpush1.msra.mxu0 %v368
    %408 = vmatprep.subr.mxu0 0.0
    %409 = vmatpush1.msra.mxu0 %v367
    %410 = vmatprep.subr.mxu0 0.0
    %411 = vmatpush1.msra.mxu0 %v366
    %412 = vmatprep.subr.mxu0 0.0
    %413 = vmatpush1.msra.mxu0 %v365
    %414 = vmatprep.subr.mxu0 0.0
    %415 = vmatpush1.msra.mxu0 %v364
    %416 = vmatprep.subr.mxu0 0.0
    %417 = vmatpush1.msra.mxu0 %v363
    %418 = vmatprep.subr.mxu0 0.0
    %419 = vmatpush2.msra.mxu0 0.0
    %420 = vmatprep.subr.mxu0 0.0
    %421 = vmatpush2.msra.mxu0 0.0
    %422 = vmatprep.subr.mxu0 0.0
    %423 = vmatpush2.msra.mxu0 0.0
    %424 = vmatprep.subr.mxu0 0.0
    %425 = vmatpush2.msra.mxu0 0.0
    %426 = vmatprep.subr.mxu0 0.0
    %427 = vmatpush2.msra.mxu0 0.0
    %428 = vmatprep.subr.mxu0 0.0
    %429 = vmatpush2.msra.mxu0 0.0
    %430 = vmatprep.subr.mxu0 0.0
    %431 = vmatpush2.msra.mxu0 0.0
    %432 = vmatprep.subr.mxu0 0.0
    %433 = vmatpush2.msra.mxu0 0.0
    %434 = vmatprep.subr.mxu0 0.0
    %435 = vmatpush2.msra.mxu0 0.0
    %436 = vmatprep.subr.mxu0 0.0
    %437 = vmatpush2.msra.mxu0 0.0
    %438 = vmatprep.subr.mxu0 0.0
    %439 = vmatpush2.msra.mxu0 0.0
    %440 = vmatprep.subr.mxu0 0.0
    %441 = vmatpush2.msra.mxu0 0.0
    %442 = vmatprep.subr.mxu0 0.0
    %443 = vmatpush2.msra.mxu0 0.0
    %444 = vmatprep.subr.mxu0 0.0
    %445 = vmatpush2.msra.mxu0 0.0
    %446 = vmatprep.subr.mxu0 0.0
    %447 = vmatpush2.msra.mxu0 0.0
    %448 = vmatprep.subr.mxu0 0.0
    %449 = vmatpush2.msra.mxu0 0.0
    %450 = vmatprep.mubr.f32.mxu0 0.0
    %451 = vmatmul.mubr.f32.gmra.mxu0 %v362
    %v452 = vpop.f32.mrf.mxu0
    %v453 = vadd.f32 %v384, %v452
    %v454 = vpop.f32.mrf.mxu0
    %455 = vdwg.mxu0
    %v456 = vmul.f32 %v453, 0.5
    %v457 = vtanh.pop %v456
    %v458 = vadd.f32 %v457, 1.0
    %v459 = vmul.f32 %v458, 0.5
    %v460 = vld [vmem:[%s9] sm:$0xff]
    %v461 = vld [vmem:[%s9 + $0x8] sm:$0xff]
    %v462 = vld [vmem:[%s9 + $0x10] sm:$0xff]
    %v463 = vld [vmem:[%s9 + $0x18] sm:$0xff]
    %v464 = vld [vmem:[%s9 + $0x20] sm:$0xff]
    %v465 = vld [vmem:[%s9 + $0x28] sm:$0xff]
    %v466 = vld [vmem:[%s9 + $0x30] sm:$0xff]
    %v467 = vld [vmem:[%s9 + $0x38] sm:$0xff]
    %v468 = vld [vmem:[%s9 + $0x40] sm:$0xff]
    %v469 = vld [vmem:[%s9 + $0x48] sm:$0xff]
    %v470 = vld [vmem:[%s9 + $0x50] sm:$0xff]
    %v471 = vld [vmem:[%s9 + $0x58] sm:$0xff]
    %v472 = vld [vmem:[%s9 + $0x60] sm:$0xff]
    %v473 = vld [vmem:[%s9 + $0x68] sm:$0xff]
    %v474 = vld [vmem:[%s9 + $0x70] sm:$0xff]
    %v475 = vld [vmem:[%s9 + $0x78] sm:$0xff]
    %v476 = vld [vmem:[#allocation7] sm:$0x1]
    %v478 = vlaneseq
    %v479 = vshrl.u32 %v478, 7
    %v480 = vsub.s32 0, %v479
    %v481 = vrot.slane %v476, %v480
    %483 = vmatprep.subr.mxu0 0.0
    %484 = vmatpush1.msra.mxu0 %v475
    %485 = vmatprep.subr.mxu0 0.0
    %486 = vmatpush1.msra.mxu0 %v474
    %487 = vmatprep.subr.mxu0 0.0
    %488 = vmatpush1.msra.mxu0 %v473
    %489 = vmatprep.subr.mxu0 0.0
    %490 = vmatpush1.msra.mxu0 %v472
    %491 = vmatprep.subr.mxu0 0.0
    %492 = vmatpush1.msra.mxu0 %v471
    %493 = vmatprep.subr.mxu0 0.0
    %494 = vmatpush1.msra.mxu0 %v470
    %495 = vmatprep.subr.mxu0 0.0
    %496 = vmatpush1.msra.mxu0 %v469
    %497 = vmatprep.subr.mxu0 0.0
    %498 = vmatpush1.msra.mxu0 %v468
    %499 = vmatprep.subr.mxu0 0.0
    %500 = vmatpush1.msra.mxu0 %v467
    %501 = vmatprep.subr.mxu0 0.0
    %502 = vmatpush1.msra.mxu0 %v466
    %503 = vmatprep.subr.mxu0 0.0
    %504 = vmatpush1.msra.mxu0 %v465
    %505 = vmatprep.subr.mxu0 0.0
    %506 = vmatpush1.msra.mxu0 %v464
    %507 = vmatprep.subr.mxu0 0.0
    %508 = vmatpush1.msra.mxu0 %v463
    %509 = vmatprep.subr.mxu0 0.0
    %510 = vmatpush1.msra.mxu0 %v462
    %511 = vmatprep.subr.mxu0 0.0
    %512 = vmatpush1.msra.mxu0 %v461
    %513 = vmatprep.subr.mxu0 0.0
    %514 = vmatpush1.msra.mxu0 %v460
    %515 = vmatprep.subr.mxu0 0.0
    %516 = vmatpush2.msra.mxu0 0.0
    %517 = vmatprep.subr.mxu0 0.0
    %518 = vmatpush2.msra.mxu0 0.0
    %519 = vmatprep.subr.mxu0 0.0
    %520 = vmatpush2.msra.mxu0 0.0
    %521 = vmatprep.subr.mxu0 0.0
    %522 = vmatpush2.msra.mxu0 0.0
    %523 = vmatprep.subr.mxu0 0.0
    %524 = vmatpush2.msra.mxu0 0.0
    %525 = vmatprep.subr.mxu0 0.0
    %526 = vmatpush2.msra.mxu0 0.0
    %527 = vmatprep.subr.mxu0 0.0
    %528 = vmatpush2.msra.mxu0 0.0
    %529 = vmatprep.subr.mxu0 0.0
    %530 = vmatpush2.msra.mxu0 0.0
    %531 = vmatprep.subr.mxu0 0.0
    %532 = vmatpush2.msra.mxu0 0.0
    %533 = vmatprep.subr.mxu0 0.0
    %534 = vmatpush2.msra.mxu0 0.0
    %535 = vmatprep.subr.mxu0 0.0
    %536 = vmatpush2.msra.mxu0 0.0
    %537 = vmatprep.subr.mxu0 0.0
    %538 = vmatpush2.msra.mxu0 0.0
    %539 = vmatprep.subr.mxu0 0.0
    %540 = vmatpush2.msra.mxu0 0.0
    %541 = vmatprep.subr.mxu0 0.0
    %542 = vmatpush2.msra.mxu0 0.0
    %543 = vmatprep.subr.mxu0 0.0
    %544 = vmatpush2.msra.mxu0 0.0
    %545 = vmatprep.subr.mxu0 0.0
    %546 = vmatpush2.msra.mxu0 0.0
    %547 = vmatprep.mubr.f32.mxu0 0.0
    %548 = vmatmul.mubr.f32.gmra.mxu0 %v459
    %v549 = vpop.f32.mrf.mxu0
    %v550 = vadd.f32 %v481, %v549
    %v551 = vpop.f32.mrf.mxu0
    %552 = vdwg.mxu0
    %v553 = vmul.f32 %v550, 0.5
    %v554 = vtanh.pop %v553
    %v555 = vadd.f32 %v554, 1.0
    %v556 = vmul.f32 %v555, 0.5
    %v557 = vld [vmem:[%s11] sm:$0xff]
    %v558 = vld [vmem:[%s11 + $0x8] sm:$0xff]
    %v559 = vld [vmem:[%s11 + $0x10] sm:$0xff]
    %v560 = vld [vmem:[%s11 + $0x18] sm:$0xff]
    %v561 = vld [vmem:[%s11 + $0x20] sm:$0xff]
    %v562 = vld [vmem:[%s11 + $0x28] sm:$0xff]
    %v563 = vld [vmem:[%s11 + $0x30] sm:$0xff]
    %v564 = vld [vmem:[%s11 + $0x38] sm:$0xff]
    %v565 = vld [vmem:[%s12] sm:$0x1]
    %v567 = vlaneseq
    %v568 = vshrl.u32 %v567, 7
    %v569 = vsub.s32 0, %v568
    %v570 = vrot.slane %v565, %v569
    %vm572 = vcmask 523264
    %v574 = vsel %vm572, %v556, 0
    %576 = vmatprep.subr.mxu0 0.0
    %577 = vmatpush1.msra.mxu0 0.0
    %578 = vmatprep.subr.mxu0 0.0
    %579 = vmatpush1.msra.mxu0 0.0
    %580 = vmatprep.subr.mxu0 0.0
    %581 = vmatpush1.msra.mxu0 0.0
    %582 = vmatprep.subr.mxu0 0.0
    %583 = vmatpush1.msra.mxu0 0.0
    %584 = vmatprep.subr.mxu0 0.0
    %585 = vmatpush1.msra.mxu0 0.0
    %586 = vmatprep.subr.mxu0 0.0
    %587 = vmatpush1.msra.mxu0 0.0
    %588 = vmatprep.subr.mxu0 0.0
    %589 = vmatpush1.msra.mxu0 0.0
    %590 = vmatprep.subr.mxu0 0.0
    %591 = vmatpush1.msra.mxu0 0.0
    %592 = vmatprep.subr.mxu0 0.0
    %593 = vmatpush1.msra.mxu0 %v564
    %594 = vmatprep.subr.mxu0 0.0
    %595 = vmatpush1.msra.mxu0 %v563
    %596 = vmatprep.subr.mxu0 0.0
    %597 = vmatpush1.msra.mxu0 %v562
    %598 = vmatprep.subr.mxu0 0.0
    %599 = vmatpush1.msra.mxu0 %v561
    %600 = vmatprep.subr.mxu0 0.0
    %601 = vmatpush1.msra.mxu0 %v560
    %602 = vmatprep.subr.mxu0 0.0
    %603 = vmatpush1.msra.mxu0 %v559
    %604 = vmatprep.subr.mxu0 0.0
    %605 = vmatpush1.msra.mxu0 %v558
    %606 = vmatprep.subr.mxu0 0.0
    %607 = vmatpush1.msra.mxu0 %v557
    %608 = vmatprep.subr.mxu0 0.0
    %609 = vmatpush2.msra.mxu0 0.0
    %610 = vmatprep.subr.mxu0 0.0
    %611 = vmatpush2.msra.mxu0 0.0
    %612 = vmatprep.subr.mxu0 0.0
    %613 = vmatpush2.msra.mxu0 0.0
    %614 = vmatprep.subr.mxu0 0.0
    %615 = vmatpush2.msra.mxu0 0.0
    %616 = vmatprep.subr.mxu0 0.0
    %617 = vmatpush2.msra.mxu0 0.0
    %618 = vmatprep.subr.mxu0 0.0
    %619 = vmatpush2.msra.mxu0 0.0
    %620 = vmatprep.subr.mxu0 0.0
    %621 = vmatpush2.msra.mxu0 0.0
    %622 = vmatprep.subr.mxu0 0.0
    %623 = vmatpush2.msra.mxu0 0.0
    %624 = vmatprep.subr.mxu0 0.0
    %625 = vmatpush2.msra.mxu0 0.0
    %626 = vmatprep.subr.mxu0 0.0
    %627 = vmatpush2.msra.mxu0 0.0
    %628 = vmatprep.subr.mxu0 0.0
    %629 = vmatpush2.msra.mxu0 0.0
    %630 = vmatprep.subr.mxu0 0.0
    %631 = vmatpush2.msra.mxu0 0.0
    %632 = vmatprep.subr.mxu0 0.0
    %633 = vmatpush2.msra.mxu0 0.0
    %634 = vmatprep.subr.mxu0 0.0
    %635 = vmatpush2.msra.mxu0 0.0
    %636 = vmatprep.subr.mxu0 0.0
    %637 = vmatpush2.msra.mxu0 0.0
    %638 = vmatprep.subr.mxu0 0.0
    %639 = vmatpush2.msra.mxu0 0.0
    %640 = vmatprep.mubr.f32.mxu0 0.0
    %641 = vmatmul.mubr.f32.gmra.mxu0 %v574
    %v642 = vpop.f32.mrf.mxu0
    %v643 = vadd.f32 %v570, %v642
    %v644 = vpop.f32.mrf.mxu0
    %645 = vdwg.mxu0
    %v646 = vld [vmem:[%s4] sm:$0xff]
    %v647 = vld [vmem:[%s4 + $0x8] sm:$0xff]
    %v648 = vld [vmem:[%s4 + $0x10] sm:$0xff]
    %v649 = vld [vmem:[%s4 + $0x18] sm:$0xff]
    %v650 = vld [vmem:[%s4 + $0x20] sm:$0xff]
    %v651 = vld [vmem:[%s4 + $0x28] sm:$0xff]
    %v652 = vld [vmem:[%s4 + $0x30] sm:$0xff]
    %v653 = vld [vmem:[%s4 + $0x38] sm:$0xff]
    %v654 = vld [vmem:[%s4 + $0x40] sm:$0xff]
    %v655 = vld [vmem:[%s4 + $0x48] sm:$0xff]
    %v656 = vld [vmem:[%s4 + $0x50] sm:$0xff]
    %v657 = vld [vmem:[%s4 + $0x58] sm:$0xff]
    %v658 = vld [vmem:[%s13] sm:$0x3]
    %v660 = vlaneseq
    %v661 = vshrl.u32 %v660, 7
    %v662 = vsub.s32 0, %v661
    %v663 = vrot.slane %v658, %v662
    %v664 = vlaneseq
    %v665 = vshrl.u32 %v664, 7
    %v666 = vsub.s32 1, %v665
    %v667 = vrot.slane %v658, %v666
    %v682 = vunpack.c.l.b16 %v646
    %v683 = vunpack.c.h.b16 %v646
    %v684 = vunpack.c.l.b16 %v647
    %v685 = vunpack.c.h.b16 %v647
    %v686 = vunpack.c.l.b16 %v648
    %v687 = vunpack.c.h.b16 %v648
    %v688 = vunpack.c.l.b16 %v649
    %v689 = vunpack.c.h.b16 %v649
    %v690 = vunpack.c.l.b16 %v650
    %v691 = vunpack.c.h.b16 %v650
    %v692 = vunpack.c.l.b16 %v651
    %v693 = vunpack.c.h.b16 %v651
    %v694 = vunpack.c.l.b16 %v652
    %v695 = vunpack.c.h.b16 %v652
    %v696 = vunpack.c.l.b16 %v653
    %v697 = vunpack.c.h.b16 %v653
    %v698 = vunpack.c.l.b16 %v654
    %v699 = vunpack.c.h.b16 %v654
    %v700 = vunpack.c.l.b16 %v655
    %v701 = vunpack.c.h.b16 %v655
    %v702 = vunpack.c.l.b16 %v656
    %v703 = vunpack.c.h.b16 %v656
    %v704 = vunpack.c.l.b16 %v657
    %v705 = vunpack.c.h.b16 %v657
    %v706 = vpack.c.b16 %v684, %v682
    %v707 = vpack.c.b16 %v685, %v683
    %v708 = vpack.c.b16 %v688, %v686
    %v709 = vpack.c.b16 %v689, %v687
    %v710 = vpack.c.b16 %v692, %v690
    %v711 = vpack.c.b16 %v693, %v691
    %v712 = vpack.c.b16 %v696, %v694
    %v713 = vpack.c.b16 %v697, %v695
    %v714 = vpack.c.b16 %v700, %v698
    %v715 = vpack.c.b16 %v701, %v699
    %v716 = vpack.c.b16 %v704, %v702
    %v717 = vpack.c.b16 %v705, %v703
    %vm730 = vcmask 785408
    %v732 = vsel %vm730, %v138, 0
    %734 = vmatprep.subr.bf16.mxu0 0
    %735 = vmatpush1.bf16.msra.mxu0 0
    %736 = vmatprep.subr.bf16.mxu0 0
    %737 = vmatpush1.bf16.msra.mxu0 0
    %738 = vmatprep.subr.bf16.mxu0 %v717
    %739 = vmatpush1.bf16.msra.mxu0 %v716
    %740 = vmatprep.subr.bf16.mxu0 %v715
    %741 = vmatpush1.bf16.msra.mxu0 %v714
    %742 = vmatprep.subr.bf16.mxu0 %v713
    %743 = vmatpush1.bf16.msra.mxu0 %v712
    %744 = vmatprep.subr.bf16.mxu0 %v711
    %745 = vmatpush1.bf16.msra.mxu0 %v710
    %746 = vmatprep.subr.bf16.mxu0 %v709
    %747 = vmatpush1.bf16.msra.mxu0 %v708
    %748 = vmatprep.subr.bf16.mxu0 %v707
    %749 = vmatpush1.bf16.msra.mxu0 %v706
    %750 = vmatprep.subr.bf16.mxu0 0
    %751 = vmatpush2.bf16.msra.mxu0 0
    %752 = vmatprep.subr.bf16.mxu0 0
    %753 = vmatpush2.bf16.msra.mxu0 0
    %754 = vmatprep.subr.bf16.mxu0 0
    %755 = vmatpush2.bf16.msra.mxu0 0
    %756 = vmatprep.subr.bf16.mxu0 0
    %757 = vmatpush2.bf16.msra.mxu0 0
    %758 = vmatprep.subr.bf16.mxu0 0
    %759 = vmatpush2.bf16.msra.mxu0 0
    %760 = vmatprep.subr.bf16.mxu0 0
    %761 = vmatpush2.bf16.msra.mxu0 0
    %762 = vmatprep.subr.bf16.mxu0 0
    %763 = vmatpush2.bf16.msra.mxu0 0
    %764 = vmatprep.subr.bf16.mxu0 0
    %765 = vmatpush2.bf16.msra.mxu0 0
    %766 = vmatprep.mubr.bf16.mxu0 0
    %767 = vmatmul.mubr.bf16.gmra.mxu0 %v732
    %v768 = vpop.f32.mrf.mxu0
    %v769 = vadd.f32 %v663, %v768
    %v770 = vpop.f32.mrf.mxu0
    %v771 = vadd.f32 %v667, %v770
    %v772 = vpop.f32.mrf.mxu0
    %v773 = vpop.f32.mrf.mxu0
    %774 = vdwg.mxu0
    %vm775 = vcmp.gt.f32.partialorder %v769, 0.0
    %vm776 = vcmp.gt.f32.partialorder %v771, 0.0
    %v777 = vmul.f32 %v769, 0.2
    %v778 = vmul.f32 %v771, 0.2
    %v779 = vsel %vm775, %v769, %v777
    %v780 = vsel %vm776, %v771, %v778
    %v781 = vld [vmem:[#allocation2] sm:$0xff]
    %v782 = vld [vmem:[#allocation2 + $0x8] sm:$0xff]
    %v783 = vld [vmem:[#allocation2 + $0x10] sm:$0xff]
    %v784 = vld [vmem:[#allocation2 + $0x18] sm:$0xff]
    %v785 = vld [vmem:[#allocation9] sm:$0x3]
    %v787 = vlaneseq
    %v788 = vshrl.u32 %v787, 7
    %v789 = vsub.s32 0, %v788
    %v790 = vrot.slane %v785, %v789
    %v791 = vlaneseq
    %v792 = vshrl.u32 %v791, 7
    %v793 = vsub.s32 1, %v792
    %v794 = vrot.slane %v785, %v793
    %798 = vrot.lane.b32.xlu0 %v138, 32
    %v799 = vpop.permute.xlu0 %798
    %v804 = vunpack.c.l.b16 %v781
    %v805 = vunpack.c.h.b16 %v781
    %v806 = vunpack.c.l.b16 %v782
    %v807 = vunpack.c.h.b16 %v782
    %v808 = vunpack.c.l.b16 %v783
    %v809 = vunpack.c.h.b16 %v783
    %v810 = vunpack.c.l.b16 %v784
    %v811 = vunpack.c.h.b16 %v784
    %v812 = vpack.c.b16 %v806, %v804
    %v813 = vpack.c.b16 %v807, %v805
    %v814 = vpack.c.b16 %v810, %v808
    %v815 = vpack.c.b16 %v811, %v809
    %vm820 = vcmask 261120
    %v822 = vsel %vm820, %v799, 0
    %824 = vmatprep.subr.bf16.mxu0 0
    %825 = vmatpush1.bf16.msra.mxu0 0
    %826 = vmatprep.subr.bf16.mxu0 0
    %827 = vmatpush1.bf16.msra.mxu0 0
    %828 = vmatprep.subr.bf16.mxu0 0
    %829 = vmatpush1.bf16.msra.mxu0 0
    %830 = vmatprep.subr.bf16.mxu0 0
    %831 = vmatpush1.bf16.msra.mxu0 0
    %832 = vmatprep.subr.bf16.mxu0 0
    %833 = vmatpush1.bf16.msra.mxu0 0
    %834 = vmatprep.subr.bf16.mxu0 0
    %835 = vmatpush1.bf16.msra.mxu0 0
    %836 = vmatprep.subr.bf16.mxu0 %v815
    %837 = vmatpush1.bf16.msra.mxu0 %v814
    %838 = vmatprep.subr.bf16.mxu0 %v813
    %839 = vmatpush1.bf16.msra.mxu0 %v812
    %840 = vmatprep.subr.bf16.mxu0 0
    %841 = vmatpush2.bf16.msra.mxu0 0
    %842 = vmatprep.subr.bf16.mxu0 0
    %843 = vmatpush2.bf16.msra.mxu0 0
    %844 = vmatprep.subr.bf16.mxu0 0
    %845 = vmatpush2.bf16.msra.mxu0 0
    %846 = vmatprep.subr.bf16.mxu0 0
    %847 = vmatpush2.bf16.msra.mxu0 0
    %848 = vmatprep.subr.bf16.mxu0 0
    %849 = vmatpush2.bf16.msra.mxu0 0
    %850 = vmatprep.subr.bf16.mxu0 0
    %851 = vmatpush2.bf16.msra.mxu0 0
    %852 = vmatprep.subr.bf16.mxu0 0
    %853 = vmatpush2.bf16.msra.mxu0 0
    %854 = vmatprep.subr.bf16.mxu0 0
    %855 = vmatpush2.bf16.msra.mxu0 0
    %856 = vmatprep.mubr.bf16.mxu0 0
    %857 = vmatmul.mubr.bf16.gmra.mxu0 %v822
    %v858 = vpop.f32.mrf.mxu0
    %v859 = vadd.f32 %v790, %v858
    %v860 = vpop.f32.mrf.mxu0
    %v861 = vadd.f32 %v794, %v860
    %v862 = vpop.f32.mrf.mxu0
    %v863 = vpop.f32.mrf.mxu0
    %864 = vdwg.mxu0
    %vm865 = vcmp.gt.f32.partialorder %v859, 0.0
    %vm866 = vcmp.gt.f32.partialorder %v861, 0.0
    %v867 = vmul.f32 %v859, 0.2
    %v868 = vmul.f32 %v861, 0.2
    %v869 = vsel %vm865, %v859, %v867
    %v870 = vsel %vm866, %v861, %v868
    %v871 = vld [vmem:[#allocation10] sm:$0xff]
    %v872 = vld [vmem:[#allocation10 + $0x8] sm:$0xff]
    %v873 = vld [vmem:[#allocation10 + $0x10] sm:$0xff]
    %v874 = vld [vmem:[#allocation10 + $0x18] sm:$0xff]
    %v875 = vld [vmem:[#allocation10 + $0x20] sm:$0xff]
    %v876 = vld [vmem:[#allocation10 + $0x28] sm:$0xff]
    %v877 = vld [vmem:[#allocation10 + $0x30] sm:$0xff]
    %v878 = vld [vmem:[#allocation10 + $0x38] sm:$0xff]
    %v879 = vld [vmem:[#allocation10 + $0x40] sm:$0xff]
    %v880 = vld [vmem:[#allocation10 + $0x48] sm:$0xff]
    %v881 = vld [vmem:[#allocation10 + $0x50] sm:$0xff]
    %v882 = vld [vmem:[#allocation10 + $0x58] sm:$0xff]
    %v883 = vld [vmem:[#allocation10 + $0x60] sm:$0xff]
    %v884 = vld [vmem:[#allocation10 + $0x68] sm:$0xff]
    %v885 = vld [vmem:[#allocation10 + $0x70] sm:$0xff]
    %v886 = vld [vmem:[#allocation10 + $0x78] sm:$0xff]
    %v887 = vld [vmem:[#allocation10 + $0x80] sm:$0xff]
    %v888 = vld [vmem:[#allocation10 + $0x88] sm:$0xff]
    %v889 = vld [vmem:[#allocation10 + $0x90] sm:$0xff]
    %v890 = vld [vmem:[#allocation10 + $0x98] sm:$0xff]
    %v891 = vld [vmem:[#allocation10 + $0xa0] sm:$0xff]
    %v892 = vld [vmem:[#allocation10 + $0xa8] sm:$0xff]
    %v893 = vld [vmem:[#allocation10 + $0xb0] sm:$0xff]
    %v894 = vld [vmem:[#allocation10 + $0xb8] sm:$0xff]
    %v895 = vld [vmem:[#allocation10 + $0xc0] sm:$0xff]
    %v896 = vld [vmem:[#allocation10 + $0xc8] sm:$0xff]
    %v897 = vld [vmem:[#allocation10 + $0xd0] sm:$0xff]
    %v898 = vld [vmem:[#allocation10 + $0xd8] sm:$0xff]
    %v899 = vld [vmem:[#allocation10 + $0xe0] sm:$0xff]
    %v900 = vld [vmem:[#allocation10 + $0xe8] sm:$0xff]
    %v901 = vld [vmem:[#allocation10 + $0xf0] sm:$0xff]
    %v902 = vld [vmem:[#allocation10 + $0xf8] sm:$0xff]
    %v903 = vld [vmem:[#allocation10 + $0x100] sm:$0xff]
    %v904 = vld [vmem:[#allocation10 + $0x108] sm:$0xff]
    %v905 = vld [vmem:[#allocation10 + $0x110] sm:$0xff]
    %v906 = vld [vmem:[#allocation10 + $0x118] sm:$0xff]
    %v907 = vld [vmem:[#allocation10 + $0x120] sm:$0xff]
    %v908 = vld [vmem:[#allocation10 + $0x128] sm:$0xff]
    %v909 = vld [vmem:[#allocation10 + $0x130] sm:$0xff]
    %v910 = vld [vmem:[#allocation10 + $0x138] sm:$0xff]
    %v911 = vld [vmem:[#allocation10 + $0x140] sm:$0xff]
    %v912 = vld [vmem:[#allocation10 + $0x148] sm:$0xff]
    %v913 = vld [vmem:[#allocation10 + $0x150] sm:$0xff]
    %v914 = vld [vmem:[#allocation10 + $0x158] sm:$0xff]
    %v915 = vld [vmem:[#allocation10 + $0x160] sm:$0xff]
    %v916 = vld [vmem:[#allocation10 + $0x168] sm:$0xff]
    %v917 = vld [vmem:[#allocation10 + $0x170] sm:$0xff]
    %v918 = vld [vmem:[#allocation10 + $0x178] sm:$0xff]
    %v919 = vld [vmem:[#allocation10 + $0x180] sm:$0xff]
    %v920 = vld [vmem:[#allocation10 + $0x188] sm:$0xff]
    %v921 = vld [vmem:[#allocation10 + $0x190] sm:$0xff]
    %v922 = vld [vmem:[#allocation10 + $0x198] sm:$0xff]
    %v923 = vld [vmem:[#allocation10 + $0x1a0] sm:$0xff]
    %v924 = vld [vmem:[#allocation10 + $0x1a8] sm:$0xff]
    %v925 = vld [vmem:[#allocation10 + $0x1b0] sm:$0xff]
    %v926 = vld [vmem:[#allocation10 + $0x1b8] sm:$0xff]
    %v927 = vld [vmem:[#allocation10 + $0x1c0] sm:$0xff]
    %v928 = vld [vmem:[#allocation10 + $0x1c8] sm:$0xff]
    %v929 = vld [vmem:[#allocation10 + $0x1d0] sm:$0xff]
    %v930 = vld [vmem:[#allocation10 + $0x1d8] sm:$0xff]
    %v931 = vld [vmem:[#allocation10 + $0x1e0] sm:$0xff]
    %v932 = vld [vmem:[#allocation10 + $0x1e8] sm:$0xff]
    %v933 = vld [vmem:[#allocation10 + $0x1f0] sm:$0xff]
    %v934 = vld [vmem:[#allocation10 + $0x1f8] sm:$0xff]
    %v935 = vld [vmem:[%s16] sm:$0x1]
    %v937 = vlaneseq
    %v938 = vshrl.u32 %v937, 7
    %v939 = vsub.s32 0, %v938
    %v940 = vrot.slane %v935, %v939
    %942 = vmatprep.subr.mxu0 0.0
    %943 = vmatpush1.msra.mxu0 %v886
    %944 = vmatprep.subr.mxu0 0.0
    %945 = vmatpush1.msra.mxu0 %v885
    %946 = vmatprep.subr.mxu0 0.0
    %947 = vmatpush1.msra.mxu0 %v884
    %948 = vmatprep.subr.mxu0 0.0
    %949 = vmatpush1.msra.mxu0 %v883
    %950 = vmatprep.subr.mxu0 0.0
    %951 = vmatpush1.msra.mxu0 %v882
    %952 = vmatprep.subr.mxu0 0.0
    %953 = vmatpush1.msra.mxu0 %v881
    %954 = vmatprep.subr.mxu0 0.0
    %955 = vmatpush1.msra.mxu0 %v880
    %956 = vmatprep.subr.mxu0 0.0
    %957 = vmatpush1.msra.mxu0 %v879
    %958 = vmatprep.subr.mxu0 0.0
    %959 = vmatpush1.msra.mxu0 %v878
    %960 = vmatprep.subr.mxu0 0.0
    %961 = vmatpush1.msra.mxu0 %v877
    %962 = vmatprep.subr.mxu0 0.0
    %963 = vmatpush1.msra.mxu0 %v876
    %964 = vmatprep.subr.mxu0 0.0
    %965 = vmatpush1.msra.mxu0 %v875
    %966 = vmatprep.subr.mxu0 0.0
    %967 = vmatpush1.msra.mxu0 %v874
    %968 = vmatprep.subr.mxu0 0.0
    %969 = vmatpush1.msra.mxu0 %v873
    %970 = vmatprep.subr.mxu0 0.0
    %971 = vmatpush1.msra.mxu0 %v872
    %972 = vmatprep.subr.mxu0 0.0
    %973 = vmatpush1.msra.mxu0 %v871
    %974 = vmatprep.subr.mxu0 0.0
    %975 = vmatpush2.msra.mxu0 %v902
    %976 = vmatprep.subr.mxu0 0.0
    %977 = vmatpush2.msra.mxu0 %v901
    %978 = vmatprep.subr.mxu0 0.0
    %979 = vmatpush2.msra.mxu0 %v900
    %980 = vmatprep.subr.mxu0 0.0
    %981 = vmatpush2.msra.mxu0 %v899
    %982 = vmatprep.subr.mxu0 0.0
    %983 = vmatpush2.msra.mxu0 %v898
    %984 = vmatprep.subr.mxu0 0.0
    %985 = vmatpush2.msra.mxu0 %v897
    %986 = vmatprep.subr.mxu0 0.0
    %987 = vmatpush2.msra.mxu0 %v896
    %988 = vmatprep.subr.mxu0 0.0
    %989 = vmatpush2.msra.mxu0 %v895
    %990 = vmatprep.subr.mxu0 0.0
    %991 = vmatpush2.msra.mxu0 %v894
    %992 = vmatprep.subr.mxu0 0.0
    %993 = vmatpush2.msra.mxu0 %v893
    %994 = vmatprep.subr.mxu0 0.0
    %995 = vmatpush2.msra.mxu0 %v892
    %996 = vmatprep.subr.mxu0 0.0
    %997 = vmatpush2.msra.mxu0 %v891
    %998 = vmatprep.subr.mxu0 0.0
    %999 = vmatpush2.msra.mxu0 %v890
    %1000 = vmatprep.subr.mxu0 0.0
    %1001 = vmatpush2.msra.mxu0 %v889
    %1002 = vmatprep.subr.mxu0 0.0
    %1003 = vmatpush2.msra.mxu0 %v888
    %1004 = vmatprep.subr.mxu0 0.0
    %1005 = vmatpush2.msra.mxu0 %v887
    %1006 = vmatprep.mubr.f32.mxu0 %v780
    %1007 = vmatmul.mubr.f32.gmra.mxu0 %v779
    %v1008 = vpop.f32.mrf.mxu0
    %v1009 = vadd.f32 %v940, %v1008
    %v1010 = vpop.f32.mrf.mxu0
    %1011 = vdwg.mxu0
    %1012 = vmatprep.subr.mxu0 0.0
    %1013 = vmatpush1.msra.mxu0 %v918
    %1014 = vmatprep.subr.mxu0 0.0
    %1015 = vmatpush1.msra.mxu0 %v917
    %1016 = vmatprep.subr.mxu0 0.0
    %1017 = vmatpush1.msra.mxu0 %v916
    %1018 = vmatprep.subr.mxu0 0.0
    %1019 = vmatpush1.msra.mxu0 %v915
    %1020 = vmatprep.subr.mxu0 0.0
    %1021 = vmatpush1.msra.mxu0 %v914
    %1022 = vmatprep.subr.mxu0 0.0
    %1023 = vmatpush1.msra.mxu0 %v913
    %1024 = vmatprep.subr.mxu0 0.0
    %1025 = vmatpush1.msra.mxu0 %v912
    %1026 = vmatprep.subr.mxu0 0.0
    %1027 = vmatpush1.msra.mxu0 %v911
    %1028 = vmatprep.subr.mxu0 0.0
    %1029 = vmatpush1.msra.mxu0 %v910
    %1030 = vmatprep.subr.mxu0 0.0
    %1031 = vmatpush1.msra.mxu0 %v909
    %1032 = vmatprep.subr.mxu0 0.0
    %1033 = vmatpush1.msra.mxu0 %v908
    %1034 = vmatprep.subr.mxu0 0.0
    %1035 = vmatpush1.msra.mxu0 %v907
    %1036 = vmatprep.subr.mxu0 0.0
    %1037 = vmatpush1.msra.mxu0 %v906
    %1038 = vmatprep.subr.mxu0 0.0
    %1039 = vmatpush1.msra.mxu0 %v905
    %1040 = vmatprep.subr.mxu0 0.0
    %1041 = vmatpush1.msra.mxu0 %v904
    %1042 = vmatprep.subr.mxu0 0.0
    %1043 = vmatpush1.msra.mxu0 %v903
    %1044 = vmatprep.subr.mxu0 0.0
    %1045 = vmatpush2.msra.mxu0 %v934
    %1046 = vmatprep.subr.mxu0 0.0
    %1047 = vmatpush2.msra.mxu0 %v933
    %1048 = vmatprep.subr.mxu0 0.0
    %1049 = vmatpush2.msra.mxu0 %v932
    %1050 = vmatprep.subr.mxu0 0.0
    %1051 = vmatpush2.msra.mxu0 %v931
    %1052 = vmatprep.subr.mxu0 0.0
    %1053 = vmatpush2.msra.mxu0 %v930
    %1054 = vmatprep.subr.mxu0 0.0
    %1055 = vmatpush2.msra.mxu0 %v929
    %1056 = vmatprep.subr.mxu0 0.0
    %1057 = vmatpush2.msra.mxu0 %v928
    %1058 = vmatprep.subr.mxu0 0.0
    %1059 = vmatpush2.msra.mxu0 %v927
    %1060 = vmatprep.subr.mxu0 0.0
    %1061 = vmatpush2.msra.mxu0 %v926
    %1062 = vmatprep.subr.mxu0 0.0
    %1063 = vmatpush2.msra.mxu0 %v925
    %1064 = vmatprep.subr.mxu0 0.0
    %1065 = vmatpush2.msra.mxu0 %v924
    %1066 = vmatprep.subr.mxu0 0.0
    %1067 = vmatpush2.msra.mxu0 %v923
    %1068 = vmatprep.subr.mxu0 0.0
    %1069 = vmatpush2.msra.mxu0 %v922
    %1070 = vmatprep.subr.mxu0 0.0
    %1071 = vmatpush2.msra.mxu0 %v921
    %1072 = vmatprep.subr.mxu0 0.0
    %1073 = vmatpush2.msra.mxu0 %v920
    %1074 = vmatprep.subr.mxu0 0.0
    %1075 = vmatpush2.msra.mxu0 %v919
    %1076 = vmatprep.mubr.f32.mxu0 %v870
    %1077 = vmatmul.mubr.f32.gmra.mxu0 %v869
    %v1078 = vpop.f32.mrf.mxu0
    %v1079 = vadd.f32 %v1009, %v1078
    %v1080 = vpop.f32.mrf.mxu0
    %1081 = vdwg.mxu0
    %v1082 = vmul.f32 %v1079, 0.5
    %v1083 = vtanh.pop %v1082
    %v1084 = vadd.f32 %v1083, 1.0
    %v1085 = vmul.f32 %v1084, 0.5
    %v1086 = vld [vmem:[%s17] sm:$0xff]
    %v1087 = vld [vmem:[%s17 + $0x8] sm:$0xff]
    %v1088 = vld [vmem:[%s17 + $0x10] sm:$0xff]
    %v1089 = vld [vmem:[%s17 + $0x18] sm:$0xff]
    %v1090 = vld [vmem:[%s17 + $0x20] sm:$0xff]
    %v1091 = vld [vmem:[%s17 + $0x28] sm:$0xff]
    %v1092 = vld [vmem:[%s17 + $0x30] sm:$0xff]
    %v1093 = vld [vmem:[%s17 + $0x38] sm:$0xff]
    %v1094 = vld [vmem:[%s17 + $0x40] sm:$0xff]
    %v1095 = vld [vmem:[%s17 + $0x48] sm:$0xff]
    %v1096 = vld [vmem:[%s17 + $0x50] sm:$0xff]
    %v1097 = vld [vmem:[%s17 + $0x58] sm:$0xff]
    %v1098 = vld [vmem:[%s17 + $0x60] sm:$0xff]
    %v1099 = vld [vmem:[%s17 + $0x68] sm:$0xff]
    %v1100 = vld [vmem:[%s17 + $0x70] sm:$0xff]
    %v1101 = vld [vmem:[%s17 + $0x78] sm:$0xff]
    %v1102 = vld [vmem:[%s18] sm:$0x1]
    %v1104 = vlaneseq
    %v1105 = vshrl.u32 %v1104, 7
    %v1106 = vsub.s32 0, %v1105
    %v1107 = vrot.slane %v1102, %v1106
    %1109 = vmatprep.subr.mxu0 0.0
    %1110 = vmatpush1.msra.mxu0 %v1101
    %1111 = vmatprep.subr.mxu0 0.0
    %1112 = vmatpush1.msra.mxu0 %v1100
    %1113 = vmatprep.subr.mxu0 0.0
    %1114 = vmatpush1.msra.mxu0 %v1099
    %1115 = vmatprep.subr.mxu0 0.0
    %1116 = vmatpush1.msra.mxu0 %v1098
    %1117 = vmatprep.subr.mxu0 0.0
    %1118 = vmatpush1.msra.mxu0 %v1097
    %1119 = vmatprep.subr.mxu0 0.0
    %1120 = vmatpush1.msra.mxu0 %v1096
    %1121 = vmatprep.subr.mxu0 0.0
    %1122 = vmatpush1.msra.mxu0 %v1095
    %1123 = vmatprep.subr.mxu0 0.0
    %1124 = vmatpush1.msra.mxu0 %v1094
    %1125 = vmatprep.subr.mxu0 0.0
    %1126 = vmatpush1.msra.mxu0 %v1093
    %1127 = vmatprep.subr.mxu0 0.0
    %1128 = vmatpush1.msra.mxu0 %v1092
    %1129 = vmatprep.subr.mxu0 0.0
    %1130 = vmatpush1.msra.mxu0 %v1091
    %1131 = vmatprep.subr.mxu0 0.0
    %1132 = vmatpush1.msra.mxu0 %v1090
    %1133 = vmatprep.subr.mxu0 0.0
    %1134 = vmatpush1.msra.mxu0 %v1089
    %1135 = vmatprep.subr.mxu0 0.0
    %1136 = vmatpush1.msra.mxu0 %v1088
    %1137 = vmatprep.subr.mxu0 0.0
    %1138 = vmatpush1.msra.mxu0 %v1087
    %1139 = vmatprep.subr.mxu0 0.0
    %1140 = vmatpush1.msra.mxu0 %v1086
    %1141 = vmatprep.subr.mxu0 0.0
    %1142 = vmatpush2.msra.mxu0 0.0
    %1143 = vmatprep.subr.mxu0 0.0
    %1144 = vmatpush2.msra.mxu0 0.0
    %1145 = vmatprep.subr.mxu0 0.0
    %1146 = vmatpush2.msra.mxu0 0.0
    %1147 = vmatprep.subr.mxu0 0.0
    %1148 = vmatpush2.msra.mxu0 0.0
    %1149 = vmatprep.subr.mxu0 0.0
    %1150 = vmatpush2.msra.mxu0 0.0
    %1151 = vmatprep.subr.mxu0 0.0
    %1152 = vmatpush2.msra.mxu0 0.0
    %1153 = vmatprep.subr.mxu0 0.0
    %1154 = vmatpush2.msra.mxu0 0.0
    %1155 = vmatprep.subr.mxu0 0.0
    %1156 = vmatpush2.msra.mxu0 0.0
    %1157 = vmatprep.subr.mxu0 0.0
    %1158 = vmatpush2.msra.mxu0 0.0
    %1159 = vmatprep.subr.mxu0 0.0
    %1160 = vmatpush2.msra.mxu0 0.0
    %1161 = vmatprep.subr.mxu0 0.0
    %1162 = vmatpush2.msra.mxu0 0.0
    %1163 = vmatprep.subr.mxu0 0.0
    %1164 = vmatpush2.msra.mxu0 0.0
    %1165 = vmatprep.subr.mxu0 0.0
    %1166 = vmatpush2.msra.mxu0 0.0
    %1167 = vmatprep.subr.mxu0 0.0
    %1168 = vmatpush2.msra.mxu0 0.0
    %1169 = vmatprep.subr.mxu0 0.0
    %1170 = vmatpush2.msra.mxu0 0.0
    %1171 = vmatprep.subr.mxu0 0.0
    %1172 = vmatpush2.msra.mxu0 0.0
    %1173 = vmatprep.mubr.f32.mxu0 0.0
    %1174 = vmatmul.mubr.f32.gmra.mxu0 %v1085
    %v1175 = vpop.f32.mrf.mxu0
    %v1176 = vadd.f32 %v1107, %v1175
    %v1177 = vpop.f32.mrf.mxu0
    %1178 = vdwg.mxu0
    %v1179 = vld [vmem:[%s1] sm:$0xff]
    %1181 = vrot.lane.b32.xlu0 %v643, 124
    %v1182 = vpop.permute.xlu0 %1181
    %v1184 = vmax.f32 %v643, %v1182
    %v1185 = vsub.f32 %v643, %v1184
    %v1186 = vmul.f32 %v1185, 1.442695
    %v1187 = vpow.pop %v1186
    %1189 = vrot.lane.b32.xlu0 %v1184, 4
    %v1190 = vpop.permute.xlu0 %1189
    %v1192 = vsub.f32 %v643, %v1190
    %v1193 = vmul.f32 %v1192, 1.442695
    %v1194 = vpow.pop %v1193
    %1196 = vrot.lane.b32.xlu0 %v1194, 124
    %v1197 = vpop.permute.xlu0 %1196
    %v1199 = vadd.f32 %v1187, %v1197
    %v1200 = vrcp.pop %v1199
    %v1201 = vmul.f32 %v1187, %v1200
    %1203 = vset.pattern.permute.xlu0 0
    %1204 = vperm.xlu0 %1203, %v1179
    %v1205 = vpop.permute.xlu0 %1204
    %v1207 = vmul.f32 %v1201, %v1205
    %1209 = vrot.lane.b32.xlu0 %v1200, 4
    %v1210 = vpop.permute.xlu0 %1209
    %v1212 = vmul.f32 %v1194, %v1210
    %1213 = vset.pattern.permute.xlu0 1
    %1214 = vperm.xlu0 %1213, %v1179
    %v1215 = vpop.permute.xlu0 %1214
    %v1217 = vmul.f32 %v1212, %v1215
    %v1218 = vmul.f32 %v1207, %v1176
    %v1219 = vmul.f32 %v1217, %v1176
    %1221 = vrot.lane.b32.xlu0 %v1219, 124
    %v1222 = vpop.permute.xlu0 %1221
    %v1224 = vadd.f32 %v1218, %v1222
    %vm1225 = vcmask 31744
    %1226 = vst.msk [vmem:[%s19] sm:$0xff] %vm1225, %v1224
    // Predicated region
    $region102: #{tpu_custom_call.1} parent=1 // pred_check
      _
    $region103: #{tpu_custom_call.1} parent=1 // pred_check_branch
      %1228 = sbr.rel (0) target = $region105
    $region104: #{tpu_custom_call.1} parent=1 // pred_region
      _
    $region105: #{tpu_custom_call.1} parent=1 // pred_fallthru
      _
    // Predicated region
    $region106: #{tpu_custom_call.1} parent=1 // pred_check
      _
    $region107: #{tpu_custom_call.1} parent=1 // pred_check_branch
      %1230 = sbr.rel (0) target = $region109
    $region108: #{tpu_custom_call.1} parent=1 // pred_region
      _
    $region109: #{tpu_custom_call.1} parent=1 // pred_fallthru
      _
    %1231 = vsyncpa [#allocation3], 1
    %1232 = vsyncpa [#allocation5], 1
    %1233 = vsyncpa [#allocation8], 1
    %1234 = vsyncpa [#allocation11], 1

// kernel: tpu_custom_call.1
$region0: #{tpu_custom_call.1}
  #allocation0 [shape = 'u32[]', space=smem, size = 0x4, offset = 0x4, fixed_abs, tag = 'smem constant byte address 0x4 - core index']
  #allocation1 [shape = 'u32[144,128]{1,0:T(1,128)}', space=vmem, size = 0x12000, scoped, tag = 'internal scratch']
  %s0 = inlined_call_operand.vmem [shape: f32[8,128], index: 0, kind: input, shape index: {}]
  %s1 = inlined_call_operand.vmem [shape: f32[8,2], index: 1, kind: input, shape index: {}]
  %s2 = inlined_call_operand.vmem [shape: bf16[128,128], index: 2, kind: input, shape index: {}]
  %s3 = inlined_call_operand.vmem [shape: bf16[128,128], index: 3, kind: input, shape index: {}]
  %s4 = inlined_call_operand.vmem [shape: bf16[96,256], index: 4, kind: input, shape index: {}]
  %s5 = inlined_call_operand.hbm [shape: bf16[32,256], index: 5, kind: input, shape index: {}]
  %s6 = inlined_call_operand.hbm [shape: f32[1,128], index: 6, kind: input, shape index: {}]
  %s7 = inlined_call_operand.vmem [shape: f32[128,128], index: 7, kind: input, shape index: {}]
  %s8 = inlined_call_operand.hbm [shape: f32[1,128], index: 8, kind: input, shape index: {}]
  %s9 = inlined_call_operand.vmem [shape: f32[128,64], index: 9, kind: input, shape index: {}]
  %s10 = inlined_call_operand.hbm [shape: f32[1,64], index: 10, kind: input, shape index: {}]
  %s11 = inlined_call_operand.vmem [shape: f32[64,8], index: 11, kind: input, shape index: {}]
  %s12 = inlined_call_operand.vmem [shape: f32[1,8], index: 12, kind: input, shape index: {}]
  %s13 = inlined_call_operand.vmem [shape: f32[1,256], index: 13, kind: input, shape index: {}]
  %s14 = inlined_call_operand.hbm [shape: f32[1,256], index: 14, kind: input, shape index: {}]
  %s15 = inlined_call_operand.hbm [shape: f32[512,128], index: 15, kind: input, shape index: {}]
  %s16 = inlined_call_operand.vmem [shape: f32[1,128], index: 16, kind: input, shape index: {}]
  %s17 = inlined_call_operand.vmem [shape: f32[128,8], index: 17, kind: input, shape index: {}]
  %s18 = inlined_call_operand.vmem [shape: f32[1,8], index: 18, kind: input, shape index: {}]
  %s19 = inlined_call_operand.vmem [shape: f32[8,4], index: 19, kind: output, shape index: {}]
  %s20 = sld [smem:[#allocation0]]
  $region110: #{tpu_custom_call.1} parent=0
    _
  %s22 = ssub.s32 1, %s20
  %s23 = scalar_select 0, %s22, %s20
  $region1: #{tpu_custom_call.1} parent=0
    #allocation2 [shape = 'u8[16384]{0}', space=vmem, size = 0x4000, scoped, tag = 'input window, operand 5, single buffered']
    #allocation3 [shape = 's32[1]{0}', space=sflag, size = 0x4, scoped, tag = 'scoped memory for tpu_custom_call.1']
    #allocation4 [shape = 'u8[512]{0}', space=vmem, size = 0x400, scoped, tag = 'input window, operand 6, single buffered']
    #allocation5 [shape = 's32[1]{0}', space=sflag, size = 0x4, scoped, tag = 'scoped memory for tpu_custom_call.1']
    #allocation6 [shape = 'u8[512]{0}', space=vmem, size = 0x400, scoped, tag = 'input window, operand 8, single buffered']
    #allocation7 [shape = 'u8[512]{0}', space=vmem, size = 0x400, scoped, tag = 'input window, operand 10, single buffered']
    #allocation8 [shape = 's32[1]{0}', space=sflag, size = 0x4, scoped, tag = 'scoped memory for tpu_custom_call.1']
    #allocation9 [shape = 'u8[1024]{0}', space=vmem, size = 0x400, scoped, tag = 'input window, operand 14, single buffered']
    #allocation10 [shape = 'u8[262144]{0}', space=vmem, size = 0x40000, scoped, tag = 'input window, operand 15, single buffered']
    #allocation11 [shape = 's32[1]{0}', space=sflag, size = 0x4, scoped, tag = 'scoped memory for tpu_custom_call.1']
    %24 = vsyncpa [#allocation3], 0
    %25 = vsyncpa [#allocation5], 0
    %26 = vsyncpa [#allocation8], 0
    %27 = vsyncpa [#allocation11], 0
    // Predicated region
    $region2: #{tpu_custom_call.1} parent=1 // pred_check
      _
    $region3: #{tpu_custom_call.1} parent=1 // pred_check_branch
      %29 = sbr.rel (0) target = $region5
    $region4: #{tpu_custom_call.1} parent=1 // pred_region
      _
    $region5: #{tpu_custom_call.1} parent=1 // pred_fallthru
      _
    // Predicated region
    $region6: #{tpu_custom_call.1} parent=1 // pred_check
      _
    $region7: #{tpu_custom_call.1} parent=1 // pred_check_branch
      %31 = sbr.rel (0) target = $region9
    $region8: #{tpu_custom_call.1} parent=1 // pred_region
      _
    $region9: #{tpu_custom_call.1} parent=1 // pred_fallthru
      _
    // Predicated region
    $region10: #{tpu_custom_call.1} parent=1 // pred_check
      _
    $region11: #{tpu_custom_call.1} parent=1 // pred_check_branch
      %33 = sbr.rel (0) target = $region13
    $region12: #{tpu_custom_call.1} parent=1 // pred_region
      _
    $region13: #{tpu_custom_call.1} parent=1 // pred_fallthru
      _
    // Predicated region
    $region14: #{tpu_custom_call.1} parent=1 // pred_check
      _
    $region15: #{tpu_custom_call.1} parent=1 // pred_check_branch
      %35 = sbr.rel (0) target = $region17
    $region16: #{tpu_custom_call.1} parent=1 // pred_region
      _
    $region17: #{tpu_custom_call.1} parent=1 // pred_fallthru
      _
    // Predicated region
    $region18: #{tpu_custom_call.1} parent=1 // pred_check
      _
    $region19: #{tpu_custom_call.1} parent=1 // pred_check_branch
      %37 = sbr.rel (0) target = $region21
    $region20: #{tpu_custom_call.1} parent=1 // pred_region
      _
    $region21: #{tpu_custom_call.1} parent=1 // pred_fallthru
      _
    // Predicated region
    $region22: #{tpu_custom_call.1} parent=1 // pred_check
      _
    $region23: #{tpu_custom_call.1} parent=1 // pred_check_branch
      %39 = sbr.rel (0) target = $region25
    $region24: #{tpu_custom_call.1} parent=1 // pred_region
      %s41 = ssub.s32 512, 512
      %42 = vsyncadd [#allocation3], %s41
      %s43 = sshll.u32 [#allocation2], 4
      %s44 = int_to_ptr.vmem [resolvable:$true] %s43
      %49 = dma.hbm_to_vmem [thread:$0]  %s5, 512, %s44, [#allocation3], 128, 128, 8
    $region25: #{tpu_custom_call.1} parent=1 // pred_fallthru
      _
    // Predicated region
    $region26: #{tpu_custom_call.1} parent=1 // pred_check
      _
    $region27: #{tpu_custom_call.1} parent=1 // pred_check_branch
      %51 = sbr.rel (0) target = $region29
    $region28: #{tpu_custom_call.1} parent=1 // pred_region
      %s53 = ssub.s32 16, 16
      %54 = vsyncadd [#allocation5], %s53
      %s56 = sshll.u32 [#allocation4], 4
      %s57 = int_to_ptr.vmem [resolvable:$true] %s56
      %59 = dma.hbm_to_vmem [thread:$0]  %s6, 16, %s57, [#allocation5]
    $region29: #{tpu_custom_call.1} parent=1 // pred_fallthru
      _
    // Predicated region
    $region30: #{tpu_custom_call.1} parent=1 // pred_check
      _
    $region31: #{tpu_custom_call.1} parent=1 // pred_check_branch
      %61 = sbr.rel (0) target = $region33
    $region32: #{tpu_custom_call.1} parent=1 // pred_region
      _
    $region33: #{tpu_custom_call.1} parent=1 // pred_fallthru
      _
    // Predicated region
    $region34: #{tpu_custom_call.1} parent=1 // pred_check
      _
    $region35: #{tpu_custom_call.1} parent=1 // pred_check_branch
      %63 = sbr.rel (0) target = $region37
    $region36: #{tpu_custom_call.1} parent=1 // pred_region
      %s65 = ssub.s32 16, 16
      %66 = vsyncadd [#allocation5], %s65
      %s68 = sshll.u32 [#allocation6], 4
      %s69 = int_to_ptr.vmem [resolvable:$true] %s68
      %71 = dma.hbm_to_vmem [thread:$0]  %s8, 16, %s69, [#allocation5]
    $region37: #{tpu_custom_call.1} parent=1 // pred_fallthru
      _
    // Predicated region
    $region38: #{tpu_custom_call.1} parent=1 // pred_check
      _
    $region39: #{tpu_custom_call.1} parent=1 // pred_check_branch
      %73 = sbr.rel (0) target = $region41
    $region40: #{tpu_custom_call.1} parent=1 // pred_region
      _
    $region41: #{tpu_custom_call.1} parent=1 // pred_fallthru
      _
    // Predicated region
    $region42: #{tpu_custom_call.1} parent=1 // pred_check
      _
    $region43: #{tpu_custom_call.1} parent=1 // pred_check_branch
      %75 = sbr.rel (0) target = $region45
    $region44: #{tpu_custom_call.1} parent=1 // pred_region
      %s77 = ssub.s32 16, 16
      %78 = vsyncadd [#allocation8], %s77
      %s80 = sshll.u32 [#allocation7], 4
      %s81 = int_to_ptr.vmem [resolvable:$true] %s80
      %83 = dma.hbm_to_vmem [thread:$0]  %s10, 16, %s81, [#allocation8]
    $region45: #{tpu_custom_call.1} parent=1 // pred_fallthru
      _
    // Predicated region
    $region46: #{tpu_custom_call.1} parent=1 // pred_check
      _
    $region47: #{tpu_custom_call.1} parent=1 // pred_check_branch
      %85 = sbr.rel (0) target = $region49
    $region48: #{tpu_custom_call.1} parent=1 // pred_region
      _
    $region49: #{tpu_custom_call.1} parent=1 // pred_fallthru
      _
    // Predicated region
    $region50: #{tpu_custom_call.1} parent=1 // pred_check
      _
    $region51: #{tpu_custom_call.1} parent=1 // pred_check_branch
      %87 = sbr.rel (0) target = $region53
    $region52: #{tpu_custom_call.1} parent=1 // pred_region
      _
    $region53: #{tpu_custom_call.1} parent=1 // pred_fallthru
      _
    // Predicated region
    $region54: #{tpu_custom_call.1} parent=1 // pred_check
      _
    $region55: #{tpu_custom_call.1} parent=1 // pred_check_branch
      %89 = sbr.rel (0) target = $region57
    $region56: #{tpu_custom_call.1} parent=1 // pred_region
      _
    $region57: #{tpu_custom_call.1} parent=1 // pred_fallthru
      _
    // Predicated region
    $region58: #{tpu_custom_call.1} parent=1 // pred_check
      _
    $region59: #{tpu_custom_call.1} parent=1 // pred_check_branch
      %91 = sbr.rel (0) target = $region61
    $region60: #{tpu_custom_call.1} parent=1 // pred_region
      %s93 = ssub.s32 32, 32
      %94 = vsyncadd [#allocation8], %s93
      %s96 = sshll.u32 [#allocation9], 4
      %s97 = int_to_ptr.vmem [resolvable:$true] %s96
      %99 = dma.hbm_to_vmem [thread:$0]  %s14, 32, %s97, [#allocation8]
    $region61: #{tpu_custom_call.1} parent=1 // pred_fallthru
      _
    // Predicated region
    $region62: #{tpu_custom_call.1} parent=1 // pred_check
      _
    $region63: #{tpu_custom_call.1} parent=1 // pred_check_branch
      %101 = sbr.rel (0) target = $region65
    $region64: #{tpu_custom_call.1} parent=1 // pred_region
      %s103 = ssub.s32 8192, 8192
      %104 = vsyncadd [#allocation11], %s103
      %s105 = sshll.u32 [#allocation10], 4
      %s106 = int_to_ptr.vmem [resolvable:$true] %s105
      %111 = dma.hbm_to_vmem [thread:$0]  %s15, 8192, %s106, [#allocation11], 128, 128, 8
    $region65: #{tpu_custom_call.1} parent=1 // pred_fallthru
      _
    // Predicated region
    $region66: #{tpu_custom_call.1} parent=1 // pred_check
      _
    $region67: #{tpu_custom_call.1} parent=1 // pred_check_branch
      %113 = sbr.rel (0) target = $region69
    $region68: #{tpu_custom_call.1} parent=1 // pred_region
      _
    $region69: #{tpu_custom_call.1} parent=1 // pred_fallthru
      _
    // Predicated region
    $region70: #{tpu_custom_call.1} parent=1 // pred_check
      _
    $region71: #{tpu_custom_call.1} parent=1 // pred_check_branch
      %115 = sbr.rel (0) target = $region73
    $region72: #{tpu_custom_call.1} parent=1 // pred_region
      _
    $region73: #{tpu_custom_call.1} parent=1 // pred_fallthru
      _
    // Predicated region
    $region74: #{tpu_custom_call.1} parent=1 // pred_check
      _
    $region75: #{tpu_custom_call.1} parent=1 // pred_check_branch
      %117 = sbr.rel (0) target = $region77
    $region76: #{tpu_custom_call.1} parent=1 // pred_region
      _
    $region77: #{tpu_custom_call.1} parent=1 // pred_fallthru
      _
    // Predicated region
    $region78: #{tpu_custom_call.1} parent=1 // pred_check
      _
    $region79: #{tpu_custom_call.1} parent=1 // pred_check_branch
      %119 = sbr.rel (0) target = $region81
    $region80: #{tpu_custom_call.1} parent=1 // pred_region
      %120 = dma.done [#allocation3], 512
    $region81: #{tpu_custom_call.1} parent=1 // pred_fallthru
      _
    // Predicated region
    $region82: #{tpu_custom_call.1} parent=1 // pred_check
      _
    $region83: #{tpu_custom_call.1} parent=1 // pred_check_branch
      %122 = sbr.rel (0) target = $region85
    $region84: #{tpu_custom_call.1} parent=1 // pred_region
      %123 = dma.done [#allocation5], 16
    $region85: #{tpu_custom_call.1} parent=1 // pred_fallthru
      _
    // Predicated region
    $region86: #{tpu_custom_call.1} parent=1 // pred_check
      _
    $region87: #{tpu_custom_call.1} parent=1 // pred_check_branch
      %125 = sbr.rel (0) target = $region89
    $region88: #{tpu_custom_call.1} parent=1 // pred_region
      %126 = dma.done [#allocation5], 16
    $region89: #{tpu_custom_call.1} parent=1 // pred_fallthru
      _
    // Predicated region
    $region90: #{tpu_custom_call.1} parent=1 // pred_check
      _
    $region91: #{tpu_custom_call.1} parent=1 // pred_check_branch
      %128 = sbr.rel (0) target = $region93
    $region92: #{tpu_custom_call.1} parent=1 // pred_region
      %129 = dma.done [#allocation8], 16
    $region93: #{tpu_custom_call.1} parent=1 // pred_fallthru
      _
    // Predicated region
    $region94: #{tpu_custom_call.1} parent=1 // pred_check
      _
    $region95: #{tpu_custom_call.1} parent=1 // pred_check_branch
      %131 = sbr.rel (0) target = $region97
    $region96: #{tpu_custom_call.1} parent=1 // pred_region
      %132 = dma.done [#allocation8], 32
    $region97: #{tpu_custom_call.1} parent=1 // pred_fallthru
      _
    // Predicated region
    $region98: #{tpu_custom_call.1} parent=1 // pred_check
      _
    $region99: #{tpu_custom_call.1} parent=1 // pred_check_branch
      %134 = sbr.rel (0) target = $region101
    $region100: #{tpu_custom_call.1} parent=1 // pred_region
      %135 = dma.done [#allocation11], 8192
    $region101: #{tpu_custom_call.1} parent=1 // pred_fallthru
      _
    %v137 = vld [vmem:[%s0] sm:$0xff]
    %v138 = vpack.c.bf16 %v137, %v137
    %v139 = vld [vmem:[%s3] sm:$0xf]
    %v140 = vld [vmem:[%s3 + $0x4] sm:$0xf]
    %v141 = vld [vmem:[%s3 + $0x8] sm:$0xf]
    %v142 = vld [vmem:[%s3 + $0xc] sm:$0xf]
    %v143 = vld [vmem:[%s3 + $0x10] sm:$0xf]
    %v144 = vld [vmem:[%s3 + $0x14] sm:$0xf]
    %v145 = vld [vmem:[%s3 + $0x18] sm:$0xf]
    %v146 = vld [vmem:[%s3 + $0x1c] sm:$0xf]
    %v147 = vld [vmem:[%s3 + $0x20] sm:$0xf]
    %v148 = vld [vmem:[%s3 + $0x24] sm:$0xf]
    %v149 = vld [vmem:[%s3 + $0x28] sm:$0xf]
    %v150 = vld [vmem:[%s3 + $0x2c] sm:$0xf]
    %v151 = vld [vmem:[%s3 + $0x30] sm:$0xf]
    %v152 = vld [vmem:[%s3 + $0x34] sm:$0xf]
    %v153 = vld [vmem:[%s3 + $0x38] sm:$0xf]
    %v154 = vld [vmem:[%s3 + $0x3c] sm:$0xf]
    %v155 = vld [vmem:[#allocation4] sm:$0x1]
    %v157 = vlaneseq
    %v158 = vshrl.u32 %v157, 7
    %v159 = vsub.s32 0, %v158
    %v160 = vrot.slane %v155, %v159
    %v178 = vunpack.c.l.b16 %v139
    %v179 = vunpack.c.l.b16 %v140
    %v180 = vunpack.c.l.b16 %v141
    %v181 = vunpack.c.l.b16 %v142
    %v182 = vunpack.c.l.b16 %v143
    %v183 = vunpack.c.l.b16 %v144
    %v184 = vunpack.c.l.b16 %v145
    %v185 = vunpack.c.l.b16 %v146
    %v186 = vunpack.c.l.b16 %v147
    %v187 = vunpack.c.l.b16 %v148
    %v188 = vunpack.c.l.b16 %v149
    %v189 = vunpack.c.l.b16 %v150
    %v190 = vunpack.c.l.b16 %v151
    %v191 = vunpack.c.l.b16 %v152
    %v192 = vunpack.c.l.b16 %v153
    %v193 = vunpack.c.l.b16 %v154
    %v194 = vpack.c.b16 %v179, %v178
    %v195 = vpack.c.b16 %v181, %v180
    %v196 = vpack.c.b16 %v183, %v182
    %v197 = vpack.c.b16 %v185, %v184
    %v198 = vpack.c.b16 %v187, %v186
    %v199 = vpack.c.b16 %v189, %v188
    %v200 = vpack.c.b16 %v191, %v190
    %v201 = vpack.c.b16 %v193, %v192
    %210 = vmatprep.subr.bf16.mxu0 0
    %211 = vmatpush1.bf16.msra.mxu0 %v201
    %212 = vmatprep.subr.bf16.mxu0 0
    %213 = vmatpush1.bf16.msra.mxu0 %v200
    %214 = vmatprep.subr.bf16.mxu0 0
    %215 = vmatpush1.bf16.msra.mxu0 %v199
    %216 = vmatprep.subr.bf16.mxu0 0
    %217 = vmatpush1.bf16.msra.mxu0 %v198
    %218 = vmatprep.subr.bf16.mxu0 0
    %219 = vmatpush1.bf16.msra.mxu0 %v197
    %220 = vmatprep.subr.bf16.mxu0 0
    %221 = vmatpush1.bf16.msra.mxu0 %v196
    %222 = vmatprep.subr.bf16.mxu0 0
    %223 = vmatpush1.bf16.msra.mxu0 %v195
    %224 = vmatprep.subr.bf16.mxu0 0
    %225 = vmatpush1.bf16.msra.mxu0 %v194
    %226 = vmatprep.subr.bf16.mxu0 0
    %227 = vmatpush2.bf16.msra.mxu0 0
    %228 = vmatprep.subr.bf16.mxu0 0
    %229 = vmatpush2.bf16.msra.mxu0 0
    %230 = vmatprep.subr.bf16.mxu0 0
    %231 = vmatpush2.bf16.msra.mxu0 0
    %232 = vmatprep.subr.bf16.mxu0 0
    %233 = vmatpush2.bf16.msra.mxu0 0
    %234 = vmatprep.subr.bf16.mxu0 0
    %235 = vmatpush2.bf16.msra.mxu0 0
    %236 = vmatprep.subr.bf16.mxu0 0
    %237 = vmatpush2.bf16.msra.mxu0 0
    %238 = vmatprep.subr.bf16.mxu0 0
    %239 = vmatpush2.bf16.msra.mxu0 0
    %240 = vmatprep.subr.bf16.mxu0 0
    %241 = vmatpush2.bf16.msra.mxu0 0
    %242 = vmatprep.mubr.bf16.mxu0 0
    %243 = vmatmul.mubr.bf16.gmra.mxu0 %v138
    %v244 = vpop.f32.mrf.mxu0
    %v245 = vadd.f32 %v160, %v244
    %v246 = vpop.f32.mrf.mxu0
    %v247 = vpop.f32.mrf.mxu0
    %v248 = vpop.f32.mrf.mxu0
    %249 = vdwg.mxu0
    %v250 = vpack.c.bf16 %v245, %v245
    %v251 = vld [vmem:[%s2] sm:$0xf]
    %v252 = vld [vmem:[%s2 + $0x4] sm:$0xf]
    %v253 = vld [vmem:[%s2 + $0x8] sm:$0xf]
    %v254 = vld [vmem:[%s2 + $0xc] sm:$0xf]
    %v255 = vld [vmem:[%s2 + $0x10] sm:$0xf]
    %v256 = vld [vmem:[%s2 + $0x14] sm:$0xf]
    %v257 = vld [vmem:[%s2 + $0x18] sm:$0xf]
    %v258 = vld [vmem:[%s2 + $0x1c] sm:$0xf]
    %v259 = vld [vmem:[%s2 + $0x20] sm:$0xf]
    %v260 = vld [vmem:[%s2 + $0x24] sm:$0xf]
    %v261 = vld [vmem:[%s2 + $0x28] sm:$0xf]
    %v262 = vld [vmem:[%s2 + $0x2c] sm:$0xf]
    %v263 = vld [vmem:[%s2 + $0x30] sm:$0xf]
    %v264 = vld [vmem:[%s2 + $0x34] sm:$0xf]
    %v265 = vld [vmem:[%s2 + $0x38] sm:$0xf]
    %v266 = vld [vmem:[%s2 + $0x3c] sm:$0xf]
    %v283 = vunpack.c.l.b16 %v251
    %v284 = vunpack.c.l.b16 %v252
    %v285 = vunpack.c.l.b16 %v253
    %v286 = vunpack.c.l.b16 %v254
    %v287 = vunpack.c.l.b16 %v255
    %v288 = vunpack.c.l.b16 %v256
    %v289 = vunpack.c.l.b16 %v257
    %v290 = vunpack.c.l.b16 %v258
    %v291 = vunpack.c.l.b16 %v259
    %v292 = vunpack.c.l.b16 %v260
    %v293 = vunpack.c.l.b16 %v261
    %v294 = vunpack.c.l.b16 %v262
    %v295 = vunpack.c.l.b16 %v263
    %v296 = vunpack.c.l.b16 %v264
    %v297 = vunpack.c.l.b16 %v265
    %v298 = vunpack.c.l.b16 %v266
    %v299 = vpack.c.b16 %v284, %v283
    %v300 = vpack.c.b16 %v286, %v285
    %v301 = vpack.c.b16 %v288, %v287
    %v302 = vpack.c.b16 %v290, %v289
    %v303 = vpack.c.b16 %v292, %v291
    %v304 = vpack.c.b16 %v294, %v293
    %v305 = vpack.c.b16 %v296, %v295
    %v306 = vpack.c.b16 %v298, %v297
    %315 = vmatprep.subr.bf16.mxu0 0
    %316 = vmatpush1.bf16.msra.mxu0 %v306
    %317 = vmatprep.subr.bf16.mxu0 0
    %318 = vmatpush1.bf16.msra.mxu0 %v305
    %319 = vmatprep.subr.bf16.mxu0 0
    %320 = vmatpush1.bf16.msra.mxu0 %v304
    %321 = vmatprep.subr.bf16.mxu0 0
    %322 = vmatpush1.bf16.msra.mxu0 %v303
    %323 = vmatprep.subr.bf16.mxu0 0
    %324 = vmatpush1.bf16.msra.mxu0 %v302
    %325 = vmatprep.subr.bf16.mxu0 0
    %326 = vmatpush1.bf16.msra.mxu0 %v301
    %327 = vmatprep.subr.bf16.mxu0 0
    %328 = vmatpush1.bf16.msra.mxu0 %v300
    %329 = vmatprep.subr.bf16.mxu0 0
    %330 = vmatpush1.bf16.msra.mxu0 %v299
    %331 = vmatprep.subr.bf16.mxu0 0
    %332 = vmatpush2.bf16.msra.mxu0 0
    %333 = vmatprep.subr.bf16.mxu0 0
    %334 = vmatpush2.bf16.msra.mxu0 0
    %335 = vmatprep.subr.bf16.mxu0 0
    %336 = vmatpush2.bf16.msra.mxu0 0
    %337 = vmatprep.subr.bf16.mxu0 0
    %338 = vmatpush2.bf16.msra.mxu0 0
    %339 = vmatprep.subr.bf16.mxu0 0
    %340 = vmatpush2.bf16.msra.mxu0 0
    %341 = vmatprep.subr.bf16.mxu0 0
    %342 = vmatpush2.bf16.msra.mxu0 0
    %343 = vmatprep.subr.bf16.mxu0 0
    %344 = vmatpush2.bf16.msra.mxu0 0
    %345 = vmatprep.subr.bf16.mxu0 0
    %346 = vmatpush2.bf16.msra.mxu0 0
    %347 = vmatprep.mubr.bf16.mxu0 0
    %348 = vmatmul.mubr.bf16.gmra.mxu0 %v250
    %v349 = vpop.f32.mrf.mxu0
    %v350 = vadd.f32 0.0, %v349
    %v351 = vpop.f32.mrf.mxu0
    %v352 = vpop.f32.mrf.mxu0
    %v353 = vpop.f32.mrf.mxu0
    %354 = vdwg.mxu0
    %v355 = vmul.f32 %v350, 0.5
    %v356 = vtanh.pop %v355
    %v357 = vadd.f32 %v356, 1.0
    %v358 = vmul.f32 %v357, 0.5
    %v359 = vadd.f32 %v358, %v137
    %vm360 = vcmp.gt.f32.partialorder %v359, 0.0
    %v361 = vmul.f32 %v359, 0.2
    %v362 = vsel %vm360, %v359, %v361
    %v363 = vld [vmem:[%s7] sm:$0xff]
    %v364 = vld [vmem:[%s7 + $0x8] sm:$0xff]
    %v365 = vld [vmem:[%s7 + $0x10] sm:$0xff]
    %v366 = vld [vmem:[%s7 + $0x18] sm:$0xff]
    %v367 = vld [vmem:[%s7 + $0x20] sm:$0xff]
    %v368 = vld [vmem:[%s7 + $0x28] sm:$0xff]
    %v369 = vld [vmem:[%s7 + $0x30] sm:$0xff]
    %v370 = vld [vmem:[%s7 + $0x38] sm:$0xff]
    %v371 = vld [vmem:[%s7 + $0x40] sm:$0xff]
    %v372 = vld [vmem:[%s7 + $0x48] sm:$0xff]
    %v373 = vld [vmem:[%s7 + $0x50] sm:$0xff]
    %v374 = vld [vmem:[%s7 + $0x58] sm:$0xff]
    %v375 = vld [vmem:[%s7 + $0x60] sm:$0xff]
    %v376 = vld [vmem:[%s7 + $0x68] sm:$0xff]
    %v377 = vld [vmem:[%s7 + $0x70] sm:$0xff]
    %v378 = vld [vmem:[%s7 + $0x78] sm:$0xff]
    %v379 = vld [vmem:[#allocation6] sm:$0x1]
    %v381 = vlaneseq
    %v382 = vshrl.u32 %v381, 7
    %v383 = vsub.s32 0, %v382
    %v384 = vrot.slane %v379, %v383
    %386 = vmatprep.subr.mxu0 0.0
    %387 = vmatpush1.msra.mxu0 %v378
    %388 = vmatprep.subr.mxu0 0.0
    %389 = vmatpush1.msra.mxu0 %v377
    %390 = vmatprep.subr.mxu0 0.0
    %391 = vmatpush1.msra.mxu0 %v376
    %392 = vmatprep.subr.mxu0 0.0
    %393 = vmatpush1.msra.mxu0 %v375
    %394 = vmatprep.subr.mxu0 0.0
    %395 = vmatpush1.msra.mxu0 %v374
    %396 = vmatprep.subr.mxu0 0.0
    %397 = vmatpush1.msra.mxu0 %v373
    %398 = vmatprep.subr.mxu0 0.0
    %399 = vmatpush1.msra.mxu0 %v372
    %400 = vmatprep.subr.mxu0 0.0
    %401 = vmatpush1.msra.mxu0 %v371
    %402 = vmatprep.subr.mxu0 0.0
    %403 = vmatpush1.msra.mxu0 %v370
    %404 = vmatprep.subr.mxu0 0.0
    %405 = vmatpush1.msra.mxu0 %v369
    %406 = vmatprep.subr.mxu0 0.0
    %407 = vmatpush1.msra.mxu0 %v368
    %408 = vmatprep.subr.mxu0 0.0
    %409 = vmatpush1.msra.mxu0 %v367
    %410 = vmatprep.subr.mxu0 0.0
    %411 = vmatpush1.msra.mxu0 %v366
    %412 = vmatprep.subr.mxu0 0.0
    %413 = vmatpush1.msra.mxu0 %v365
    %414 = vmatprep.subr.mxu0 0.0
    %415 = vmatpush1.msra.mxu0 %v364
    %416 = vmatprep.subr.mxu0 0.0
    %417 = vmatpush1.msra.mxu0 %v363
    %418 = vmatprep.subr.mxu0 0.0
    %419 = vmatpush2.msra.mxu0 0.0
    %420 = vmatprep.subr.mxu0 0.0
    %421 = vmatpush2.msra.mxu0 0.0
    %422 = vmatprep.subr.mxu0 0.0
    %423 = vmatpush2.msra.mxu0 0.0
    %424 = vmatprep.subr.mxu0 0.0
    %425 = vmatpush2.msra.mxu0 0.0
    %426 = vmatprep.subr.mxu0 0.0
    %427 = vmatpush2.msra.mxu0 0.0
    %428 = vmatprep.subr.mxu0 0.0
    %429 = vmatpush2.msra.mxu0 0.0
    %430 = vmatprep.subr.mxu0 0.0
    %431 = vmatpush2.msra.mxu0 0.0
    %432 = vmatprep.subr.mxu0 0.0
    %433 = vmatpush2.msra.mxu0 0.0
    %434 = vmatprep.subr.mxu0 0.0
    %435 = vmatpush2.msra.mxu0 0.0
    %436 = vmatprep.subr.mxu0 0.0
    %437 = vmatpush2.msra.mxu0 0.0
    %438 = vmatprep.subr.mxu0 0.0
    %439 = vmatpush2.msra.mxu0 0.0
    %440 = vmatprep.subr.mxu0 0.0
    %441 = vmatpush2.msra.mxu0 0.0
    %442 = vmatprep.subr.mxu0 0.0
    %443 = vmatpush2.msra.mxu0 0.0
    %444 = vmatprep.subr.mxu0 0.0
    %445 = vmatpush2.msra.mxu0 0.0
    %446 = vmatprep.subr.mxu0 0.0
    %447 = vmatpush2.msra.mxu0 0.0
    %448 = vmatprep.subr.mxu0 0.0
    %449 = vmatpush2.msra.mxu0 0.0
    %450 = vmatprep.mubr.f32.mxu0 0.0
    %451 = vmatmul.mubr.f32.gmra.mxu0 %v362
    %v452 = vpop.f32.mrf.mxu0
    %v453 = vadd.f32 %v384, %v452
    %v454 = vpop.f32.mrf.mxu0
    %455 = vdwg.mxu0
    %v456 = vmul.f32 %v453, 0.5
    %v457 = vtanh.pop %v456
    %v458 = vadd.f32 %v457, 1.0
    %v459 = vmul.f32 %v458, 0.5
    %v460 = vld [vmem:[%s9] sm:$0xff]
    %v461 = vld [vmem:[%s9 + $0x8] sm:$0xff]
    %v462 = vld [vmem:[%s9 + $0x10] sm:$0xff]
    %v463 = vld [vmem:[%s9 + $0x18] sm:$0xff]
    %v464 = vld [vmem:[%s9 + $0x20] sm:$0xff]
    %v465 = vld [vmem:[%s9 + $0x28] sm:$0xff]
    %v466 = vld [vmem:[%s9 + $0x30] sm:$0xff]
    %v467 = vld [vmem:[%s9 + $0x38] sm:$0xff]
    %v468 = vld [vmem:[%s9 + $0x40] sm:$0xff]
    %v469 = vld [vmem:[%s9 + $0x48] sm:$0xff]
    %v470 = vld [vmem:[%s9 + $0x50] sm:$0xff]
    %v471 = vld [vmem:[%s9 + $0x58] sm:$0xff]
    %v472 = vld [vmem:[%s9 + $0x60] sm:$0xff]
    %v473 = vld [vmem:[%s9 + $0x68] sm:$0xff]
    %v474 = vld [vmem:[%s9 + $0x70] sm:$0xff]
    %v475 = vld [vmem:[%s9 + $0x78] sm:$0xff]
    %v476 = vld [vmem:[#allocation7] sm:$0x1]
    %v478 = vlaneseq
    %v479 = vshrl.u32 %v478, 7
    %v480 = vsub.s32 0, %v479
    %v481 = vrot.slane %v476, %v480
    %483 = vmatprep.subr.mxu0 0.0
    %484 = vmatpush1.msra.mxu0 %v475
    %485 = vmatprep.subr.mxu0 0.0
    %486 = vmatpush1.msra.mxu0 %v474
    %487 = vmatprep.subr.mxu0 0.0
    %488 = vmatpush1.msra.mxu0 %v473
    %489 = vmatprep.subr.mxu0 0.0
    %490 = vmatpush1.msra.mxu0 %v472
    %491 = vmatprep.subr.mxu0 0.0
    %492 = vmatpush1.msra.mxu0 %v471
    %493 = vmatprep.subr.mxu0 0.0
    %494 = vmatpush1.msra.mxu0 %v470
    %495 = vmatprep.subr.mxu0 0.0
    %496 = vmatpush1.msra.mxu0 %v469
    %497 = vmatprep.subr.mxu0 0.0
    %498 = vmatpush1.msra.mxu0 %v468
    %499 = vmatprep.subr.mxu0 0.0
    %500 = vmatpush1.msra.mxu0 %v467
    %501 = vmatprep.subr.mxu0 0.0
    %502 = vmatpush1.msra.mxu0 %v466
    %503 = vmatprep.subr.mxu0 0.0
    %504 = vmatpush1.msra.mxu0 %v465
    %505 = vmatprep.subr.mxu0 0.0
    %506 = vmatpush1.msra.mxu0 %v464
    %507 = vmatprep.subr.mxu0 0.0
    %508 = vmatpush1.msra.mxu0 %v463
    %509 = vmatprep.subr.mxu0 0.0
    %510 = vmatpush1.msra.mxu0 %v462
    %511 = vmatprep.subr.mxu0 0.0
    %512 = vmatpush1.msra.mxu0 %v461
    %513 = vmatprep.subr.mxu0 0.0
    %514 = vmatpush1.msra.mxu0 %v460
    %515 = vmatprep.subr.mxu0 0.0
    %516 = vmatpush2.msra.mxu0 0.0
    %517 = vmatprep.subr.mxu0 0.0
    %518 = vmatpush2.msra.mxu0 0.0
    %519 = vmatprep.subr.mxu0 0.0
    %520 = vmatpush2.msra.mxu0 0.0
    %521 = vmatprep.subr.mxu0 0.0
    %522 = vmatpush2.msra.mxu0 0.0
    %523 = vmatprep.subr.mxu0 0.0
    %524 = vmatpush2.msra.mxu0 0.0
    %525 = vmatprep.subr.mxu0 0.0
    %526 = vmatpush2.msra.mxu0 0.0
    %527 = vmatprep.subr.mxu0 0.0
    %528 = vmatpush2.msra.mxu0 0.0
    %529 = vmatprep.subr.mxu0 0.0
    %530 = vmatpush2.msra.mxu0 0.0
    %531 = vmatprep.subr.mxu0 0.0
    %532 = vmatpush2.msra.mxu0 0.0
    %533 = vmatprep.subr.mxu0 0.0
    %534 = vmatpush2.msra.mxu0 0.0
    %535 = vmatprep.subr.mxu0 0.0
    %536 = vmatpush2.msra.mxu0 0.0
    %537 = vmatprep.subr.mxu0 0.0
    %538 = vmatpush2.msra.mxu0 0.0
    %539 = vmatprep.subr.mxu0 0.0
    %540 = vmatpush2.msra.mxu0 0.0
    %541 = vmatprep.subr.mxu0 0.0
    %542 = vmatpush2.msra.mxu0 0.0
    %543 = vmatprep.subr.mxu0 0.0
    %544 = vmatpush2.msra.mxu0 0.0
    %545 = vmatprep.subr.mxu0 0.0
    %546 = vmatpush2.msra.mxu0 0.0
    %547 = vmatprep.mubr.f32.mxu0 0.0
    %548 = vmatmul.mubr.f32.gmra.mxu0 %v459
    %v549 = vpop.f32.mrf.mxu0
    %v550 = vadd.f32 %v481, %v549
    %v551 = vpop.f32.mrf.mxu0
    %552 = vdwg.mxu0
    %v553 = vmul.f32 %v550, 0.5
    %v554 = vtanh.pop %v553
    %v555 = vadd.f32 %v554, 1.0
    %v556 = vmul.f32 %v555, 0.5
    %v557 = vld [vmem:[%s11] sm:$0xff]
    %v558 = vld [vmem:[%s11 + $0x8] sm:$0xff]
    %v559 = vld [vmem:[%s11 + $0x10] sm:$0xff]
    %v560 = vld [vmem:[%s11 + $0x18] sm:$0xff]
    %v561 = vld [vmem:[%s11 + $0x20] sm:$0xff]
    %v562 = vld [vmem:[%s11 + $0x28] sm:$0xff]
    %v563 = vld [vmem:[%s11 + $0x30] sm:$0xff]
    %v564 = vld [vmem:[%s11 + $0x38] sm:$0xff]
    %v565 = vld [vmem:[%s12] sm:$0x1]
    %v567 = vlaneseq
    %v568 = vshrl.u32 %v567, 7
    %v569 = vsub.s32 0, %v568
    %v570 = vrot.slane %v565, %v569
    %vm572 = vcmask 523264
    %v574 = vsel %vm572, %v556, 0
    %576 = vmatprep.subr.mxu0 0.0
    %577 = vmatpush1.msra.mxu0 0.0
    %578 = vmatprep.subr.mxu0 0.0
    %579 = vmatpush1.msra.mxu0 0.0
    %580 = vmatprep.subr.mxu0 0.0
    %581 = vmatpush1.msra.mxu0 0.0
    %582 = vmatprep.subr.mxu0 0.0
    %583 = vmatpush1.msra.mxu0 0.0
    %584 = vmatprep.subr.mxu0 0.0
    %585 = vmatpush1.msra.mxu0 0.0
    %586 = vmatprep.subr.mxu0 0.0
    %587 = vmatpush1.msra.mxu0 0.0
    %588 = vmatprep.subr.mxu0 0.0
    %589 = vmatpush1.msra.mxu0 0.0
    %590 = vmatprep.subr.mxu0 0.0
    %591 = vmatpush1.msra.mxu0 0.0
    %592 = vmatprep.subr.mxu0 0.0
    %593 = vmatpush1.msra.mxu0 %v564
    %594 = vmatprep.subr.mxu0 0.0
    %595 = vmatpush1.msra.mxu0 %v563
    %596 = vmatprep.subr.mxu0 0.0
    %597 = vmatpush1.msra.mxu0 %v562
    %598 = vmatprep.subr.mxu0 0.0
    %599 = vmatpush1.msra.mxu0 %v561
    %600 = vmatprep.subr.mxu0 0.0
    %601 = vmatpush1.msra.mxu0 %v560
    %602 = vmatprep.subr.mxu0 0.0
    %603 = vmatpush1.msra.mxu0 %v559
    %604 = vmatprep.subr.mxu0 0.0
    %605 = vmatpush1.msra.mxu0 %v558
    %606 = vmatprep.subr.mxu0 0.0
    %607 = vmatpush1.msra.mxu0 %v557
    %608 = vmatprep.subr.mxu0 0.0
    %609 = vmatpush2.msra.mxu0 0.0
    %610 = vmatprep.subr.mxu0 0.0
    %611 = vmatpush2.msra.mxu0 0.0
    %612 = vmatprep.subr.mxu0 0.0
    %613 = vmatpush2.msra.mxu0 0.0
    %614 = vmatprep.subr.mxu0 0.0
    %615 = vmatpush2.msra.mxu0 0.0
    %616 = vmatprep.subr.mxu0 0.0
    %617 = vmatpush2.msra.mxu0 0.0
    %618 = vmatprep.subr.mxu0 0.0
    %619 = vmatpush2.msra.mxu0 0.0
    %620 = vmatprep.subr.mxu0 0.0
    %621 = vmatpush2.msra.mxu0 0.0
    %622 = vmatprep.subr.mxu0 0.0
    %623 = vmatpush2.msra.mxu0 0.0
    %624 = vmatprep.subr.mxu0 0.0
    %625 = vmatpush2.msra.mxu0 0.0
    %626 = vmatprep.subr.mxu0 0.0
    %627 = vmatpush2.msra.mxu0 0.0
    %628 = vmatprep.subr.mxu0 0.0
    %629 = vmatpush2.msra.mxu0 0.0
    %630 = vmatprep.subr.mxu0 0.0
    %631 = vmatpush2.msra.mxu0 0.0
    %632 = vmatprep.subr.mxu0 0.0
    %633 = vmatpush2.msra.mxu0 0.0
    %634 = vmatprep.subr.mxu0 0.0
    %635 = vmatpush2.msra.mxu0 0.0
    %636 = vmatprep.subr.mxu0 0.0
    %637 = vmatpush2.msra.mxu0 0.0
    %638 = vmatprep.subr.mxu0 0.0
    %639 = vmatpush2.msra.mxu0 0.0
    %640 = vmatprep.mubr.f32.mxu0 0.0
    %641 = vmatmul.mubr.f32.gmra.mxu0 %v574
    %v642 = vpop.f32.mrf.mxu0
    %v643 = vadd.f32 %v570, %v642
    %v644 = vpop.f32.mrf.mxu0
    %645 = vdwg.mxu0
    %v646 = vld [vmem:[%s4] sm:$0xff]
    %v647 = vld [vmem:[%s4 + $0x8] sm:$0xff]
    %v648 = vld [vmem:[%s4 + $0x10] sm:$0xff]
    %v649 = vld [vmem:[%s4 + $0x18] sm:$0xff]
    %v650 = vld [vmem:[%s4 + $0x20] sm:$0xff]
    %v651 = vld [vmem:[%s4 + $0x28] sm:$0xff]
    %v652 = vld [vmem:[%s4 + $0x30] sm:$0xff]
    %v653 = vld [vmem:[%s4 + $0x38] sm:$0xff]
    %v654 = vld [vmem:[%s4 + $0x40] sm:$0xff]
    %v655 = vld [vmem:[%s4 + $0x48] sm:$0xff]
    %v656 = vld [vmem:[%s4 + $0x50] sm:$0xff]
    %v657 = vld [vmem:[%s4 + $0x58] sm:$0xff]
    %v658 = vld [vmem:[%s13] sm:$0x3]
    %v660 = vlaneseq
    %v661 = vshrl.u32 %v660, 7
    %v662 = vsub.s32 0, %v661
    %v663 = vrot.slane %v658, %v662
    %v664 = vlaneseq
    %v665 = vshrl.u32 %v664, 7
    %v666 = vsub.s32 1, %v665
    %v667 = vrot.slane %v658, %v666
    %v682 = vunpack.c.l.b16 %v646
    %v683 = vunpack.c.h.b16 %v646
    %v684 = vunpack.c.l.b16 %v647
    %v685 = vunpack.c.h.b16 %v647
    %v686 = vunpack.c.l.b16 %v648
    %v687 = vunpack.c.h.b16 %v648
    %v688 = vunpack.c.l.b16 %v649
    %v689 = vunpack.c.h.b16 %v649
    %v690 = vunpack.c.l.b16 %v650
    %v691 = vunpack.c.h.b16 %v650
    %v692 = vunpack.c.l.b16 %v651
    %v693 = vunpack.c.h.b16 %v651
    %v694 = vunpack.c.l.b16 %v652
    %v695 = vunpack.c.h.b16 %v652
    %v696 = vunpack.c.l.b16 %v653
    %v697 = vunpack.c.h.b16 %v653
    %v698 = vunpack.c.l.b16 %v654
    %v699 = vunpack.c.h.b16 %v654
    %v700 = vunpack.c.l.b16 %v655
    %v701 = vunpack.c.h.b16 %v655
    %v702 = vunpack.c.l.b16 %v656
    %v703 = vunpack.c.h.b16 %v656
    %v704 = vunpack.c.l.b16 %v657
    %v705 = vunpack.c.h.b16 %v657
    %v706 = vpack.c.b16 %v684, %v682
    %v707 = vpack.c.b16 %v685, %v683
    %v708 = vpack.c.b16 %v688, %v686
    %v709 = vpack.c.b16 %v689, %v687
    %v710 = vpack.c.b16 %v692, %v690
    %v711 = vpack.c.b16 %v693, %v691
    %v712 = vpack.c.b16 %v696, %v694
    %v713 = vpack.c.b16 %v697, %v695
    %v714 = vpack.c.b16 %v700, %v698
    %v715 = vpack.c.b16 %v701, %v699
    %v716 = vpack.c.b16 %v704, %v702
    %v717 = vpack.c.b16 %v705, %v703
    %vm730 = vcmask 785408
    %v732 = vsel %vm730, %v138, 0
    %734 = vmatprep.subr.bf16.mxu0 0
    %735 = vmatpush1.bf16.msra.mxu0 0
    %736 = vmatprep.subr.bf16.mxu0 0
    %737 = vmatpush1.bf16.msra.mxu0 0
    %738 = vmatprep.subr.bf16.mxu0 %v717
    %739 = vmatpush1.bf16.msra.mxu0 %v716
    %740 = vmatprep.subr.bf16.mxu0 %v715
    %741 = vmatpush1.bf16.msra.mxu0 %v714
    %742 = vmatprep.subr.bf16.mxu0 %v713
    %743 = vmatpush1.bf16.msra.mxu0 %v712
    %744 = vmatprep.subr.bf16.mxu0 %v711
    %745 = vmatpush1.bf16.msra.mxu0 %v710
    %746 = vmatprep.subr.bf16.mxu0 %v709
    %747 = vmatpush1.bf16.msra.mxu0 %v708
    %748 = vmatprep.subr.bf16.mxu0 %v707
    %749 = vmatpush1.bf16.msra.mxu0 %v706
    %750 = vmatprep.subr.bf16.mxu0 0
    %751 = vmatpush2.bf16.msra.mxu0 0
    %752 = vmatprep.subr.bf16.mxu0 0
    %753 = vmatpush2.bf16.msra.mxu0 0
    %754 = vmatprep.subr.bf16.mxu0 0
    %755 = vmatpush2.bf16.msra.mxu0 0
    %756 = vmatprep.subr.bf16.mxu0 0
    %757 = vmatpush2.bf16.msra.mxu0 0
    %758 = vmatprep.subr.bf16.mxu0 0
    %759 = vmatpush2.bf16.msra.mxu0 0
    %760 = vmatprep.subr.bf16.mxu0 0
    %761 = vmatpush2.bf16.msra.mxu0 0
    %762 = vmatprep.subr.bf16.mxu0 0
    %763 = vmatpush2.bf16.msra.mxu0 0
    %764 = vmatprep.subr.bf16.mxu0 0
    %765 = vmatpush2.bf16.msra.mxu0 0
    %766 = vmatprep.mubr.bf16.mxu0 0
    %767 = vmatmul.mubr.bf16.gmra.mxu0 %v732
    %v768 = vpop.f32.mrf.mxu0
    %v769 = vadd.f32 %v663, %v768
    %v770 = vpop.f32.mrf.mxu0
    %v771 = vadd.f32 %v667, %v770
    %v772 = vpop.f32.mrf.mxu0
    %v773 = vpop.f32.mrf.mxu0
    %774 = vdwg.mxu0
    %vm775 = vcmp.gt.f32.partialorder %v769, 0.0
    %vm776 = vcmp.gt.f32.partialorder %v771, 0.0
    %v777 = vmul.f32 %v769, 0.2
    %v778 = vmul.f32 %v771, 0.2
    %v779 = vsel %vm775, %v769, %v777
    %v780 = vsel %vm776, %v771, %v778
    %v781 = vld [vmem:[#allocation2] sm:$0xff]
    %v782 = vld [vmem:[#allocation2 + $0x8] sm:$0xff]
    %v783 = vld [vmem:[#allocation2 + $0x10] sm:$0xff]
    %v784 = vld [vmem:[#allocation2 + $0x18] sm:$0xff]
    %v785 = vld [vmem:[#allocation9] sm:$0x3]
    %v787 = vlaneseq
    %v788 = vshrl.u32 %v787, 7
    %v789 = vsub.s32 0, %v788
    %v790 = vrot.slane %v785, %v789
    %v791 = vlaneseq
    %v792 = vshrl.u32 %v791, 7
    %v793 = vsub.s32 1, %v792
    %v794 = vrot.slane %v785, %v793
    %798 = vrot.lane.b32.xlu0 %v138, 32
    %v799 = vpop.permute.xlu0 %798
    %v804 = vunpack.c.l.b16 %v781
    %v805 = vunpack.c.h.b16 %v781
    %v806 = vunpack.c.l.b16 %v782
    %v807 = vunpack.c.h.b16 %v782
    %v808 = vunpack.c.l.b16 %v783
    %v809 = vunpack.c.h.b16 %v783
    %v810 = vunpack.c.l.b16 %v784
    %v811 = vunpack.c.h.b16 %v784
    %v812 = vpack.c.b16 %v806, %v804
    %v813 = vpack.c.b16 %v807, %v805
    %v814 = vpack.c.b16 %v810, %v808
    %v815 = vpack.c.b16 %v811, %v809
    %vm820 = vcmask 261120
    %v822 = vsel %vm820, %v799, 0
    %824 = vmatprep.subr.bf16.mxu0 0
    %825 = vmatpush1.bf16.msra.mxu0 0
    %826 = vmatprep.subr.bf16.mxu0 0
    %827 = vmatpush1.bf16.msra.mxu0 0
    %828 = vmatprep.subr.bf16.mxu0 0
    %829 = vmatpush1.bf16.msra.mxu0 0
    %830 = vmatprep.subr.bf16.mxu0 0
    %831 = vmatpush1.bf16.msra.mxu0 0
    %832 = vmatprep.subr.bf16.mxu0 0
    %833 = vmatpush1.bf16.msra.mxu0 0
    %834 = vmatprep.subr.bf16.mxu0 0
    %835 = vmatpush1.bf16.msra.mxu0 0
    %836 = vmatprep.subr.bf16.mxu0 %v815
    %837 = vmatpush1.bf16.msra.mxu0 %v814
    %838 = vmatprep.subr.bf16.mxu0 %v813
    %839 = vmatpush1.bf16.msra.mxu0 %v812
    %840 = vmatprep.subr.bf16.mxu0 0
    %841 = vmatpush2.bf16.msra.mxu0 0
    %842 = vmatprep.subr.bf16.mxu0 0
    %843 = vmatpush2.bf16.msra.mxu0 0
    %844 = vmatprep.subr.bf16.mxu0 0
    %845 = vmatpush2.bf16.msra.mxu0 0
    %846 = vmatprep.subr.bf16.mxu0 0
    %847 = vmatpush2.bf16.msra.mxu0 0
    %848 = vmatprep.subr.bf16.mxu0 0
    %849 = vmatpush2.bf16.msra.mxu0 0
    %850 = vmatprep.subr.bf16.mxu0 0
    %851 = vmatpush2.bf16.msra.mxu0 0
    %852 = vmatprep.subr.bf16.mxu0 0
    %853 = vmatpush2.bf16.msra.mxu0 0
    %854 = vmatprep.subr.bf16.mxu0 0
    %855 = vmatpush2.bf16.msra.mxu0 0
    %856 = vmatprep.mubr.bf16.mxu0 0
    %857 = vmatmul.mubr.bf16.gmra.mxu0 %v822
    %v858 = vpop.f32.mrf.mxu0
    %v859 = vadd.f32 %v790, %v858
    %v860 = vpop.f32.mrf.mxu0
    %v861 = vadd.f32 %v794, %v860
    %v862 = vpop.f32.mrf.mxu0
    %v863 = vpop.f32.mrf.mxu0
    %864 = vdwg.mxu0
    %vm865 = vcmp.gt.f32.partialorder %v859, 0.0
    %vm866 = vcmp.gt.f32.partialorder %v861, 0.0
    %v867 = vmul.f32 %v859, 0.2
    %v868 = vmul.f32 %v861, 0.2
    %v869 = vsel %vm865, %v859, %v867
    %v870 = vsel %vm866, %v861, %v868
    %v871 = vld [vmem:[#allocation10] sm:$0xff]
    %v872 = vld [vmem:[#allocation10 + $0x8] sm:$0xff]
    %v873 = vld [vmem:[#allocation10 + $0x10] sm:$0xff]
    %v874 = vld [vmem:[#allocation10 + $0x18] sm:$0xff]
    %v875 = vld [vmem:[#allocation10 + $0x20] sm:$0xff]
    %v876 = vld [vmem:[#allocation10 + $0x28] sm:$0xff]
    %v877 = vld [vmem:[#allocation10 + $0x30] sm:$0xff]
    %v878 = vld [vmem:[#allocation10 + $0x38] sm:$0xff]
    %v879 = vld [vmem:[#allocation10 + $0x40] sm:$0xff]
    %v880 = vld [vmem:[#allocation10 + $0x48] sm:$0xff]
    %v881 = vld [vmem:[#allocation10 + $0x50] sm:$0xff]
    %v882 = vld [vmem:[#allocation10 + $0x58] sm:$0xff]
    %v883 = vld [vmem:[#allocation10 + $0x60] sm:$0xff]
    %v884 = vld [vmem:[#allocation10 + $0x68] sm:$0xff]
    %v885 = vld [vmem:[#allocation10 + $0x70] sm:$0xff]
    %v886 = vld [vmem:[#allocation10 + $0x78] sm:$0xff]
    %v887 = vld [vmem:[#allocation10 + $0x80] sm:$0xff]
    %v888 = vld [vmem:[#allocation10 + $0x88] sm:$0xff]
    %v889 = vld [vmem:[#allocation10 + $0x90] sm:$0xff]
    %v890 = vld [vmem:[#allocation10 + $0x98] sm:$0xff]
    %v891 = vld [vmem:[#allocation10 + $0xa0] sm:$0xff]
    %v892 = vld [vmem:[#allocation10 + $0xa8] sm:$0xff]
    %v893 = vld [vmem:[#allocation10 + $0xb0] sm:$0xff]
    %v894 = vld [vmem:[#allocation10 + $0xb8] sm:$0xff]
    %v895 = vld [vmem:[#allocation10 + $0xc0] sm:$0xff]
    %v896 = vld [vmem:[#allocation10 + $0xc8] sm:$0xff]
    %v897 = vld [vmem:[#allocation10 + $0xd0] sm:$0xff]
    %v898 = vld [vmem:[#allocation10 + $0xd8] sm:$0xff]
    %v899 = vld [vmem:[#allocation10 + $0xe0] sm:$0xff]
    %v900 = vld [vmem:[#allocation10 + $0xe8] sm:$0xff]
    %v901 = vld [vmem:[#allocation10 + $0xf0] sm:$0xff]
    %v902 = vld [vmem:[#allocation10 + $0xf8] sm:$0xff]
    %v903 = vld [vmem:[#allocation10 + $0x100] sm:$0xff]
    %v904 = vld [vmem:[#allocation10 + $0x108] sm:$0xff]
    %v905 = vld [vmem:[#allocation10 + $0x110] sm:$0xff]
    %v906 = vld [vmem:[#allocation10 + $0x118] sm:$0xff]
    %v907 = vld [vmem:[#allocation10 + $0x120] sm:$0xff]
    %v908 = vld [vmem:[#allocation10 + $0x128] sm:$0xff]
    %v909 = vld [vmem:[#allocation10 + $0x130] sm:$0xff]
    %v910 = vld [vmem:[#allocation10 + $0x138] sm:$0xff]
    %v911 = vld [vmem:[#allocation10 + $0x140] sm:$0xff]
    %v912 = vld [vmem:[#allocation10 + $0x148] sm:$0xff]
    %v913 = vld [vmem:[#allocation10 + $0x150] sm:$0xff]
    %v914 = vld [vmem:[#allocation10 + $0x158] sm:$0xff]
    %v915 = vld [vmem:[#allocation10 + $0x160] sm:$0xff]
    %v916 = vld [vmem:[#allocation10 + $0x168] sm:$0xff]
    %v917 = vld [vmem:[#allocation10 + $0x170] sm:$0xff]
    %v918 = vld [vmem:[#allocation10 + $0x178] sm:$0xff]
    %v919 = vld [vmem:[#allocation10 + $0x180] sm:$0xff]
    %v920 = vld [vmem:[#allocation10 + $0x188] sm:$0xff]
    %v921 = vld [vmem:[#allocation10 + $0x190] sm:$0xff]
    %v922 = vld [vmem:[#allocation10 + $0x198] sm:$0xff]
    %v923 = vld [vmem:[#allocation10 + $0x1a0] sm:$0xff]
    %v924 = vld [vmem:[#allocation10 + $0x1a8] sm:$0xff]
    %v925 = vld [vmem:[#allocation10 + $0x1b0] sm:$0xff]
    %v926 = vld [vmem:[#allocation10 + $0x1b8] sm:$0xff]
    %v927 = vld [vmem:[#allocation10 + $0x1c0] sm:$0xff]
    %v928 = vld [vmem:[#allocation10 + $0x1c8] sm:$0xff]
    %v929 = vld [vmem:[#allocation10 + $0x1d0] sm:$0xff]
    %v930 = vld [vmem:[#allocation10 + $0x1d8] sm:$0xff]
    %v931 = vld [vmem:[#allocation10 + $0x1e0] sm:$0xff]
    %v932 = vld [vmem:[#allocation10 + $0x1e8] sm:$0xff]
    %v933 = vld [vmem:[#allocation10 + $0x1f0] sm:$0xff]
    %v934 = vld [vmem:[#allocation10 + $0x1f8] sm:$0xff]
    %v935 = vld [vmem:[%s16] sm:$0x1]
    %v937 = vlaneseq
    %v938 = vshrl.u32 %v937, 7
    %v939 = vsub.s32 0, %v938
    %v940 = vrot.slane %v935, %v939
    %942 = vmatprep.subr.mxu0 0.0
    %943 = vmatpush1.msra.mxu0 %v886
    %944 = vmatprep.subr.mxu0 0.0
    %945 = vmatpush1.msra.mxu0 %v885
    %946 = vmatprep.subr.mxu0 0.0
    %947 = vmatpush1.msra.mxu0 %v884
    %948 = vmatprep.subr.mxu0 0.0
    %949 = vmatpush1.msra.mxu0 %v883
    %950 = vmatprep.subr.mxu0 0.0
    %951 = vmatpush1.msra.mxu0 %v882
    %952 = vmatprep.subr.mxu0 0.0
    %953 = vmatpush1.msra.mxu0 %v881
    %954 = vmatprep.subr.mxu0 0.0
    %955 = vmatpush1.msra.mxu0 %v880
    %956 = vmatprep.subr.mxu0 0.0
    %957 = vmatpush1.msra.mxu0 %v879
    %958 = vmatprep.subr.mxu0 0.0
    %959 = vmatpush1.msra.mxu0 %v878
    %960 = vmatprep.subr.mxu0 0.0
    %961 = vmatpush1.msra.mxu0 %v877
    %962 = vmatprep.subr.mxu0 0.0
    %963 = vmatpush1.msra.mxu0 %v876
    %964 = vmatprep.subr.mxu0 0.0
    %965 = vmatpush1.msra.mxu0 %v875
    %966 = vmatprep.subr.mxu0 0.0
    %967 = vmatpush1.msra.mxu0 %v874
    %968 = vmatprep.subr.mxu0 0.0
    %969 = vmatpush1.msra.mxu0 %v873
    %970 = vmatprep.subr.mxu0 0.0
    %971 = vmatpush1.msra.mxu0 %v872
    %972 = vmatprep.subr.mxu0 0.0
    %973 = vmatpush1.msra.mxu0 %v871
    %974 = vmatprep.subr.mxu0 0.0
    %975 = vmatpush2.msra.mxu0 %v902
    %976 = vmatprep.subr.mxu0 0.0
    %977 = vmatpush2.msra.mxu0 %v901
    %978 = vmatprep.subr.mxu0 0.0
    %979 = vmatpush2.msra.mxu0 %v900
    %980 = vmatprep.subr.mxu0 0.0
    %981 = vmatpush2.msra.mxu0 %v899
    %982 = vmatprep.subr.mxu0 0.0
    %983 = vmatpush2.msra.mxu0 %v898
    %984 = vmatprep.subr.mxu0 0.0
    %985 = vmatpush2.msra.mxu0 %v897
    %986 = vmatprep.subr.mxu0 0.0
    %987 = vmatpush2.msra.mxu0 %v896
    %988 = vmatprep.subr.mxu0 0.0
    %989 = vmatpush2.msra.mxu0 %v895
    %990 = vmatprep.subr.mxu0 0.0
    %991 = vmatpush2.msra.mxu0 %v894
    %992 = vmatprep.subr.mxu0 0.0
    %993 = vmatpush2.msra.mxu0 %v893
    %994 = vmatprep.subr.mxu0 0.0
    %995 = vmatpush2.msra.mxu0 %v892
    %996 = vmatprep.subr.mxu0 0.0
    %997 = vmatpush2.msra.mxu0 %v891
    %998 = vmatprep.subr.mxu0 0.0
    %999 = vmatpush2.msra.mxu0 %v890
    %1000 = vmatprep.subr.mxu0 0.0
    %1001 = vmatpush2.msra.mxu0 %v889
    %1002 = vmatprep.subr.mxu0 0.0
    %1003 = vmatpush2.msra.mxu0 %v888
    %1004 = vmatprep.subr.mxu0 0.0
    %1005 = vmatpush2.msra.mxu0 %v887
    %1006 = vmatprep.mubr.f32.mxu0 %v780
    %1007 = vmatmul.mubr.f32.gmra.mxu0 %v779
    %v1008 = vpop.f32.mrf.mxu0
    %v1009 = vadd.f32 %v940, %v1008
    %v1010 = vpop.f32.mrf.mxu0
    %1011 = vdwg.mxu0
    %1012 = vmatprep.subr.mxu0 0.0
    %1013 = vmatpush1.msra.mxu0 %v918
    %1014 = vmatprep.subr.mxu0 0.0
    %1015 = vmatpush1.msra.mxu0 %v917
    %1016 = vmatprep.subr.mxu0 0.0
    %1017 = vmatpush1.msra.mxu0 %v916
    %1018 = vmatprep.subr.mxu0 0.0
    %1019 = vmatpush1.msra.mxu0 %v915
    %1020 = vmatprep.subr.mxu0 0.0
    %1021 = vmatpush1.msra.mxu0 %v914
    %1022 = vmatprep.subr.mxu0 0.0
    %1023 = vmatpush1.msra.mxu0 %v913
    %1024 = vmatprep.subr.mxu0 0.0
    %1025 = vmatpush1.msra.mxu0 %v912
    %1026 = vmatprep.subr.mxu0 0.0
    %1027 = vmatpush1.msra.mxu0 %v911
    %1028 = vmatprep.subr.mxu0 0.0
    %1029 = vmatpush1.msra.mxu0 %v910
    %1030 = vmatprep.subr.mxu0 0.0
    %1031 = vmatpush1.msra.mxu0 %v909
    %1032 = vmatprep.subr.mxu0 0.0
    %1033 = vmatpush1.msra.mxu0 %v908
    %1034 = vmatprep.subr.mxu0 0.0
    %1035 = vmatpush1.msra.mxu0 %v907
    %1036 = vmatprep.subr.mxu0 0.0
    %1037 = vmatpush1.msra.mxu0 %v906
    %1038 = vmatprep.subr.mxu0 0.0
    %1039 = vmatpush1.msra.mxu0 %v905
    %1040 = vmatprep.subr.mxu0 0.0
    %1041 = vmatpush1.msra.mxu0 %v904
    %1042 = vmatprep.subr.mxu0 0.0
    %1043 = vmatpush1.msra.mxu0 %v903
    %1044 = vmatprep.subr.mxu0 0.0
    %1045 = vmatpush2.msra.mxu0 %v934
    %1046 = vmatprep.subr.mxu0 0.0
    %1047 = vmatpush2.msra.mxu0 %v933
    %1048 = vmatprep.subr.mxu0 0.0
    %1049 = vmatpush2.msra.mxu0 %v932
    %1050 = vmatprep.subr.mxu0 0.0
    %1051 = vmatpush2.msra.mxu0 %v931
    %1052 = vmatprep.subr.mxu0 0.0
    %1053 = vmatpush2.msra.mxu0 %v930
    %1054 = vmatprep.subr.mxu0 0.0
    %1055 = vmatpush2.msra.mxu0 %v929
    %1056 = vmatprep.subr.mxu0 0.0
    %1057 = vmatpush2.msra.mxu0 %v928
    %1058 = vmatprep.subr.mxu0 0.0
    %1059 = vmatpush2.msra.mxu0 %v927
    %1060 = vmatprep.subr.mxu0 0.0
    %1061 = vmatpush2.msra.mxu0 %v926
    %1062 = vmatprep.subr.mxu0 0.0
    %1063 = vmatpush2.msra.mxu0 %v925
    %1064 = vmatprep.subr.mxu0 0.0
    %1065 = vmatpush2.msra.mxu0 %v924
    %1066 = vmatprep.subr.mxu0 0.0
    %1067 = vmatpush2.msra.mxu0 %v923
    %1068 = vmatprep.subr.mxu0 0.0
    %1069 = vmatpush2.msra.mxu0 %v922
    %1070 = vmatprep.subr.mxu0 0.0
    %1071 = vmatpush2.msra.mxu0 %v921
    %1072 = vmatprep.subr.mxu0 0.0
    %1073 = vmatpush2.msra.mxu0 %v920
    %1074 = vmatprep.subr.mxu0 0.0
    %1075 = vmatpush2.msra.mxu0 %v919
    %1076 = vmatprep.mubr.f32.mxu0 %v870
    %1077 = vmatmul.mubr.f32.gmra.mxu0 %v869
    %v1078 = vpop.f32.mrf.mxu0
    %v1079 = vadd.f32 %v1009, %v1078
    %v1080 = vpop.f32.mrf.mxu0
    %1081 = vdwg.mxu0
    %v1082 = vmul.f32 %v1079, 0.5
    %v1083 = vtanh.pop %v1082
    %v1084 = vadd.f32 %v1083, 1.0
    %v1085 = vmul.f32 %v1084, 0.5
    %v1086 = vld [vmem:[%s17] sm:$0xff]
    %v1087 = vld [vmem:[%s17 + $0x8] sm:$0xff]
    %v1088 = vld [vmem:[%s17 + $0x10] sm:$0xff]
    %v1089 = vld [vmem:[%s17 + $0x18] sm:$0xff]
    %v1090 = vld [vmem:[%s17 + $0x20] sm:$0xff]
    %v1091 = vld [vmem:[%s17 + $0x28] sm:$0xff]
    %v1092 = vld [vmem:[%s17 + $0x30] sm:$0xff]
    %v1093 = vld [vmem:[%s17 + $0x38] sm:$0xff]
    %v1094 = vld [vmem:[%s17 + $0x40] sm:$0xff]
    %v1095 = vld [vmem:[%s17 + $0x48] sm:$0xff]
    %v1096 = vld [vmem:[%s17 + $0x50] sm:$0xff]
    %v1097 = vld [vmem:[%s17 + $0x58] sm:$0xff]
    %v1098 = vld [vmem:[%s17 + $0x60] sm:$0xff]
    %v1099 = vld [vmem:[%s17 + $0x68] sm:$0xff]
    %v1100 = vld [vmem:[%s17 + $0x70] sm:$0xff]
    %v1101 = vld [vmem:[%s17 + $0x78] sm:$0xff]
    %v1102 = vld [vmem:[%s18] sm:$0x1]
    %v1104 = vlaneseq
    %v1105 = vshrl.u32 %v1104, 7
    %v1106 = vsub.s32 0, %v1105
    %v1107 = vrot.slane %v1102, %v1106
    %1109 = vmatprep.subr.mxu0 0.0
    %1110 = vmatpush1.msra.mxu0 %v1101
    %1111 = vmatprep.subr.mxu0 0.0
    %1112 = vmatpush1.msra.mxu0 %v1100
    %1113 = vmatprep.subr.mxu0 0.0
    %1114 = vmatpush1.msra.mxu0 %v1099
    %1115 = vmatprep.subr.mxu0 0.0
    %1116 = vmatpush1.msra.mxu0 %v1098
    %1117 = vmatprep.subr.mxu0 0.0
    %1118 = vmatpush1.msra.mxu0 %v1097
    %1119 = vmatprep.subr.mxu0 0.0
    %1120 = vmatpush1.msra.mxu0 %v1096
    %1121 = vmatprep.subr.mxu0 0.0
    %1122 = vmatpush1.msra.mxu0 %v1095
    %1123 = vmatprep.subr.mxu0 0.0
    %1124 = vmatpush1.msra.mxu0 %v1094
    %1125 = vmatprep.subr.mxu0 0.0
    %1126 = vmatpush1.msra.mxu0 %v1093
    %1127 = vmatprep.subr.mxu0 0.0
    %1128 = vmatpush1.msra.mxu0 %v1092
    %1129 = vmatprep.subr.mxu0 0.0
    %1130 = vmatpush1.msra.mxu0 %v1091
    %1131 = vmatprep.subr.mxu0 0.0
    %1132 = vmatpush1.msra.mxu0 %v1090
    %1133 = vmatprep.subr.mxu0 0.0
    %1134 = vmatpush1.msra.mxu0 %v1089
    %1135 = vmatprep.subr.mxu0 0.0
    %1136 = vmatpush1.msra.mxu0 %v1088
    %1137 = vmatprep.subr.mxu0 0.0
    %1138 = vmatpush1.msra.mxu0 %v1087
    %1139 = vmatprep.subr.mxu0 0.0
    %1140 = vmatpush1.msra.mxu0 %v1086
    %1141 = vmatprep.subr.mxu0 0.0
    %1142 = vmatpush2.msra.mxu0 0.0
    %1143 = vmatprep.subr.mxu0 0.0
    %1144 = vmatpush2.msra.mxu0 0.0
    %1145 = vmatprep.subr.mxu0 0.0
    %1146 = vmatpush2.msra.mxu0 0.0
    %1147 = vmatprep.subr.mxu0 0.0
    %1148 = vmatpush2.msra.mxu0 0.0
    %1149 = vmatprep.subr.mxu0 0.0
    %1150 = vmatpush2.msra.mxu0 0.0
    %1151 = vmatprep.subr.mxu0 0.0
    %1152 = vmatpush2.msra.mxu0 0.0
    %1153 = vmatprep.subr.mxu0 0.0
    %1154 = vmatpush2.msra.mxu0 0.0
    %1155 = vmatprep.subr.mxu0 0.0
    %1156 = vmatpush2.msra.mxu0 0.0
    %1157 = vmatprep.subr.mxu0 0.0
    %1158 = vmatpush2.msra.mxu0 0.0
    %1159 = vmatprep.subr.mxu0 0.0
    %1160 = vmatpush2.msra.mxu0 0.0
    %1161 = vmatprep.subr.mxu0 0.0
    %1162 = vmatpush2.msra.mxu0 0.0
    %1163 = vmatprep.subr.mxu0 0.0
    %1164 = vmatpush2.msra.mxu0 0.0
    %1165 = vmatprep.subr.mxu0 0.0
    %1166 = vmatpush2.msra.mxu0 0.0
    %1167 = vmatprep.subr.mxu0 0.0
    %1168 = vmatpush2.msra.mxu0 0.0
    %1169 = vmatprep.subr.mxu0 0.0
    %1170 = vmatpush2.msra.mxu0 0.0
    %1171 = vmatprep.subr.mxu0 0.0
    %1172 = vmatpush2.msra.mxu0 0.0
    %1173 = vmatprep.mubr.f32.mxu0 0.0
    %1174 = vmatmul.mubr.f32.gmra.mxu0 %v1085
    %v1175 = vpop.f32.mrf.mxu0
    %v1176 = vadd.f32 %v1107, %v1175
    %v1177 = vpop.f32.mrf.mxu0
    %1178 = vdwg.mxu0
    %v1179 = vld [vmem:[%s1] sm:$0xff]
    %1181 = vrot.lane.b32.xlu0 %v643, 124
    %v1182 = vpop.permute.xlu0 %1181
    %v1184 = vmax.f32 %v643, %v1182
    %v1185 = vsub.f32 %v643, %v1184
    %v1186 = vmul.f32 %v1185, 1.442695
    %v1187 = vpow.pop %v1186
    %1189 = vrot.lane.b32.xlu0 %v1184, 4
    %v1190 = vpop.permute.xlu0 %1189
    %v1192 = vsub.f32 %v643, %v1190
    %v1193 = vmul.f32 %v1192, 1.442695
    %v1194 = vpow.pop %v1193
    %1196 = vrot.lane.b32.xlu0 %v1194, 124
    %v1197 = vpop.permute.xlu0 %1196
    %v1199 = vadd.f32 %v1187, %v1197
    %v1200 = vrcp.pop %v1199
    %v1201 = vmul.f32 %v1187, %v1200
    %1203 = vset.pattern.permute.xlu0 0
    %1204 = vperm.xlu0 %1203, %v1179
    %v1205 = vpop.permute.xlu0 %1204
    %v1207 = vmul.f32 %v1201, %v1205
    %1209 = vrot.lane.b32.xlu0 %v1200, 4
    %v1210 = vpop.permute.xlu0 %1209
    %v1212 = vmul.f32 %v1194, %v1210
    %1213 = vset.pattern.permute.xlu0 1
    %1214 = vperm.xlu0 %1213, %v1179
    %v1215 = vpop.permute.xlu0 %1214
    %v1217 = vmul.f32 %v1212, %v1215
    %v1218 = vmul.f32 %v1207, %v1176
    %v1219 = vmul.f32 %v1217, %v1176
    %1221 = vrot.lane.b32.xlu0 %v1219, 124
    %v1222 = vpop.permute.xlu0 %1221
    %v1224 = vadd.f32 %v1218, %v1222
    %vm1225 = vcmask 31744
    %1226 = vst.msk [vmem:[%s19] sm:$0xff] %vm1225, %v1224
    // Predicated region
    $region102: #{tpu_custom_call.1} parent=1 // pred_check
      _
    $region103: #{tpu_custom_call.1} parent=1 // pred_check_branch
      %1228 = sbr.rel (0) target = $region105
    $region104: #{tpu_custom_call.1} parent=1 // pred_region
      _
    $region105: #{tpu_custom_call.1} parent=1 // pred_fallthru
      _
    // Predicated region
    $region106: #{tpu_custom_call.1} parent=1 // pred_check
      _
    $region107: #{tpu_custom_call.1} parent=1 // pred_check_branch
      %1230 = sbr.rel (0) target = $region109
    $region108: #{tpu_custom_call.1} parent=1 // pred_region
      _
    $region109: #{tpu_custom_call.1} parent=1 // pred_fallthru
      _
    %1231 = vsyncpa [#allocation3], 1
    %1232 = vsyncpa [#allocation5], 1
    %1233 = vsyncpa [#allocation8], 1
    %1234 = vsyncpa [#allocation11], 1

</llo_original>
